<compile_context>
chip_gen: v6e
topology: v6e:2x2x1
jax: 0.10.0
libtpu: 0.0.40
codegen_flags: <defaults>
</compile_context>

<pallas_src>
import functools

import jax
import jax.numpy as jnp
from jax import lax
from jax.experimental import pallas as pl
from jax.experimental.pallas import tpu as pltpu


# ---------------------------------------------------------------------------
# Fused kernel: conv1 -> pool -> conv2 -> pool -> fc1 -> fc2 -> fc3 (per batch tile)
# ---------------------------------------------------------------------------
def _net_kernel(x_ref, w1_ref, b1_ref, w2_ref, b2_ref,
                wf1_ref, bf1_ref, wf2_ref, bf2_ref, wf3_ref, bf3_ref,
                o_ref, z1_ref, z2_ref, *, b_tile):
    f32 = jnp.float32
    KH = 5
    HO1, HP1 = 28, 14          # conv1: pre-pool rows, pooled rows
    HO2, HP2 = 10, 5           # conv2

    # ---------------- conv1 + bias + ReLU + 2x2 max-pool ----------------
    x = x_ref[...]                                              # [b, 32, 96]
    acc = jnp.zeros((b_tile * HO1, 256), f32)
    for i in range(KH):                                         # shifted banded matmuls
        xs = x[:, i:i + HO1, :].reshape(b_tile * HO1, 96)       # batch stacked into M
        acc = acc + jnp.dot(xs, w1_ref[i], preferred_element_type=f32)
    m = jnp.maximum(acc[:, :128], acc[:, 128:])                 # W-pool: even vs odd lanes
    m = jnp.maximum(m + b1_ref[...], 0.0)                       # bias + ReLU (commute w/ pool)
    z1_ref[...] = m                                             # single full-block store
    p1 = jnp.maximum(z1_ref[pl.ds(0, b_tile * HP1, stride=2), :],   # H-pool via strided loads
                     z1_ref[pl.ds(1, b_tile * HP1, stride=2), :])
    p1 = p1.reshape(b_tile, HP1, 128)                           # [b, 14, 128] (84 real lanes)

    # ---------------- conv2 + bias + ReLU + 2x2 max-pool ----------------
    acc = jnp.zeros((b_tile * HO2, 256), f32)
    for i in range(KH):
        xs = p1[:, i:i + HO2, :].reshape(b_tile * HO2, 128)
        acc = acc + jnp.dot(xs, w2_ref[i], preferred_element_type=f32)
    m = jnp.maximum(acc[:, :128], acc[:, 128:])
    m = jnp.maximum(m + b2_ref[...], 0.0)
    z2_ref[...] = m
    p2 = jnp.maximum(z2_ref[pl.ds(0, b_tile * HP2, stride=2), :],
                     z2_ref[pl.ds(1, b_tile * HP2, stride=2), :])
    p2 = p2.reshape(b_tile, HP2, 128)                           # [b, 5, 128] (80 real lanes)

    # ---------------- fc1 + ReLU (accumulate over the 5 pooled rows) ----------------
    h = jnp.zeros((b_tile, 128), f32)
    for r in range(HP2):
        h = h + jnp.dot(p2[:, r, :], wf1_ref[r], preferred_element_type=f32)
    h = jnp.maximum(h + bf1_ref[...], 0.0)
    # ---------------- fc2 + ReLU ----------------
    h = jnp.dot(h, wf2_ref[...], preferred_element_type=f32)
    h = jnp.maximum(h + bf2_ref[...], 0.0)
    # ---------------- fc3 ----------------
    o_ref[...] = jnp.dot(h, wf3_ref[...], preferred_element_type=f32) + bf3_ref[...]


def net_forward(prep, x, *, b_tile=4):
    n = x.shape[0]
    assert x.shape[1:] == (3, 32, 32), x.shape
    bt = min(b_tile, n)
    n_pad = ((n + bt - 1) // bt) * bt
    x2d = jnp.transpose(x, (0, 2, 3, 1)).reshape(n, 32, 96)     # NCHW -> [N, H, W*C] (once)
    if n_pad != n:
        x2d = jnp.pad(x2d, ((0, n_pad - n), (0, 0), (0, 0)))

    flops = 2 * n_pad * (5 * 28 * 96 * 256 + 5 * 10 * 128 * 256
                         + 5 * 128 * 128 + 128 * 128 + 128 * 128)
    nbytes = 4 * (int(x2d.size) + sum(int(v.size) for v in prep.values()) + n_pad * 128)

    out = pl.pallas_call(
        functools.partial(_net_kernel, b_tile=bt),
        out_shape=jax.ShapeDtypeStruct((n_pad, 128), jnp.float32),
        grid=(n_pad // bt,),
        in_specs=[
            pl.BlockSpec((bt, 32, 96), lambda b: (b, 0, 0)),    # input (batch-tiled)
            pl.BlockSpec((5, 96, 256), lambda b: (0, 0, 0)),    # conv1 banded weights
            pl.BlockSpec((1, 128), lambda b: (0, 0)),           # conv1 bias (tiled, padded)
            pl.BlockSpec((5, 128, 256), lambda b: (0, 0, 0)),   # conv2 banded weights
            pl.BlockSpec((1, 128), lambda b: (0, 0)),           # conv2 bias
            pl.BlockSpec((5, 128, 128), lambda b: (0, 0, 0)),   # fc1 weights (per pooled row)
            pl.BlockSpec((1, 128), lambda b: (0, 0)),           # fc1 bias
            pl.BlockSpec((128, 128), lambda b: (0, 0)),         # fc2 weights
            pl.BlockSpec((1, 128), lambda b: (0, 0)),           # fc2 bias
            pl.BlockSpec((128, 128), lambda b: (0, 0)),         # fc3 weights
            pl.BlockSpec((1, 128), lambda b: (0, 0)),           # fc3 bias
        ],
        out_specs=pl.BlockSpec((bt, 128), lambda b: (b, 0)),
        scratch_shapes=[pltpu.VMEM((bt * 28, 128), jnp.float32),   # conv1 pre-H-pool block
                        pltpu.VMEM((bt * 10, 128), jnp.float32)],  # conv2 pre-H-pool block
        compiler_params=pltpu.CompilerParams(dimension_semantics=("parallel",)),
        cost_estimate=pl.CostEstimate(flops=flops, transcendentals=0,
                                      bytes_accessed=nbytes),
    )(x2d, prep["c1_w"], prep["c1_b"], prep["c2_w"], prep["c2_b"],
      prep["fc1_w"], prep["fc1_b"], prep["fc2_w"], prep["fc2_b"],
      prep["fc3_w"], prep["fc3_b"])
    return out[:n, :10]


# ---------------------------------------------------------------------------
# Parameters: PyTorch-layout init + one-time repacking into kernel-ready form.
# ---------------------------------------------------------------------------
def init_params(key):
    def uni(k, shape, fan_in):
        bound = 1.0 / float(fan_in) ** 0.5
        return jax.random.uniform(k, shape, jnp.float32, -bound, bound)

    ks = jax.random.split(key, 10)
    return {
        "conv1_w": uni(ks[0], (6, 3, 5, 5), 3 * 25),
        "conv1_b": uni(ks[1], (6,), 3 * 25),
        "conv2_w": uni(ks[2], (16, 6, 5, 5), 6 * 25),
        "conv2_b": uni(ks[3], (16,), 6 * 25),
        "fc1_w": uni(ks[4], (120, 400), 400),
        "fc1_b": uni(ks[5], (120,), 400),
        "fc2_w": uni(ks[6], (84, 120), 120),
        "fc2_b": uni(ks[7], (84,), 120),
        "fc3_w": uni(ks[8], (10, 84), 84),
        "fc3_b": uni(ks[9], (10,), 84),
    }


def _banded_conv_weights(wt, bias, W, in_rows, out_lanes):
    """PyTorch conv weight [Cout,Cin,kh,kw] -> merged even/odd banded matmul weight.

    Matmul K (rows):  w*Cin + ci, zero-padded to `in_rows`.
    Matmul N (lanes): parity*out_lanes + pw*Cout + co, each parity zero-padded to
    `out_lanes`, so   sum_i x2d[h+i, :] @ W[i]   holds conv(x)[h, 2*pw+parity, co]
    and the 2x2 W-pool is a max between the two `out_lanes`-wide halves.
    """
    cout, cin, kh, kw = wt.shape
    wo = W - kw + 1
    w2 = wo // 2
    a = jnp.arange(W)[:, None, None]
    pw = jnp.arange(w2)[None, :, None]
    j = jnp.arange(kw)[None, None, :]

    def banded(parity):
        sel = (a == 2 * pw + parity + j).astype(jnp.float32)       # [W, W2, kw]
        b = jnp.einsum("apj,ocij->iacpo", sel, wt)                 # [kh, W, Cin, W2, Cout]
        b = b.reshape(kh, W * cin, w2 * cout)
        return jnp.pad(b, ((0, 0), (0, in_rows - W * cin), (0, out_lanes - w2 * cout)))

    wm = jnp.concatenate([banded(0), banded(1)], axis=-1)          # [kh, in_rows, 2*out_lanes]
    bt = jnp.pad(jnp.tile(bias, w2), (0, out_lanes - w2 * cout)).reshape(1, out_lanes)
    return wm, bt


def prepare_params(params):
    prep = {}
    prep["c1_w"], prep["c1_b"] = _banded_conv_weights(
        params["conv1_w"], params["conv1_b"], W=32, in_rows=96, out_lanes=128)
    prep["c2_w"], prep["c2_b"] = _banded_conv_weights(
        params["conv2_w"], params["conv2_b"], W=14, in_rows=128, out_lanes=128)
    # torch's .view(-1, 400) flattens (c, h, w); kernel layout is (h', lane=w'*16+c) with
    # lanes padded to 128 -> permute + pad fc1 once here (one [128,128] block per h').
    w1 = params["fc1_w"].reshape(120, 16, 5, 5).transpose(2, 3, 1, 0)   # [h', w', c, out]
    w1 = w1.reshape(5, 80, 120)
    prep["fc1_w"] = jnp.pad(w1, ((0, 0), (0, 48), (0, 8)))              # [5, 128, 128]
    prep["fc1_b"] = jnp.pad(params["fc1_b"], (0, 8)).reshape(1, 128)
    prep["fc2_w"] = jnp.pad(params["fc2_w"].T, ((0, 8), (0, 44)))       # [128, 128]
    prep["fc2_b"] = jnp.pad(params["fc2_b"], (0, 44)).reshape(1, 128)
    prep["fc3_w"] = jnp.pad(params["fc3_w"].T, ((0, 44), (0, 118)))     # [128, 128]
    prep["fc3_b"] = jnp.pad(params["fc3_b"], (0, 118)).reshape(1, 128)
    return prep


# ---------------------------------------------------------------------------
# Pure-JAX reference (PyTorch semantics) for a correctness check.
# ---------------------------------------------------------------------------
def reference_forward(params, x):
    def conv(x, w, b):
        y = lax.conv_general_dilated(x, w, (1, 1), "VALID",
                                     dimension_numbers=("NCHW", "OIHW", "NCHW"),
                                     precision=lax.Precision.HIGHEST)
        return jax.nn.relu(y + b[None, :, None, None])

    def pool(x):
        return lax.reduce_window(x, -jnp.inf, lax.max, (1, 1, 2, 2), (1, 1, 2, 2), "VALID")

    x = pool(conv(x, params["conv1_w"], params["conv1_b"]))
    x = pool(conv(x, params["conv2_w"], params["conv2_b"]))
    x = x.reshape(x.shape[0], -1)
    x = jax.nn.relu(jnp.dot(x, params["fc1_w"].T, precision="highest") + params["fc1_b"])
    x = jax.nn.relu(jnp.dot(x, params["fc2_w"].T, precision="highest") + params["fc2_b"])
    return jnp.dot(x, params["fc3_w"].T, precision="highest") + params["fc3_b"]


if __name__ == "__main__":
    key = jax.random.PRNGKey(0)
    pkey, xkey = jax.random.split(key)
    params = init_params(pkey)
    prep = prepare_params(params)            # one-time weight repacking (outside the hot path)
    # Architecture requires 32x32 spatial input (16*5*5 flatten); batch kept small.
    x = jax.random.normal(xkey, (2, 3, 32, 32), dtype=jnp.float32)

    out = jax.jit(net_forward)(prep, x)
    out = jax.block_until_ready(out)
    assert out.shape == (2, 10), out.shape
    assert out.dtype == jnp.float32

    ref = reference_forward(params, x)
    err = float(jnp.linalg.norm(out - ref) / (jnp.linalg.norm(ref) + 1e-12))
    # 10x tighter than before; sized for the MXU's default f32 matmul precision
    # (bf16-operand passes on some generations) vs. the HIGHEST-precision reference.
    assert err < 1e-2, f"relative error vs reference too large: {err}"

    print("KERNEL_OK")
</pallas_src>

<mosaic_0001>
module attributes {stable_mosaic.version = 11 : i64} {
  func.func @_net_kernel(%arg0: i32, %arg1: memref<2x32x96xf32, #tpu.memory_space<vmem>>, %arg2: memref<5x96x256xf32, #tpu.memory_space<vmem>>, %arg3: memref<1x128xf32, #tpu.memory_space<vmem>>, %arg4: memref<5x128x256xf32, #tpu.memory_space<vmem>>, %arg5: memref<1x128xf32, #tpu.memory_space<vmem>>, %arg6: memref<5x128x128xf32, #tpu.memory_space<vmem>>, %arg7: memref<1x128xf32, #tpu.memory_space<vmem>>, %arg8: memref<128x128xf32, #tpu.memory_space<vmem>>, %arg9: memref<1x128xf32, #tpu.memory_space<vmem>>, %arg10: memref<128x128xf32, #tpu.memory_space<vmem>>, %arg11: memref<1x128xf32, #tpu.memory_space<vmem>>, %arg12: memref<2x128xf32, #tpu.memory_space<vmem>>, %arg13: memref<56x128xf32, #tpu.memory_space<vmem>>, %arg14: memref<20x128xf32, #tpu.memory_space<vmem>>) attributes {dimension_semantics = [#tpu.dimension_semantics<parallel>], iteration_bounds = array<i64: 1>, scalar_prefetch = 0 : i64, scratch_operands = 2 : i64, tpu.core_type = #tpu.core_type<tc>, window_params = [{transform_indices = @transform_0, window_bounds = array<i64: 2, 32, 96>}, {pipeline_mode = #tpu.pipeline_mode<synchronous>, transform_indices = @transform_1, window_bounds = array<i64: 5, 96, 256>}, {pipeline_mode = #tpu.pipeline_mode<synchronous>, transform_indices = @transform_2, window_bounds = array<i64: 1, 128>}, {pipeline_mode = #tpu.pipeline_mode<synchronous>, transform_indices = @transform_3, window_bounds = array<i64: 5, 128, 256>}, {pipeline_mode = #tpu.pipeline_mode<synchronous>, transform_indices = @transform_4, window_bounds = array<i64: 1, 128>}, {pipeline_mode = #tpu.pipeline_mode<synchronous>, transform_indices = @transform_5, window_bounds = array<i64: 5, 128, 128>}, {pipeline_mode = #tpu.pipeline_mode<synchronous>, transform_indices = @transform_6, window_bounds = array<i64: 1, 128>}, {pipeline_mode = #tpu.pipeline_mode<synchronous>, transform_indices = @transform_7, window_bounds = array<i64: 128, 128>}, {pipeline_mode = #tpu.pipeline_mode<synchronous>, transform_indices = @transform_8, window_bounds = array<i64: 1, 128>}, {pipeline_mode = #tpu.pipeline_mode<synchronous>, transform_indices = @transform_9, window_bounds = array<i64: 128, 128>}, {pipeline_mode = #tpu.pipeline_mode<synchronous>, transform_indices = @transform_10, window_bounds = array<i64: 1, 128>}, {transform_indices = @transform_11, window_bounds = array<i64: 2, 128>}]} {
    %c0 = arith.constant 0 : index
    %c0_0 = arith.constant 0 : index
    %c0_1 = arith.constant 0 : index
    %0 = vector.load %arg1[%c0, %c0_0, %c0_1] : memref<2x32x96xf32, #tpu.memory_space<vmem>>, vector<2x32x96xf32>
    %cst = arith.constant 0.000000e+00 : f32
    %1 = vector.broadcast %cst : f32 to vector<56x256xf32>
    %2 = vector.extract_strided_slice %0 {offsets = [0, 0, 0], sizes = [2, 28, 96], strides = [1, 1, 1]} : vector<2x32x96xf32> to vector<2x28x96xf32>
    %3 = vector.shape_cast %2 : vector<2x28x96xf32> to vector<56x96xf32>
    %c0_2 = arith.constant 0 : index
    %c0_3 = arith.constant 0 : index
    %c0_4 = arith.constant 0 : index
    %4 = vector.load %arg2[%c0_2, %c0_3, %c0_4] : memref<5x96x256xf32, #tpu.memory_space<vmem>>, vector<1x96x256xf32>
    %5 = vector.shape_cast %4 : vector<1x96x256xf32> to vector<96x256xf32>
    %cst_5 = arith.constant dense<0.000000e+00> : vector<56x256xf32>
    %6 = tpu.matmul %3, %5, %cst_5 {dimension_numbers = #tpu.dot_dimension_numbers<[1], [0], [0], [1], [0, 0, 1, 1], [], []>} : vector<56x96xf32>, vector<96x256xf32>, vector<56x256xf32> -> vector<56x256xf32>
    %7 = arith.addf %1, %6 : vector<56x256xf32>
    %8 = vector.extract_strided_slice %0 {offsets = [0, 1, 0], sizes = [2, 28, 96], strides = [1, 1, 1]} : vector<2x32x96xf32> to vector<2x28x96xf32>
    %9 = vector.shape_cast %8 : vector<2x28x96xf32> to vector<56x96xf32>
    %c1 = arith.constant 1 : index
    %c0_6 = arith.constant 0 : index
    %c0_7 = arith.constant 0 : index
    %10 = vector.load %arg2[%c1, %c0_6, %c0_7] : memref<5x96x256xf32, #tpu.memory_space<vmem>>, vector<1x96x256xf32>
    %11 = vector.shape_cast %10 : vector<1x96x256xf32> to vector<96x256xf32>
    %cst_8 = arith.constant dense<0.000000e+00> : vector<56x256xf32>
    %12 = tpu.matmul %9, %11, %cst_8 {dimension_numbers = #tpu.dot_dimension_numbers<[1], [0], [0], [1], [0, 0, 1, 1], [], []>} : vector<56x96xf32>, vector<96x256xf32>, vector<56x256xf32> -> vector<56x256xf32>
    %13 = arith.addf %7, %12 : vector<56x256xf32>
    %14 = vector.extract_strided_slice %0 {offsets = [0, 2, 0], sizes = [2, 28, 96], strides = [1, 1, 1]} : vector<2x32x96xf32> to vector<2x28x96xf32>
    %15 = vector.shape_cast %14 : vector<2x28x96xf32> to vector<56x96xf32>
    %c2 = arith.constant 2 : index
    %c0_9 = arith.constant 0 : index
    %c0_10 = arith.constant 0 : index
    %16 = vector.load %arg2[%c2, %c0_9, %c0_10] : memref<5x96x256xf32, #tpu.memory_space<vmem>>, vector<1x96x256xf32>
    %17 = vector.shape_cast %16 : vector<1x96x256xf32> to vector<96x256xf32>
    %cst_11 = arith.constant dense<0.000000e+00> : vector<56x256xf32>
    %18 = tpu.matmul %15, %17, %cst_11 {dimension_numbers = #tpu.dot_dimension_numbers<[1], [0], [0], [1], [0, 0, 1, 1], [], []>} : vector<56x96xf32>, vector<96x256xf32>, vector<56x256xf32> -> vector<56x256xf32>
    %19 = arith.addf %13, %18 : vector<56x256xf32>
    %20 = vector.extract_strided_slice %0 {offsets = [0, 3, 0], sizes = [2, 28, 96], strides = [1, 1, 1]} : vector<2x32x96xf32> to vector<2x28x96xf32>
    %21 = vector.shape_cast %20 : vector<2x28x96xf32> to vector<56x96xf32>
    %c3 = arith.constant 3 : index
    %c0_12 = arith.constant 0 : index
    %c0_13 = arith.constant 0 : index
    %22 = vector.load %arg2[%c3, %c0_12, %c0_13] : memref<5x96x256xf32, #tpu.memory_space<vmem>>, vector<1x96x256xf32>
    %23 = vector.shape_cast %22 : vector<1x96x256xf32> to vector<96x256xf32>
    %cst_14 = arith.constant dense<0.000000e+00> : vector<56x256xf32>
    %24 = tpu.matmul %21, %23, %cst_14 {dimension_numbers = #tpu.dot_dimension_numbers<[1], [0], [0], [1], [0, 0, 1, 1], [], []>} : vector<56x96xf32>, vector<96x256xf32>, vector<56x256xf32> -> vector<56x256xf32>
    %25 = arith.addf %19, %24 : vector<56x256xf32>
    %26 = vector.extract_strided_slice %0 {offsets = [0, 4, 0], sizes = [2, 28, 96], strides = [1, 1, 1]} : vector<2x32x96xf32> to vector<2x28x96xf32>
    %27 = vector.shape_cast %26 : vector<2x28x96xf32> to vector<56x96xf32>
    %c4 = arith.constant 4 : index
    %c0_15 = arith.constant 0 : index
    %c0_16 = arith.constant 0 : index
    %28 = vector.load %arg2[%c4, %c0_15, %c0_16] : memref<5x96x256xf32, #tpu.memory_space<vmem>>, vector<1x96x256xf32>
    %29 = vector.shape_cast %28 : vector<1x96x256xf32> to vector<96x256xf32>
    %cst_17 = arith.constant dense<0.000000e+00> : vector<56x256xf32>
    %30 = tpu.matmul %27, %29, %cst_17 {dimension_numbers = #tpu.dot_dimension_numbers<[1], [0], [0], [1], [0, 0, 1, 1], [], []>} : vector<56x96xf32>, vector<96x256xf32>, vector<56x256xf32> -> vector<56x256xf32>
    %31 = arith.addf %25, %30 : vector<56x256xf32>
    %32 = vector.extract_strided_slice %31 {offsets = [0, 0], sizes = [56, 128], strides = [1, 1]} : vector<56x256xf32> to vector<56x128xf32>
    %33 = vector.extract_strided_slice %31 {offsets = [0, 128], sizes = [56, 128], strides = [1, 1]} : vector<56x256xf32> to vector<56x128xf32>
    %34 = arith.maximumf %32, %33 : vector<56x128xf32>
    %c0_18 = arith.constant 0 : index
    %c0_19 = arith.constant 0 : index
    %35 = vector.load %arg3[%c0_18, %c0_19] : memref<1x128xf32, #tpu.memory_space<vmem>>, vector<1x128xf32>
    %36 = vector.broadcast %35 : vector<1x128xf32> to vector<56x128xf32>
    %37 = arith.addf %34, %36 : vector<56x128xf32>
    %cst_20 = arith.constant 0.000000e+00 : f32
    %38 = vector.broadcast %cst_20 : f32 to vector<56x128xf32>
    %39 = arith.maximumf %37, %38 : vector<56x128xf32>
    %c0_21 = arith.constant 0 : index
    %c0_22 = arith.constant 0 : index
    %40 = vector.load %arg13[%c0_21, %c0_22] : memref<56x128xf32, #tpu.memory_space<vmem>>, vector<56x128xf32>
    tpu.vector_store %arg13[%c0_21, %c0_22], %39 {strides = array<i32>} : memref<56x128xf32, #tpu.memory_space<vmem>>, vector<56x128xf32>,
    %c0_23 = arith.constant 0 : index
    %c0_24 = arith.constant 0 : index
    %41 = tpu.strided_load %arg13[%c0_23, %c0_24] {strides = array<i32: 2, 1>} : memref<56x128xf32, #tpu.memory_space<vmem>>, vector<28x128xf32>
    %c1_25 = arith.constant 1 : index
    %c0_26 = arith.constant 0 : index
    %42 = tpu.strided_load %arg13[%c1_25, %c0_26] {strides = array<i32: 2, 1>} : memref<56x128xf32, #tpu.memory_space<vmem>>, vector<28x128xf32>
    %43 = arith.maximumf %41, %42 : vector<28x128xf32>
    %44 = vector.shape_cast %43 : vector<28x128xf32> to vector<2x14x128xf32>
    %cst_27 = arith.constant 0.000000e+00 : f32
    %45 = vector.broadcast %cst_27 : f32 to vector<20x256xf32>
    %46 = vector.extract_strided_slice %44 {offsets = [0, 0, 0], sizes = [2, 10, 128], strides = [1, 1, 1]} : vector<2x14x128xf32> to vector<2x10x128xf32>
    %47 = vector.shape_cast %46 : vector<2x10x128xf32> to vector<20x128xf32>
    %c0_28 = arith.constant 0 : index
    %c0_29 = arith.constant 0 : index
    %c0_30 = arith.constant 0 : index
    %48 = vector.load %arg4[%c0_28, %c0_29, %c0_30] : memref<5x128x256xf32, #tpu.memory_space<vmem>>, vector<1x128x256xf32>
    %49 = vector.shape_cast %48 : vector<1x128x256xf32> to vector<128x256xf32>
    %cst_31 = arith.constant dense<0.000000e+00> : vector<20x256xf32>
    %50 = tpu.matmul %47, %49, %cst_31 {dimension_numbers = #tpu.dot_dimension_numbers<[1], [0], [0], [1], [0, 0, 1, 1], [], []>} : vector<20x128xf32>, vector<128x256xf32>, vector<20x256xf32> -> vector<20x256xf32>
    %51 = arith.addf %45, %50 : vector<20x256xf32>
    %52 = vector.extract_strided_slice %44 {offsets = [0, 1, 0], sizes = [2, 10, 128], strides = [1, 1, 1]} : vector<2x14x128xf32> to vector<2x10x128xf32>
    %53 = vector.shape_cast %52 : vector<2x10x128xf32> to vector<20x128xf32>
    %c1_32 = arith.constant 1 : index
    %c0_33 = arith.constant 0 : index
    %c0_34 = arith.constant 0 : index
    %54 = vector.load %arg4[%c1_32, %c0_33, %c0_34] : memref<5x128x256xf32, #tpu.memory_space<vmem>>, vector<1x128x256xf32>
    %55 = vector.shape_cast %54 : vector<1x128x256xf32> to vector<128x256xf32>
    %cst_35 = arith.constant dense<0.000000e+00> : vector<20x256xf32>
    %56 = tpu.matmul %53, %55, %cst_35 {dimension_numbers = #tpu.dot_dimension_numbers<[1], [0], [0], [1], [0, 0, 1, 1], [], []>} : vector<20x128xf32>, vector<128x256xf32>, vector<20x256xf32> -> vector<20x256xf32>
    %57 = arith.addf %51, %56 : vector<20x256xf32>
    %58 = vector.extract_strided_slice %44 {offsets = [0, 2, 0], sizes = [2, 10, 128], strides = [1, 1, 1]} : vector<2x14x128xf32> to vector<2x10x128xf32>
    %59 = vector.shape_cast %58 : vector<2x10x128xf32> to vector<20x128xf32>
    %c2_36 = arith.constant 2 : index
    %c0_37 = arith.constant 0 : index
    %c0_38 = arith.constant 0 : index
    %60 = vector.load %arg4[%c2_36, %c0_37, %c0_38] : memref<5x128x256xf32, #tpu.memory_space<vmem>>, vector<1x128x256xf32>
    %61 = vector.shape_cast %60 : vector<1x128x256xf32> to vector<128x256xf32>
    %cst_39 = arith.constant dense<0.000000e+00> : vector<20x256xf32>
    %62 = tpu.matmul %59, %61, %cst_39 {dimension_numbers = #tpu.dot_dimension_numbers<[1], [0], [0], [1], [0, 0, 1, 1], [], []>} : vector<20x128xf32>, vector<128x256xf32>, vector<20x256xf32> -> vector<20x256xf32>
    %63 = arith.addf %57, %62 : vector<20x256xf32>
    %64 = vector.extract_strided_slice %44 {offsets = [0, 3, 0], sizes = [2, 10, 128], strides = [1, 1, 1]} : vector<2x14x128xf32> to vector<2x10x128xf32>
    %65 = vector.shape_cast %64 : vector<2x10x128xf32> to vector<20x128xf32>
    %c3_40 = arith.constant 3 : index
    %c0_41 = arith.constant 0 : index
    %c0_42 = arith.constant 0 : index
    %66 = vector.load %arg4[%c3_40, %c0_41, %c0_42] : memref<5x128x256xf32, #tpu.memory_space<vmem>>, vector<1x128x256xf32>
    %67 = vector.shape_cast %66 : vector<1x128x256xf32> to vector<128x256xf32>
    %cst_43 = arith.constant dense<0.000000e+00> : vector<20x256xf32>
    %68 = tpu.matmul %65, %67, %cst_43 {dimension_numbers = #tpu.dot_dimension_numbers<[1], [0], [0], [1], [0, 0, 1, 1], [], []>} : vector<20x128xf32>, vector<128x256xf32>, vector<20x256xf32> -> vector<20x256xf32>
    %69 = arith.addf %63, %68 : vector<20x256xf32>
    %70 = vector.extract_strided_slice %44 {offsets = [0, 4, 0], sizes = [2, 10, 128], strides = [1, 1, 1]} : vector<2x14x128xf32> to vector<2x10x128xf32>
    %71 = vector.shape_cast %70 : vector<2x10x128xf32> to vector<20x128xf32>
    %c4_44 = arith.constant 4 : index
    %c0_45 = arith.constant 0 : index
    %c0_46 = arith.constant 0 : index
    %72 = vector.load %arg4[%c4_44, %c0_45, %c0_46] : memref<5x128x256xf32, #tpu.memory_space<vmem>>, vector<1x128x256xf32>
    %73 = vector.shape_cast %72 : vector<1x128x256xf32> to vector<128x256xf32>
    %cst_47 = arith.constant dense<0.000000e+00> : vector<20x256xf32>
    %74 = tpu.matmul %71, %73, %cst_47 {dimension_numbers = #tpu.dot_dimension_numbers<[1], [0], [0], [1], [0, 0, 1, 1], [], []>} : vector<20x128xf32>, vector<128x256xf32>, vector<20x256xf32> -> vector<20x256xf32>
    %75 = arith.addf %69, %74 : vector<20x256xf32>
    %76 = vector.extract_strided_slice %75 {offsets = [0, 0], sizes = [20, 128], strides = [1, 1]} : vector<20x256xf32> to vector<20x128xf32>
    %77 = vector.extract_strided_slice %75 {offsets = [0, 128], sizes = [20, 128], strides = [1, 1]} : vector<20x256xf32> to vector<20x128xf32>
    %78 = arith.maximumf %76, %77 : vector<20x128xf32>
    %c0_48 = arith.constant 0 : index
    %c0_49 = arith.constant 0 : index
    %79 = vector.load %arg5[%c0_48, %c0_49] : memref<1x128xf32, #tpu.memory_space<vmem>>, vector<1x128xf32>
    %80 = vector.broadcast %79 : vector<1x128xf32> to vector<20x128xf32>
    %81 = arith.addf %78, %80 : vector<20x128xf32>
    %cst_50 = arith.constant 0.000000e+00 : f32
    %82 = vector.broadcast %cst_50 : f32 to vector<20x128xf32>
    %83 = arith.maximumf %81, %82 : vector<20x128xf32>
    %c0_51 = arith.constant 0 : index
    %c0_52 = arith.constant 0 : index
    %84 = vector.load %arg14[%c0_51, %c0_52] : memref<20x128xf32, #tpu.memory_space<vmem>>, vector<20x128xf32>
    tpu.vector_store %arg14[%c0_51, %c0_52], %83 {strides = array<i32>} : memref<20x128xf32, #tpu.memory_space<vmem>>, vector<20x128xf32>,
    %c0_53 = arith.constant 0 : index
    %c0_54 = arith.constant 0 : index
    %85 = tpu.strided_load %arg14[%c0_53, %c0_54] {strides = array<i32: 2, 1>} : memref<20x128xf32, #tpu.memory_space<vmem>>, vector<10x128xf32>
    %c1_55 = arith.constant 1 : index
    %c0_56 = arith.constant 0 : index
    %86 = tpu.strided_load %arg14[%c1_55, %c0_56] {strides = array<i32: 2, 1>} : memref<20x128xf32, #tpu.memory_space<vmem>>, vector<10x128xf32>
    %87 = arith.maximumf %85, %86 : vector<10x128xf32>
    %88 = vector.shape_cast %87 : vector<10x128xf32> to vector<2x5x128xf32>
    %cst_57 = arith.constant 0.000000e+00 : f32
    %89 = vector.broadcast %cst_57 : f32 to vector<2x128xf32>
    %90 = vector.extract_strided_slice %88 {offsets = [0, 0, 0], sizes = [2, 1, 128], strides = [1, 1, 1]} : vector<2x5x128xf32> to vector<2x1x128xf32>
    %91 = vector.shape_cast %90 : vector<2x1x128xf32> to vector<2x128xf32>
    %c0_58 = arith.constant 0 : index
    %c0_59 = arith.constant 0 : index
    %c0_60 = arith.constant 0 : index
    %92 = vector.load %arg6[%c0_58, %c0_59, %c0_60] : memref<5x128x128xf32, #tpu.memory_space<vmem>>, vector<1x128x128xf32>
    %93 = vector.shape_cast %92 : vector<1x128x128xf32> to vector<128x128xf32>
    %cst_61 = arith.constant dense<0.000000e+00> : vector<2x128xf32>
    %94 = tpu.matmul %91, %93, %cst_61 {dimension_numbers = #tpu.dot_dimension_numbers<[1], [0], [0], [1], [0, 0, 1, 1], [], []>} : vector<2x128xf32>, vector<128x128xf32>, vector<2x128xf32> -> vector<2x128xf32>
    %95 = arith.addf %89, %94 : vector<2x128xf32>
    %96 = vector.extract_strided_slice %88 {offsets = [0, 1, 0], sizes = [2, 1, 128], strides = [1, 1, 1]} : vector<2x5x128xf32> to vector<2x1x128xf32>
    %97 = vector.shape_cast %96 : vector<2x1x128xf32> to vector<2x128xf32>
    %c1_62 = arith.constant 1 : index
    %c0_63 = arith.constant 0 : index
    %c0_64 = arith.constant 0 : index
    %98 = vector.load %arg6[%c1_62, %c0_63, %c0_64] : memref<5x128x128xf32, #tpu.memory_space<vmem>>, vector<1x128x128xf32>
    %99 = vector.shape_cast %98 : vector<1x128x128xf32> to vector<128x128xf32>
    %cst_65 = arith.constant dense<0.000000e+00> : vector<2x128xf32>
    %100 = tpu.matmul %97, %99, %cst_65 {dimension_numbers = #tpu.dot_dimension_numbers<[1], [0], [0], [1], [0, 0, 1, 1], [], []>} : vector<2x128xf32>, vector<128x128xf32>, vector<2x128xf32> -> vector<2x128xf32>
    %101 = arith.addf %95, %100 : vector<2x128xf32>
    %102 = vector.extract_strided_slice %88 {offsets = [0, 2, 0], sizes = [2, 1, 128], strides = [1, 1, 1]} : vector<2x5x128xf32> to vector<2x1x128xf32>
    %103 = vector.shape_cast %102 : vector<2x1x128xf32> to vector<2x128xf32>
    %c2_66 = arith.constant 2 : index
    %c0_67 = arith.constant 0 : index
    %c0_68 = arith.constant 0 : index
    %104 = vector.load %arg6[%c2_66, %c0_67, %c0_68] : memref<5x128x128xf32, #tpu.memory_space<vmem>>, vector<1x128x128xf32>
    %105 = vector.shape_cast %104 : vector<1x128x128xf32> to vector<128x128xf32>
    %cst_69 = arith.constant dense<0.000000e+00> : vector<2x128xf32>
    %106 = tpu.matmul %103, %105, %cst_69 {dimension_numbers = #tpu.dot_dimension_numbers<[1], [0], [0], [1], [0, 0, 1, 1], [], []>} : vector<2x128xf32>, vector<128x128xf32>, vector<2x128xf32> -> vector<2x128xf32>
    %107 = arith.addf %101, %106 : vector<2x128xf32>
    %108 = vector.extract_strided_slice %88 {offsets = [0, 3, 0], sizes = [2, 1, 128], strides = [1, 1, 1]} : vector<2x5x128xf32> to vector<2x1x128xf32>
    %109 = vector.shape_cast %108 : vector<2x1x128xf32> to vector<2x128xf32>
    %c3_70 = arith.constant 3 : index
    %c0_71 = arith.constant 0 : index
    %c0_72 = arith.constant 0 : index
    %110 = vector.load %arg6[%c3_70, %c0_71, %c0_72] : memref<5x128x128xf32, #tpu.memory_space<vmem>>, vector<1x128x128xf32>
    %111 = vector.shape_cast %110 : vector<1x128x128xf32> to vector<128x128xf32>
    %cst_73 = arith.constant dense<0.000000e+00> : vector<2x128xf32>
    %112 = tpu.matmul %109, %111, %cst_73 {dimension_numbers = #tpu.dot_dimension_numbers<[1], [0], [0], [1], [0, 0, 1, 1], [], []>} : vector<2x128xf32>, vector<128x128xf32>, vector<2x128xf32> -> vector<2x128xf32>
    %113 = arith.addf %107, %112 : vector<2x128xf32>
    %114 = vector.extract_strided_slice %88 {offsets = [0, 4, 0], sizes = [2, 1, 128], strides = [1, 1, 1]} : vector<2x5x128xf32> to vector<2x1x128xf32>
    %115 = vector.shape_cast %114 : vector<2x1x128xf32> to vector<2x128xf32>
    %c4_74 = arith.constant 4 : index
    %c0_75 = arith.constant 0 : index
    %c0_76 = arith.constant 0 : index
    %116 = vector.load %arg6[%c4_74, %c0_75, %c0_76] : memref<5x128x128xf32, #tpu.memory_space<vmem>>, vector<1x128x128xf32>
    %117 = vector.shape_cast %116 : vector<1x128x128xf32> to vector<128x128xf32>
    %cst_77 = arith.constant dense<0.000000e+00> : vector<2x128xf32>
    %118 = tpu.matmul %115, %117, %cst_77 {dimension_numbers = #tpu.dot_dimension_numbers<[1], [0], [0], [1], [0, 0, 1, 1], [], []>} : vector<2x128xf32>, vector<128x128xf32>, vector<2x128xf32> -> vector<2x128xf32>
    %119 = arith.addf %113, %118 : vector<2x128xf32>
    %c0_78 = arith.constant 0 : index
    %c0_79 = arith.constant 0 : index
    %120 = vector.load %arg7[%c0_78, %c0_79] : memref<1x128xf32, #tpu.memory_space<vmem>>, vector<1x128xf32>
    %121 = vector.broadcast %120 : vector<1x128xf32> to vector<2x128xf32>
    %122 = arith.addf %119, %121 : vector<2x128xf32>
    %cst_80 = arith.constant 0.000000e+00 : f32
    %123 = vector.broadcast %cst_80 : f32 to vector<2x128xf32>
    %124 = arith.maximumf %122, %123 : vector<2x128xf32>
    %c0_81 = arith.constant 0 : index
    %c0_82 = arith.constant 0 : index
    %125 = vector.load %arg8[%c0_81, %c0_82] : memref<128x128xf32, #tpu.memory_space<vmem>>, vector<128x128xf32>
    %cst_83 = arith.constant dense<0.000000e+00> : vector<2x128xf32>
    %126 = tpu.matmul %124, %125, %cst_83 {dimension_numbers = #tpu.dot_dimension_numbers<[1], [0], [0], [1], [0, 0, 1, 1], [], []>} : vector<2x128xf32>, vector<128x128xf32>, vector<2x128xf32> -> vector<2x128xf32>
    %c0_84 = arith.constant 0 : index
    %c0_85 = arith.constant 0 : index
    %127 = vector.load %arg9[%c0_84, %c0_85] : memref<1x128xf32, #tpu.memory_space<vmem>>, vector<1x128xf32>
    %128 = vector.broadcast %127 : vector<1x128xf32> to vector<2x128xf32>
    %129 = arith.addf %126, %128 : vector<2x128xf32>
    %cst_86 = arith.constant 0.000000e+00 : f32
    %130 = vector.broadcast %cst_86 : f32 to vector<2x128xf32>
    %131 = arith.maximumf %129, %130 : vector<2x128xf32>
    %c0_87 = arith.constant 0 : index
    %c0_88 = arith.constant 0 : index
    %132 = vector.load %arg10[%c0_87, %c0_88] : memref<128x128xf32, #tpu.memory_space<vmem>>, vector<128x128xf32>
    %cst_89 = arith.constant dense<0.000000e+00> : vector<2x128xf32>
    %133 = tpu.matmul %131, %132, %cst_89 {dimension_numbers = #tpu.dot_dimension_numbers<[1], [0], [0], [1], [0, 0, 1, 1], [], []>} : vector<2x128xf32>, vector<128x128xf32>, vector<2x128xf32> -> vector<2x128xf32>
    %c0_90 = arith.constant 0 : index
    %c0_91 = arith.constant 0 : index
    %134 = vector.load %arg11[%c0_90, %c0_91] : memref<1x128xf32, #tpu.memory_space<vmem>>, vector<1x128xf32>
    %135 = vector.broadcast %134 : vector<1x128xf32> to vector<2x128xf32>
    %136 = arith.addf %133, %135 : vector<2x128xf32>
    %c0_92 = arith.constant 0 : index
    %c0_93 = arith.constant 0 : index
    %137 = vector.load %arg12[%c0_92, %c0_93] : memref<2x128xf32, #tpu.memory_space<vmem>>, vector<2x128xf32>
    tpu.vector_store %arg12[%c0_92, %c0_93], %136 {strides = array<i32>} : memref<2x128xf32, #tpu.memory_space<vmem>>, vector<2x128xf32>,
    return
  }
  func.func @transform_0(%arg0: i32) -> (i32, i32, i32) {
    %c0_i32 = arith.constant 0 : i32
    %c0_i32_0 = arith.constant 0 : i32
    %c0_i32_1 = arith.constant 0 : i32
    return %arg0, %c0_i32, %c0_i32_0 : i32, i32, i32
  }
  func.func @transform_1(%arg0: i32) -> (i32, i32, i32) {
    %c0_i32 = arith.constant 0 : i32
    %c0_i32_0 = arith.constant 0 : i32
    %c0_i32_1 = arith.constant 0 : i32
    %c0_i32_2 = arith.constant 0 : i32
    return %c0_i32, %c0_i32_0, %c0_i32_1 : i32, i32, i32
  }
  func.func @transform_2(%arg0: i32) -> (i32, i32) {
    %c0_i32 = arith.constant 0 : i32
    %c0_i32_0 = arith.constant 0 : i32
    %c0_i32_1 = arith.constant 0 : i32
    return %c0_i32, %c0_i32_0 : i32, i32
  }
  func.func @transform_3(%arg0: i32) -> (i32, i32, i32) {
    %c0_i32 = arith.constant 0 : i32
    %c0_i32_0 = arith.constant 0 : i32
    %c0_i32_1 = arith.constant 0 : i32
    %c0_i32_2 = arith.constant 0 : i32
    return %c0_i32, %c0_i32_0, %c0_i32_1 : i32, i32, i32
  }
  func.func @transform_4(%arg0: i32) -> (i32, i32) {
    %c0_i32 = arith.constant 0 : i32
    %c0_i32_0 = arith.constant 0 : i32
    %c0_i32_1 = arith.constant 0 : i32
    return %c0_i32, %c0_i32_0 : i32, i32
  }
  func.func @transform_5(%arg0: i32) -> (i32, i32, i32) {
    %c0_i32 = arith.constant 0 : i32
    %c0_i32_0 = arith.constant 0 : i32
    %c0_i32_1 = arith.constant 0 : i32
    %c0_i32_2 = arith.constant 0 : i32
    return %c0_i32, %c0_i32_0, %c0_i32_1 : i32, i32, i32
  }
  func.func @transform_6(%arg0: i32) -> (i32, i32) {
    %c0_i32 = arith.constant 0 : i32
    %c0_i32_0 = arith.constant 0 : i32
    %c0_i32_1 = arith.constant 0 : i32
    return %c0_i32, %c0_i32_0 : i32, i32
  }
  func.func @transform_7(%arg0: i32) -> (i32, i32) {
    %c0_i32 = arith.constant 0 : i32
    %c0_i32_0 = arith.constant 0 : i32
    %c0_i32_1 = arith.constant 0 : i32
    return %c0_i32, %c0_i32_0 : i32, i32
  }
  func.func @transform_8(%arg0: i32) -> (i32, i32) {
    %c0_i32 = arith.constant 0 : i32
    %c0_i32_0 = arith.constant 0 : i32
    %c0_i32_1 = arith.constant 0 : i32
    return %c0_i32, %c0_i32_0 : i32, i32
  }
  func.func @transform_9(%arg0: i32) -> (i32, i32) {
    %c0_i32 = arith.constant 0 : i32
    %c0_i32_0 = arith.constant 0 : i32
    %c0_i32_1 = arith.constant 0 : i32
    return %c0_i32, %c0_i32_0 : i32, i32
  }
  func.func @transform_10(%arg0: i32) -> (i32, i32) {
    %c0_i32 = arith.constant 0 : i32
    %c0_i32_0 = arith.constant 0 : i32
    %c0_i32_1 = arith.constant 0 : i32
    return %c0_i32, %c0_i32_0 : i32, i32
  }
  func.func @transform_11(%arg0: i32) -> (i32, i32) {
    %c0_i32 = arith.constant 0 : i32
    %c0_i32_0 = arith.constant 0 : i32
    return %arg0, %c0_i32 : i32, i32
  }
}

</mosaic_0001>

<llo_original>
// kernel: net_forward.1
$region0: #{net_forward.1}
  #allocation0 [shape = 'u32[]', space=smem, size = 0x4, offset = 0x4, fixed_abs, tag = 'smem constant byte address 0x4 - core index']
  #allocation1 [shape = 'u32[144,128]{1,0:T(1,128)}', space=vmem, size = 0x12000, scoped, tag = 'internal scratch']
  #allocation2 [shape = 'f32[56,128]{1,0:T(8,128)}', space=vmem, size = 0x7000, scoped, tag = 'scratch operand']
  #allocation3 [shape = 'f32[20,128]{1,0:T(8,128)}', space=vmem, size = 0x3000, scoped, tag = 'scratch operand']
  %s0 = inlined_call_operand.vmem [shape: f32[2,32,96], index: 0, kind: input, shape index: {}]
  %s1 = inlined_call_operand.hbm [shape: f32[5,96,256], index: 1, kind: input, shape index: {}]
  %s2 = inlined_call_operand.vmem [shape: f32[1,128], index: 2, kind: input, shape index: {}]
  %s3 = inlined_call_operand.hbm [shape: f32[5,128,256], index: 3, kind: input, shape index: {}]
  %s4 = inlined_call_operand.vmem [shape: f32[1,128], index: 4, kind: input, shape index: {}]
  %s5 = inlined_call_operand.vmem [shape: f32[5,128,128], index: 5, kind: input, shape index: {}]
  %s6 = inlined_call_operand.vmem [shape: f32[1,128], index: 6, kind: input, shape index: {}]
  %s7 = inlined_call_operand.hbm [shape: f32[128,128], index: 7, kind: input, shape index: {}]
  %s8 = inlined_call_operand.vmem [shape: f32[1,128], index: 8, kind: input, shape index: {}]
  %s9 = inlined_call_operand.hbm [shape: f32[128,128], index: 9, kind: input, shape index: {}]
  %s10 = inlined_call_operand.vmem [shape: f32[1,128], index: 10, kind: input, shape index: {}]
  %s11 = inlined_call_operand.hbm [shape: f32[2,128], index: 11, kind: output, shape index: {}]
  %s12 = sld [smem:[#allocation0]]
  $region70: #{net_forward.1} parent=0
    _
  %s14 = ssub.s32 1, %s12
  %s15 = scalar_select 0, %s14, %s12
  $region1: #{net_forward.1} parent=0
    #allocation4 [shape = 'u8[491520]{0}', space=vmem, size = 0x78000, scoped, tag = 'input window, operand 1, single buffered']
    #allocation5 [shape = 's32[1]{0}', space=sflag, size = 0x4, scoped, tag = 'scoped memory for net_forward.1']
    #allocation6 [shape = 's32[1]{0}', space=sflag, size = 0x4, scoped, tag = 'scoped memory for net_forward.1']
    #allocation7 [shape = 'u8[655360]{0}', space=vmem, size = 0xa0000, scoped, tag = 'input window, operand 3, single buffered']
    #allocation8 [shape = 's32[1]{0}', space=sflag, size = 0x4, scoped, tag = 'scoped memory for net_forward.1']
    #allocation9 [shape = 'u8[65536]{0}', space=vmem, size = 0x10000, scoped, tag = 'input window, operand 7, single buffered']
    #allocation10 [shape = 'u8[65536]{0}', space=vmem, size = 0x10000, scoped, tag = 'input window, operand 9, single buffered']
    #allocation11 [shape = 's32[1]{0}', space=sflag, size = 0x4, scoped, tag = 'scoped memory for net_forward.1']
    #allocation12 [shape = 'u8[1024]{0}', space=vmem, size = 0x400, scoped, tag = 'output window, operand 0, single buffered']
    %16 = vsyncpa [#allocation5], 0
    %17 = vsyncpa [#allocation8], 0
    %18 = vsyncpa [#allocation11], 0
    %19 = vsyncpa [#allocation6], 0
    // Predicated region
    $region2: #{net_forward.1} parent=1 // pred_check
      _
    $region3: #{net_forward.1} parent=1 // pred_check_branch
      %21 = sbr.rel (0) target = $region5
    $region4: #{net_forward.1} parent=1 // pred_region
      _
    $region5: #{net_forward.1} parent=1 // pred_fallthru
      _
    // Predicated region
    $region6: #{net_forward.1} parent=1 // pred_check
      _
    $region7: #{net_forward.1} parent=1 // pred_check_branch
      %23 = sbr.rel (0) target = $region9
    $region8: #{net_forward.1} parent=1 // pred_region
      %s25 = ssub.s32 15360, 15360
      %26 = vsyncadd [#allocation5], %s25
      %s27 = sshll.u32 [#allocation4], 4
      %s28 = int_to_ptr.vmem [resolvable:$true] %s27
      %33 = dma.hbm_to_vmem [thread:$0]  %s1, 15360, %s28, [#allocation5], 256, 256, 16
    $region9: #{net_forward.1} parent=1 // pred_fallthru
      _
    // Predicated region
    $region10: #{net_forward.1} parent=1 // pred_check
      _
    $region11: #{net_forward.1} parent=1 // pred_check_branch
      %35 = sbr.rel (0) target = $region13
    $region12: #{net_forward.1} parent=1 // pred_region
      _
    $region13: #{net_forward.1} parent=1 // pred_fallthru
      _
    // Predicated region
    $region14: #{net_forward.1} parent=1 // pred_check
      _
    $region15: #{net_forward.1} parent=1 // pred_check_branch
      %37 = sbr.rel (0) target = $region17
    $region16: #{net_forward.1} parent=1 // pred_region
      %s39 = ssub.s32 20480, 20480
      %40 = vsyncadd [#allocation8], %s39
      %s41 = sshll.u32 [#allocation7], 4
      %s42 = int_to_ptr.vmem [resolvable:$true] %s41
      %47 = dma.hbm_to_vmem [thread:$0]  %s3, 20480, %s42, [#allocation8], 256, 256, 16
    $region17: #{net_forward.1} parent=1 // pred_fallthru
      _
    // Predicated region
    $region18: #{net_forward.1} parent=1 // pred_check
      _
    $region19: #{net_forward.1} parent=1 // pred_check_branch
      %49 = sbr.rel (0) target = $region21
    $region20: #{net_forward.1} parent=1 // pred_region
      _
    $region21: #{net_forward.1} parent=1 // pred_fallthru
      _
    // Predicated region
    $region22: #{net_forward.1} parent=1 // pred_check
      _
    $region23: #{net_forward.1} parent=1 // pred_check_branch
      %51 = sbr.rel (0) target = $region25
    $region24: #{net_forward.1} parent=1 // pred_region
      _
    $region25: #{net_forward.1} parent=1 // pred_fallthru
      _
    // Predicated region
    $region26: #{net_forward.1} parent=1 // pred_check
      _
    $region27: #{net_forward.1} parent=1 // pred_check_branch
      %53 = sbr.rel (0) target = $region29
    $region28: #{net_forward.1} parent=1 // pred_region
      _
    $region29: #{net_forward.1} parent=1 // pred_fallthru
      _
    // Predicated region
    $region30: #{net_forward.1} parent=1 // pred_check
      _
    $region31: #{net_forward.1} parent=1 // pred_check_branch
      %55 = sbr.rel (0) target = $region33
    $region32: #{net_forward.1} parent=1 // pred_region
      %s57 = ssub.s32 2048, 2048
      %58 = vsyncadd [#allocation8], %s57
      %s59 = sshll.u32 [#allocation9], 4
      %s60 = int_to_ptr.vmem [resolvable:$true] %s59
      %65 = dma.hbm_to_vmem [thread:$0]  %s7, 2048, %s60, [#allocation8], 128, 128, 8
    $region33: #{net_forward.1} parent=1 // pred_fallthru
      _
    // Predicated region
    $region34: #{net_forward.1} parent=1 // pred_check
      _
    $region35: #{net_forward.1} parent=1 // pred_check_branch
      %67 = sbr.rel (0) target = $region37
    $region36: #{net_forward.1} parent=1 // pred_region
      _
    $region37: #{net_forward.1} parent=1 // pred_fallthru
      _
    // Predicated region
    $region38: #{net_forward.1} parent=1 // pred_check
      _
    $region39: #{net_forward.1} parent=1 // pred_check_branch
      %69 = sbr.rel (0) target = $region41
    $region40: #{net_forward.1} parent=1 // pred_region
      %s71 = ssub.s32 2048, 2048
      %72 = vsyncadd [#allocation11], %s71
      %s73 = sshll.u32 [#allocation10], 4
      %s74 = int_to_ptr.vmem [resolvable:$true] %s73
      %79 = dma.hbm_to_vmem [thread:$0]  %s9, 2048, %s74, [#allocation11], 128, 128, 8
    $region41: #{net_forward.1} parent=1 // pred_fallthru
      _
    // Predicated region
    $region42: #{net_forward.1} parent=1 // pred_check
      _
    $region43: #{net_forward.1} parent=1 // pred_check_branch
      %81 = sbr.rel (0) target = $region45
    $region44: #{net_forward.1} parent=1 // pred_region
      _
    $region45: #{net_forward.1} parent=1 // pred_fallthru
      _
    // Predicated region
    $region46: #{net_forward.1} parent=1 // pred_check
      _
    $region47: #{net_forward.1} parent=1 // pred_check_branch
      %83 = sbr.rel (0) target = $region49
    $region48: #{net_forward.1} parent=1 // pred_region
      %84 = dma.done [#allocation5], 15360
    $region49: #{net_forward.1} parent=1 // pred_fallthru
      _
    // Predicated region
    $region50: #{net_forward.1} parent=1 // pred_check
      _
    $region51: #{net_forward.1} parent=1 // pred_check_branch
      %86 = sbr.rel (0) target = $region53
    $region52: #{net_forward.1} parent=1 // pred_region
      %87 = dma.done [#allocation8], 20480
    $region53: #{net_forward.1} parent=1 // pred_fallthru
      _
    // Predicated region
    $region54: #{net_forward.1} parent=1 // pred_check
      _
    $region55: #{net_forward.1} parent=1 // pred_check_branch
      %89 = sbr.rel (0) target = $region57
    $region56: #{net_forward.1} parent=1 // pred_region
      %90 = dma.done [#allocation8], 2048
    $region57: #{net_forward.1} parent=1 // pred_fallthru
      _
    // Predicated region
    $region58: #{net_forward.1} parent=1 // pred_check
      _
    $region59: #{net_forward.1} parent=1 // pred_check_branch
      %92 = sbr.rel (0) target = $region61
    $region60: #{net_forward.1} parent=1 // pred_region
      %93 = dma.done [#allocation11], 2048
    $region61: #{net_forward.1} parent=1 // pred_fallthru
      _
    %v94 = vld [vmem:[%s0] sm:$0xff]
    %v95 = vld [vmem:[%s0 + $0x8] sm:$0xff]
    %v96 = vld [vmem:[%s0 + $0x10] sm:$0xff]
    %v97 = vld [vmem:[%s0 + $0x18] sm:$0xff]
    %v98 = vld [vmem:[%s0 + $0x20] sm:$0xff]
    %v99 = vld [vmem:[%s0 + $0x28] sm:$0xff]
    %v100 = vld [vmem:[%s0 + $0x30] sm:$0xff]
    %v101 = vld [vmem:[%s0 + $0x38] sm:$0xff]
    %v110 = vcombine.high %v94, %v94
    %v111 = vcombine.high %v95, %v95
    %v112 = vcombine.high %v96, %v96
    %v113 = vcombine.high %v98, %v98
    %v114 = vcombine.high %v99, %v99
    %v115 = vcombine.high %v100, %v100
    %v116 = vld [vmem:[#allocation4] sm:$0xff]
    %v117 = vld [vmem:[#allocation4 + $0x8] sm:$0xff]
    %v118 = vld [vmem:[#allocation4 + $0x10] sm:$0xff]
    %v119 = vld [vmem:[#allocation4 + $0x18] sm:$0xff]
    %v120 = vld [vmem:[#allocation4 + $0x20] sm:$0xff]
    %v121 = vld [vmem:[#allocation4 + $0x28] sm:$0xff]
    %v122 = vld [vmem:[#allocation4 + $0x30] sm:$0xff]
    %v123 = vld [vmem:[#allocation4 + $0x38] sm:$0xff]
    %v124 = vld [vmem:[#allocation4 + $0x40] sm:$0xff]
    %v125 = vld [vmem:[#allocation4 + $0x48] sm:$0xff]
    %v126 = vld [vmem:[#allocation4 + $0x50] sm:$0xff]
    %v127 = vld [vmem:[#allocation4 + $0x58] sm:$0xff]
    %v128 = vld [vmem:[#allocation4 + $0x60] sm:$0xff]
    %v129 = vld [vmem:[#allocation4 + $0x68] sm:$0xff]
    %v130 = vld [vmem:[#allocation4 + $0x70] sm:$0xff]
    %v131 = vld [vmem:[#allocation4 + $0x78] sm:$0xff]
    %v132 = vld [vmem:[#allocation4 + $0x80] sm:$0xff]
    %v133 = vld [vmem:[#allocation4 + $0x88] sm:$0xff]
    %v134 = vld [vmem:[#allocation4 + $0x90] sm:$0xff]
    %v135 = vld [vmem:[#allocation4 + $0x98] sm:$0xff]
    %v136 = vld [vmem:[#allocation4 + $0xa0] sm:$0xff]
    %v137 = vld [vmem:[#allocation4 + $0xa8] sm:$0xff]
    %v138 = vld [vmem:[#allocation4 + $0xb0] sm:$0xff]
    %v139 = vld [vmem:[#allocation4 + $0xb8] sm:$0xff]
    %v140 = vcombine.high %v97, %v97
    %v141 = vcombine.high %v101, %v101
    %vm142 = vcmask 1042432
    %vm143 = vcmask 1046532
    %vm144 = vmor %vm142, %vm143
    %v145 = vrot.slane %v94, 5
    %v146 = vrot.slane %v145, 4
    %v147 = vrot.slane %v110, 5
    %v148 = vsel %vm144, %v146, %v147
    %v149 = vrot.slane %v147, 4
    %v150 = vrot.slane %v95, 5
    %v151 = vsel %vm144, %v149, %v150
    %v152 = vrot.slane %v150, 4
    %v153 = vrot.slane %v111, 5
    %v154 = vsel %vm144, %v152, %v153
    %v155 = vrot.slane %v153, 4
    %v156 = vrot.slane %v96, 5
    %v157 = vsel %vm144, %v155, %v156
    %v158 = vrot.slane %v156, 4
    %v159 = vrot.slane %v112, 5
    %v160 = vsel %vm144, %v158, %v159
    %v161 = vrot.slane %v159, 4
    %v162 = vrot.slane %v97, 5
    %v163 = vsel %vm144, %v161, %v162
    %v164 = vrot.slane %v162, 4
    %v165 = vrot.slane %v140, 5
    %v166 = vsel %vm144, %v164, %v165
    %v167 = vrot.slane %v98, 5
    %v168 = vrot.slane %v167, 4
    %v169 = vrot.slane %v113, 5
    %v170 = vsel %vm144, %v168, %v169
    %v171 = vrot.slane %v169, 4
    %v172 = vrot.slane %v99, 5
    %v173 = vsel %vm144, %v171, %v172
    %v174 = vrot.slane %v172, 4
    %v175 = vrot.slane %v114, 5
    %v176 = vsel %vm144, %v174, %v175
    %v177 = vrot.slane %v175, 4
    %v178 = vrot.slane %v100, 5
    %v179 = vsel %vm144, %v177, %v178
    %v180 = vrot.slane %v178, 4
    %v181 = vrot.slane %v115, 5
    %v182 = vsel %vm144, %v180, %v181
    %v183 = vrot.slane %v181, 4
    %v184 = vrot.slane %v101, 5
    %v185 = vsel %vm144, %v183, %v184
    %v186 = vrot.slane %v184, 4
    %v187 = vrot.slane %v141, 5
    %v188 = vsel %vm144, %v186, %v187
    %s189 = scalar_lea.vmem [#allocation4], 192
    %v190 = vld [vmem:[%s189] sm:$0xff]
    %v191 = vld [vmem:[%s189 + $0x8] sm:$0xff]
    %v192 = vld [vmem:[%s189 + $0x10] sm:$0xff]
    %v193 = vld [vmem:[%s189 + $0x18] sm:$0xff]
    %v194 = vld [vmem:[%s189 + $0x20] sm:$0xff]
    %v195 = vld [vmem:[%s189 + $0x28] sm:$0xff]
    %v196 = vld [vmem:[%s189 + $0x30] sm:$0xff]
    %v197 = vld [vmem:[%s189 + $0x38] sm:$0xff]
    %v198 = vld [vmem:[%s189 + $0x40] sm:$0xff]
    %v199 = vld [vmem:[%s189 + $0x48] sm:$0xff]
    %v200 = vld [vmem:[%s189 + $0x50] sm:$0xff]
    %v201 = vld [vmem:[%s189 + $0x58] sm:$0xff]
    %v202 = vld [vmem:[%s189 + $0x60] sm:$0xff]
    %v203 = vld [vmem:[%s189 + $0x68] sm:$0xff]
    %v204 = vld [vmem:[%s189 + $0x70] sm:$0xff]
    %v205 = vld [vmem:[%s189 + $0x78] sm:$0xff]
    %v206 = vld [vmem:[%s189 + $0x80] sm:$0xff]
    %v207 = vld [vmem:[%s189 + $0x88] sm:$0xff]
    %v208 = vld [vmem:[%s189 + $0x90] sm:$0xff]
    %v209 = vld [vmem:[%s189 + $0x98] sm:$0xff]
    %v210 = vld [vmem:[%s189 + $0xa0] sm:$0xff]
    %v211 = vld [vmem:[%s189 + $0xa8] sm:$0xff]
    %v212 = vld [vmem:[%s189 + $0xb0] sm:$0xff]
    %v213 = vld [vmem:[%s189 + $0xb8] sm:$0xff]
    %v214 = vcombine.low %v148, %v151
    %v215 = vcombine.low %v154, %v157
    %v216 = vcombine.low %v160, %v163
    %v217 = vcombine.low %v166, %v170
    %v218 = vcombine.low %v173, %v176
    %v219 = vcombine.low %v179, %v182
    %v220 = vcombine.low %v185, %v188
    %vm221 = vcmask 785408
    %v222 = vsel %vm221, %v214, 0
    %v224 = vsel %vm221, %v215, 0
    %v226 = vsel %vm221, %v216, 0
    %v228 = vsel %vm221, %v217, 0
    %v230 = vsel %vm221, %v218, 0
    %v232 = vsel %vm221, %v219, 0
    %v234 = vsel %vm221, %v220, 0
    %236 = vmatprep.subr.mxu0 0.0
    %237 = vmatpush1.msra.mxu0 0.0
    %238 = vmatprep.subr.mxu0 0.0
    %239 = vmatpush1.msra.mxu0 0.0
    %240 = vmatprep.subr.mxu0 0.0
    %241 = vmatpush1.msra.mxu0 0.0
    %242 = vmatprep.subr.mxu0 0.0
    %243 = vmatpush1.msra.mxu0 0.0
    %244 = vmatprep.subr.mxu0 %v213
    %245 = vmatpush1.msra.mxu0 %v212
    %246 = vmatprep.subr.mxu0 %v211
    %247 = vmatpush1.msra.mxu0 %v210
    %248 = vmatprep.subr.mxu0 %v209
    %249 = vmatpush1.msra.mxu0 %v208
    %250 = vmatprep.subr.mxu0 %v207
    %251 = vmatpush1.msra.mxu0 %v206
    %252 = vmatprep.subr.mxu0 %v205
    %253 = vmatpush1.msra.mxu0 %v204
    %254 = vmatprep.subr.mxu0 %v203
    %255 = vmatpush1.msra.mxu0 %v202
    %256 = vmatprep.subr.mxu0 %v201
    %257 = vmatpush1.msra.mxu0 %v200
    %258 = vmatprep.subr.mxu0 %v199
    %259 = vmatpush1.msra.mxu0 %v198
    %260 = vmatprep.subr.mxu0 %v197
    %261 = vmatpush1.msra.mxu0 %v196
    %262 = vmatprep.subr.mxu0 %v195
    %263 = vmatpush1.msra.mxu0 %v194
    %264 = vmatprep.subr.mxu0 %v193
    %265 = vmatpush1.msra.mxu0 %v192
    %266 = vmatprep.subr.mxu0 %v191
    %267 = vmatpush1.msra.mxu0 %v190
    %268 = vmatprep.subr.mxu0 0.0
    %269 = vmatpush2.msra.mxu0 0.0
    %270 = vmatprep.subr.mxu0 0.0
    %271 = vmatpush2.msra.mxu0 0.0
    %272 = vmatprep.subr.mxu0 0.0
    %273 = vmatpush2.msra.mxu0 0.0
    %274 = vmatprep.subr.mxu0 0.0
    %275 = vmatpush2.msra.mxu0 0.0
    %276 = vmatprep.subr.mxu0 0.0
    %277 = vmatpush2.msra.mxu0 0.0
    %278 = vmatprep.subr.mxu0 0.0
    %279 = vmatpush2.msra.mxu0 0.0
    %280 = vmatprep.subr.mxu0 0.0
    %281 = vmatpush2.msra.mxu0 0.0
    %282 = vmatprep.subr.mxu0 0.0
    %283 = vmatpush2.msra.mxu0 0.0
    %284 = vmatprep.subr.mxu0 0.0
    %285 = vmatpush2.msra.mxu0 0.0
    %286 = vmatprep.subr.mxu0 0.0
    %287 = vmatpush2.msra.mxu0 0.0
    %288 = vmatprep.subr.mxu0 0.0
    %289 = vmatpush2.msra.mxu0 0.0
    %290 = vmatprep.subr.mxu0 0.0
    %291 = vmatpush2.msra.mxu0 0.0
    %292 = vmatprep.subr.mxu0 0.0
    %293 = vmatpush2.msra.mxu0 0.0
    %294 = vmatprep.subr.mxu0 0.0
    %295 = vmatpush2.msra.mxu0 0.0
    %296 = vmatprep.subr.mxu0 0.0
    %297 = vmatpush2.msra.mxu0 0.0
    %298 = vmatprep.subr.mxu0 0.0
    %299 = vmatpush2.msra.mxu0 0.0
    %300 = vmatprep.mubr.f32.mxu0 0.0
    %301 = vmatmul.mubr.f32.gmra.mxu0 %v222
    %v302 = vpop.f32.mrf.mxu0
    %v303 = vadd.f32 0.0, %v302
    %v304 = vpop.f32.mrf.mxu0
    %v305 = vadd.f32 0.0, %v304
    %306 = vmatprep.mubr.f32.mxu0 0.0
    %307 = vmatmul.mubr.f32.gmra.mxu0 %v224
    %v308 = vpop.f32.mrf.mxu0
    %v309 = vadd.f32 0.0, %v308
    %v310 = vpop.f32.mrf.mxu0
    %v311 = vadd.f32 0.0, %v310
    %312 = vmatprep.mubr.f32.mxu0 0.0
    %313 = vmatmul.mubr.f32.gmra.mxu0 %v226
    %v314 = vpop.f32.mrf.mxu0
    %v315 = vadd.f32 0.0, %v314
    %v316 = vpop.f32.mrf.mxu0
    %v317 = vadd.f32 0.0, %v316
    %318 = vmatprep.mubr.f32.mxu0 0.0
    %319 = vmatmul.mubr.f32.gmra.mxu0 %v228
    %v320 = vpop.f32.mrf.mxu0
    %v321 = vadd.f32 0.0, %v320
    %v322 = vpop.f32.mrf.mxu0
    %v323 = vadd.f32 0.0, %v322
    %324 = vmatprep.mubr.f32.mxu0 0.0
    %325 = vmatmul.mubr.f32.gmra.mxu0 %v230
    %v326 = vpop.f32.mrf.mxu0
    %v327 = vadd.f32 0.0, %v326
    %v328 = vpop.f32.mrf.mxu0
    %v329 = vadd.f32 0.0, %v328
    %330 = vmatprep.mubr.f32.mxu0 0.0
    %331 = vmatmul.mubr.f32.gmra.mxu0 %v232
    %v332 = vpop.f32.mrf.mxu0
    %v333 = vadd.f32 0.0, %v332
    %v334 = vpop.f32.mrf.mxu0
    %v335 = vadd.f32 0.0, %v334
    %336 = vmatprep.mubr.f32.mxu0 0.0
    %337 = vmatmul.mubr.f32.gmra.mxu0 %v234
    %v338 = vpop.f32.mrf.mxu0
    %v339 = vadd.f32 0.0, %v338
    %v340 = vpop.f32.mrf.mxu0
    %v341 = vadd.f32 0.0, %v340
    %342 = vdwg.mxu0
    %v343 = vcombine.low %v94, %v110
    %v344 = vcombine.low %v95, %v111
    %v345 = vcombine.low %v96, %v112
    %v346 = vcombine.low %v97, %v98
    %v347 = vcombine.low %v113, %v99
    %v348 = vcombine.low %v114, %v100
    %v349 = vcombine.low %v115, %v101
    %v350 = vsel %vm221, %v343, 0
    %v352 = vsel %vm221, %v344, 0
    %v354 = vsel %vm221, %v345, 0
    %v356 = vsel %vm221, %v346, 0
    %v358 = vsel %vm221, %v347, 0
    %v360 = vsel %vm221, %v348, 0
    %v362 = vsel %vm221, %v349, 0
    %364 = vmatprep.subr.mxu0 0.0
    %365 = vmatpush1.msra.mxu0 0.0
    %366 = vmatprep.subr.mxu0 0.0
    %367 = vmatpush1.msra.mxu0 0.0
    %368 = vmatprep.subr.mxu0 0.0
    %369 = vmatpush1.msra.mxu0 0.0
    %370 = vmatprep.subr.mxu0 0.0
    %371 = vmatpush1.msra.mxu0 0.0
    %372 = vmatprep.subr.mxu0 %v139
    %373 = vmatpush1.msra.mxu0 %v138
    %374 = vmatprep.subr.mxu0 %v137
    %375 = vmatpush1.msra.mxu0 %v136
    %376 = vmatprep.subr.mxu0 %v135
    %377 = vmatpush1.msra.mxu0 %v134
    %378 = vmatprep.subr.mxu0 %v133
    %379 = vmatpush1.msra.mxu0 %v132
    %380 = vmatprep.subr.mxu0 %v131
    %381 = vmatpush1.msra.mxu0 %v130
    %382 = vmatprep.subr.mxu0 %v129
    %383 = vmatpush1.msra.mxu0 %v128
    %384 = vmatprep.subr.mxu0 %v127
    %385 = vmatpush1.msra.mxu0 %v126
    %386 = vmatprep.subr.mxu0 %v125
    %387 = vmatpush1.msra.mxu0 %v124
    %388 = vmatprep.subr.mxu0 %v123
    %389 = vmatpush1.msra.mxu0 %v122
    %390 = vmatprep.subr.mxu0 %v121
    %391 = vmatpush1.msra.mxu0 %v120
    %392 = vmatprep.subr.mxu0 %v119
    %393 = vmatpush1.msra.mxu0 %v118
    %394 = vmatprep.subr.mxu0 %v117
    %395 = vmatpush1.msra.mxu0 %v116
    %396 = vmatprep.subr.mxu0 0.0
    %397 = vmatpush2.msra.mxu0 0.0
    %398 = vmatprep.subr.mxu0 0.0
    %399 = vmatpush2.msra.mxu0 0.0
    %400 = vmatprep.subr.mxu0 0.0
    %401 = vmatpush2.msra.mxu0 0.0
    %402 = vmatprep.subr.mxu0 0.0
    %403 = vmatpush2.msra.mxu0 0.0
    %404 = vmatprep.subr.mxu0 0.0
    %405 = vmatpush2.msra.mxu0 0.0
    %406 = vmatprep.subr.mxu0 0.0
    %407 = vmatpush2.msra.mxu0 0.0
    %408 = vmatprep.subr.mxu0 0.0
    %409 = vmatpush2.msra.mxu0 0.0
    %410 = vmatprep.subr.mxu0 0.0
    %411 = vmatpush2.msra.mxu0 0.0
    %412 = vmatprep.subr.mxu0 0.0
    %413 = vmatpush2.msra.mxu0 0.0
    %414 = vmatprep.subr.mxu0 0.0
    %415 = vmatpush2.msra.mxu0 0.0
    %416 = vmatprep.subr.mxu0 0.0
    %417 = vmatpush2.msra.mxu0 0.0
    %418 = vmatprep.subr.mxu0 0.0
    %419 = vmatpush2.msra.mxu0 0.0
    %420 = vmatprep.subr.mxu0 0.0
    %421 = vmatpush2.msra.mxu0 0.0
    %422 = vmatprep.subr.mxu0 0.0
    %423 = vmatpush2.msra.mxu0 0.0
    %424 = vmatprep.subr.mxu0 0.0
    %425 = vmatpush2.msra.mxu0 0.0
    %426 = vmatprep.subr.mxu0 0.0
    %427 = vmatpush2.msra.mxu0 0.0
    %428 = vmatprep.mubr.f32.mxu0 0.0
    %429 = vmatmul.mubr.f32.gmra.mxu0 %v350
    %v430 = vpop.f32.mrf.mxu0
    %v431 = vadd.f32 %v303, %v430
    %v432 = vpop.f32.mrf.mxu0
    %v433 = vadd.f32 %v305, %v432
    %434 = vmatprep.mubr.f32.mxu0 0.0
    %435 = vmatmul.mubr.f32.gmra.mxu0 %v352
    %v436 = vpop.f32.mrf.mxu0
    %v437 = vadd.f32 %v309, %v436
    %v438 = vpop.f32.mrf.mxu0
    %v439 = vadd.f32 %v311, %v438
    %440 = vmatprep.mubr.f32.mxu0 0.0
    %441 = vmatmul.mubr.f32.gmra.mxu0 %v354
    %v442 = vpop.f32.mrf.mxu0
    %v443 = vadd.f32 %v315, %v442
    %v444 = vpop.f32.mrf.mxu0
    %v445 = vadd.f32 %v317, %v444
    %446 = vmatprep.mubr.f32.mxu0 0.0
    %447 = vmatmul.mubr.f32.gmra.mxu0 %v356
    %v448 = vpop.f32.mrf.mxu0
    %v449 = vadd.f32 %v321, %v448
    %v450 = vpop.f32.mrf.mxu0
    %v451 = vadd.f32 %v323, %v450
    %452 = vmatprep.mubr.f32.mxu0 0.0
    %453 = vmatmul.mubr.f32.gmra.mxu0 %v358
    %v454 = vpop.f32.mrf.mxu0
    %v455 = vadd.f32 %v327, %v454
    %v456 = vpop.f32.mrf.mxu0
    %v457 = vadd.f32 %v329, %v456
    %458 = vmatprep.mubr.f32.mxu0 0.0
    %459 = vmatmul.mubr.f32.gmra.mxu0 %v360
    %v460 = vpop.f32.mrf.mxu0
    %v461 = vadd.f32 %v333, %v460
    %v462 = vpop.f32.mrf.mxu0
    %v463 = vadd.f32 %v335, %v462
    %464 = vmatprep.mubr.f32.mxu0 0.0
    %465 = vmatmul.mubr.f32.gmra.mxu0 %v362
    %v466 = vpop.f32.mrf.mxu0
    %v467 = vadd.f32 %v339, %v466
    %v468 = vpop.f32.mrf.mxu0
    %v469 = vadd.f32 %v341, %v468
    %470 = vdwg.mxu0
    %vm471 = vcmask 1041408
    %vm472 = vcmask 1045508
    %vm473 = vmor %vm471, %vm472
    %v474 = vrot.slane %v94, 6
    %v475 = vrot.slane %v474, 4
    %v476 = vrot.slane %v110, 6
    %v477 = vsel %vm473, %v475, %v476
    %v478 = vrot.slane %v476, 4
    %v479 = vrot.slane %v95, 6
    %v480 = vsel %vm473, %v478, %v479
    %v481 = vrot.slane %v479, 4
    %v482 = vrot.slane %v111, 6
    %v483 = vsel %vm473, %v481, %v482
    %v484 = vrot.slane %v482, 4
    %v485 = vrot.slane %v96, 6
    %v486 = vsel %vm473, %v484, %v485
    %v487 = vrot.slane %v485, 4
    %v488 = vrot.slane %v112, 6
    %v489 = vsel %vm473, %v487, %v488
    %v490 = vrot.slane %v488, 4
    %v491 = vrot.slane %v97, 6
    %v492 = vsel %vm473, %v490, %v491
    %v493 = vrot.slane %v491, 4
    %v494 = vrot.slane %v140, 6
    %v495 = vsel %vm473, %v493, %v494
    %v496 = vrot.slane %v98, 6
    %v497 = vrot.slane %v496, 4
    %v498 = vrot.slane %v113, 6
    %v499 = vsel %vm473, %v497, %v498
    %v500 = vrot.slane %v498, 4
    %v501 = vrot.slane %v99, 6
    %v502 = vsel %vm473, %v500, %v501
    %v503 = vrot.slane %v501, 4
    %v504 = vrot.slane %v114, 6
    %v505 = vsel %vm473, %v503, %v504
    %v506 = vrot.slane %v504, 4
    %v507 = vrot.slane %v100, 6
    %v508 = vsel %vm473, %v506, %v507
    %v509 = vrot.slane %v507, 4
    %v510 = vrot.slane %v115, 6
    %v511 = vsel %vm473, %v509, %v510
    %v512 = vrot.slane %v510, 4
    %v513 = vrot.slane %v101, 6
    %v514 = vsel %vm473, %v512, %v513
    %v515 = vrot.slane %v513, 4
    %v516 = vrot.slane %v141, 6
    %v517 = vsel %vm473, %v515, %v516
    %s518 = scalar_lea.vmem [#allocation4], 384
    %v519 = vld [vmem:[%s518] sm:$0xff]
    %v520 = vld [vmem:[%s518 + $0x8] sm:$0xff]
    %v521 = vld [vmem:[%s518 + $0x10] sm:$0xff]
    %v522 = vld [vmem:[%s518 + $0x18] sm:$0xff]
    %v523 = vld [vmem:[%s518 + $0x20] sm:$0xff]
    %v524 = vld [vmem:[%s518 + $0x28] sm:$0xff]
    %v525 = vld [vmem:[%s518 + $0x30] sm:$0xff]
    %v526 = vld [vmem:[%s518 + $0x38] sm:$0xff]
    %v527 = vld [vmem:[%s518 + $0x40] sm:$0xff]
    %v528 = vld [vmem:[%s518 + $0x48] sm:$0xff]
    %v529 = vld [vmem:[%s518 + $0x50] sm:$0xff]
    %v530 = vld [vmem:[%s518 + $0x58] sm:$0xff]
    %v531 = vld [vmem:[%s518 + $0x60] sm:$0xff]
    %v532 = vld [vmem:[%s518 + $0x68] sm:$0xff]
    %v533 = vld [vmem:[%s518 + $0x70] sm:$0xff]
    %v534 = vld [vmem:[%s518 + $0x78] sm:$0xff]
    %v535 = vld [vmem:[%s518 + $0x80] sm:$0xff]
    %v536 = vld [vmem:[%s518 + $0x88] sm:$0xff]
    %v537 = vld [vmem:[%s518 + $0x90] sm:$0xff]
    %v538 = vld [vmem:[%s518 + $0x98] sm:$0xff]
    %v539 = vld [vmem:[%s518 + $0xa0] sm:$0xff]
    %v540 = vld [vmem:[%s518 + $0xa8] sm:$0xff]
    %v541 = vld [vmem:[%s518 + $0xb0] sm:$0xff]
    %v542 = vld [vmem:[%s518 + $0xb8] sm:$0xff]
    %v543 = vcombine.low %v477, %v480
    %v544 = vcombine.low %v483, %v486
    %v545 = vcombine.low %v489, %v492
    %v546 = vcombine.low %v495, %v499
    %v547 = vcombine.low %v502, %v505
    %v548 = vcombine.low %v508, %v511
    %v549 = vcombine.low %v514, %v517
    %v550 = vsel %vm221, %v543, 0
    %v552 = vsel %vm221, %v544, 0
    %v554 = vsel %vm221, %v545, 0
    %v556 = vsel %vm221, %v546, 0
    %v558 = vsel %vm221, %v547, 0
    %v560 = vsel %vm221, %v548, 0
    %v562 = vsel %vm221, %v549, 0
    %564 = vmatprep.subr.mxu0 0.0
    %565 = vmatpush1.msra.mxu0 0.0
    %566 = vmatprep.subr.mxu0 0.0
    %567 = vmatpush1.msra.mxu0 0.0
    %568 = vmatprep.subr.mxu0 0.0
    %569 = vmatpush1.msra.mxu0 0.0
    %570 = vmatprep.subr.mxu0 0.0
    %571 = vmatpush1.msra.mxu0 0.0
    %572 = vmatprep.subr.mxu0 %v542
    %573 = vmatpush1.msra.mxu0 %v541
    %574 = vmatprep.subr.mxu0 %v540
    %575 = vmatpush1.msra.mxu0 %v539
    %576 = vmatprep.subr.mxu0 %v538
    %577 = vmatpush1.msra.mxu0 %v537
    %578 = vmatprep.subr.mxu0 %v536
    %579 = vmatpush1.msra.mxu0 %v535
    %580 = vmatprep.subr.mxu0 %v534
    %581 = vmatpush1.msra.mxu0 %v533
    %582 = vmatprep.subr.mxu0 %v532
    %583 = vmatpush1.msra.mxu0 %v531
    %584 = vmatprep.subr.mxu0 %v530
    %585 = vmatpush1.msra.mxu0 %v529
    %586 = vmatprep.subr.mxu0 %v528
    %587 = vmatpush1.msra.mxu0 %v527
    %588 = vmatprep.subr.mxu0 %v526
    %589 = vmatpush1.msra.mxu0 %v525
    %590 = vmatprep.subr.mxu0 %v524
    %591 = vmatpush1.msra.mxu0 %v523
    %592 = vmatprep.subr.mxu0 %v522
    %593 = vmatpush1.msra.mxu0 %v521
    %594 = vmatprep.subr.mxu0 %v520
    %595 = vmatpush1.msra.mxu0 %v519
    %596 = vmatprep.subr.mxu0 0.0
    %597 = vmatpush2.msra.mxu0 0.0
    %598 = vmatprep.subr.mxu0 0.0
    %599 = vmatpush2.msra.mxu0 0.0
    %600 = vmatprep.subr.mxu0 0.0
    %601 = vmatpush2.msra.mxu0 0.0
    %602 = vmatprep.subr.mxu0 0.0
    %603 = vmatpush2.msra.mxu0 0.0
    %604 = vmatprep.subr.mxu0 0.0
    %605 = vmatpush2.msra.mxu0 0.0
    %606 = vmatprep.subr.mxu0 0.0
    %607 = vmatpush2.msra.mxu0 0.0
    %608 = vmatprep.subr.mxu0 0.0
    %609 = vmatpush2.msra.mxu0 0.0
    %610 = vmatprep.subr.mxu0 0.0
    %611 = vmatpush2.msra.mxu0 0.0
    %612 = vmatprep.subr.mxu0 0.0
    %613 = vmatpush2.msra.mxu0 0.0
    %614 = vmatprep.subr.mxu0 0.0
    %615 = vmatpush2.msra.mxu0 0.0
    %616 = vmatprep.subr.mxu0 0.0
    %617 = vmatpush2.msra.mxu0 0.0
    %618 = vmatprep.subr.mxu0 0.0
    %619 = vmatpush2.msra.mxu0 0.0
    %620 = vmatprep.subr.mxu0 0.0
    %621 = vmatpush2.msra.mxu0 0.0
    %622 = vmatprep.subr.mxu0 0.0
    %623 = vmatpush2.msra.mxu0 0.0
    %624 = vmatprep.subr.mxu0 0.0
    %625 = vmatpush2.msra.mxu0 0.0
    %626 = vmatprep.subr.mxu0 0.0
    %627 = vmatpush2.msra.mxu0 0.0
    %628 = vmatprep.mubr.f32.mxu0 0.0
    %629 = vmatmul.mubr.f32.gmra.mxu0 %v550
    %v630 = vpop.f32.mrf.mxu0
    %v631 = vadd.f32 0.0, %v630
    %v632 = vpop.f32.mrf.mxu0
    %v633 = vadd.f32 0.0, %v632
    %634 = vmatprep.mubr.f32.mxu0 0.0
    %635 = vmatmul.mubr.f32.gmra.mxu0 %v552
    %v636 = vpop.f32.mrf.mxu0
    %v637 = vadd.f32 0.0, %v636
    %v638 = vpop.f32.mrf.mxu0
    %v639 = vadd.f32 0.0, %v638
    %640 = vmatprep.mubr.f32.mxu0 0.0
    %641 = vmatmul.mubr.f32.gmra.mxu0 %v554
    %v642 = vpop.f32.mrf.mxu0
    %v643 = vadd.f32 0.0, %v642
    %v644 = vpop.f32.mrf.mxu0
    %v645 = vadd.f32 0.0, %v644
    %646 = vmatprep.mubr.f32.mxu0 0.0
    %647 = vmatmul.mubr.f32.gmra.mxu0 %v556
    %v648 = vpop.f32.mrf.mxu0
    %v649 = vadd.f32 0.0, %v648
    %v650 = vpop.f32.mrf.mxu0
    %v651 = vadd.f32 0.0, %v650
    %652 = vmatprep.mubr.f32.mxu0 0.0
    %653 = vmatmul.mubr.f32.gmra.mxu0 %v558
    %v654 = vpop.f32.mrf.mxu0
    %v655 = vadd.f32 0.0, %v654
    %v656 = vpop.f32.mrf.mxu0
    %v657 = vadd.f32 0.0, %v656
    %658 = vmatprep.mubr.f32.mxu0 0.0
    %659 = vmatmul.mubr.f32.gmra.mxu0 %v560
    %v660 = vpop.f32.mrf.mxu0
    %v661 = vadd.f32 0.0, %v660
    %v662 = vpop.f32.mrf.mxu0
    %v663 = vadd.f32 0.0, %v662
    %664 = vmatprep.mubr.f32.mxu0 0.0
    %665 = vmatmul.mubr.f32.gmra.mxu0 %v562
    %v666 = vpop.f32.mrf.mxu0
    %v667 = vadd.f32 0.0, %v666
    %v668 = vpop.f32.mrf.mxu0
    %v669 = vadd.f32 0.0, %v668
    %670 = vdwg.mxu0
    %v671 = vadd.f32 %v431, %v631
    %v672 = vadd.f32 %v433, %v633
    %v673 = vadd.f32 %v437, %v637
    %v674 = vadd.f32 %v439, %v639
    %v675 = vadd.f32 %v443, %v643
    %v676 = vadd.f32 %v445, %v645
    %v677 = vadd.f32 %v449, %v649
    %v678 = vadd.f32 %v451, %v651
    %v679 = vadd.f32 %v455, %v655
    %v680 = vadd.f32 %v457, %v657
    %v681 = vadd.f32 %v461, %v661
    %v682 = vadd.f32 %v463, %v663
    %v683 = vadd.f32 %v467, %v667
    %v684 = vadd.f32 %v469, %v669
    %vm685 = vcmask 1040384
    %vm686 = vcmask 1044484
    %vm687 = vmor %vm685, %vm686
    %v688 = vrot.slane %v94, 7
    %v689 = vrot.slane %v688, 4
    %v690 = vrot.slane %v110, 7
    %v691 = vsel %vm687, %v689, %v690
    %v692 = vrot.slane %v690, 4
    %v693 = vrot.slane %v95, 7
    %v694 = vsel %vm687, %v692, %v693
    %v695 = vrot.slane %v693, 4
    %v696 = vrot.slane %v111, 7
    %v697 = vsel %vm687, %v695, %v696
    %v698 = vrot.slane %v696, 4
    %v699 = vrot.slane %v96, 7
    %v700 = vsel %vm687, %v698, %v699
    %v701 = vrot.slane %v699, 4
    %v702 = vrot.slane %v112, 7
    %v703 = vsel %vm687, %v701, %v702
    %v704 = vrot.slane %v702, 4
    %v705 = vrot.slane %v97, 7
    %v706 = vsel %vm687, %v704, %v705
    %v707 = vrot.slane %v705, 4
    %v708 = vrot.slane %v140, 7
    %v709 = vsel %vm687, %v707, %v708
    %v710 = vrot.slane %v98, 7
    %v711 = vrot.slane %v710, 4
    %v712 = vrot.slane %v113, 7
    %v713 = vsel %vm687, %v711, %v712
    %v714 = vrot.slane %v712, 4
    %v715 = vrot.slane %v99, 7
    %v716 = vsel %vm687, %v714, %v715
    %v717 = vrot.slane %v715, 4
    %v718 = vrot.slane %v114, 7
    %v719 = vsel %vm687, %v717, %v718
    %v720 = vrot.slane %v718, 4
    %v721 = vrot.slane %v100, 7
    %v722 = vsel %vm687, %v720, %v721
    %v723 = vrot.slane %v721, 4
    %v724 = vrot.slane %v115, 7
    %v725 = vsel %vm687, %v723, %v724
    %v726 = vrot.slane %v724, 4
    %v727 = vrot.slane %v101, 7
    %v728 = vsel %vm687, %v726, %v727
    %v729 = vrot.slane %v727, 4
    %v730 = vrot.slane %v141, 7
    %v731 = vsel %vm687, %v729, %v730
    %s732 = scalar_lea.vmem [#allocation4], 576
    %v733 = vld [vmem:[%s732] sm:$0xff]
    %v734 = vld [vmem:[%s732 + $0x8] sm:$0xff]
    %v735 = vld [vmem:[%s732 + $0x10] sm:$0xff]
    %v736 = vld [vmem:[%s732 + $0x18] sm:$0xff]
    %v737 = vld [vmem:[%s732 + $0x20] sm:$0xff]
    %v738 = vld [vmem:[%s732 + $0x28] sm:$0xff]
    %v739 = vld [vmem:[%s732 + $0x30] sm:$0xff]
    %v740 = vld [vmem:[%s732 + $0x38] sm:$0xff]
    %v741 = vld [vmem:[%s732 + $0x40] sm:$0xff]
    %v742 = vld [vmem:[%s732 + $0x48] sm:$0xff]
    %v743 = vld [vmem:[%s732 + $0x50] sm:$0xff]
    %v744 = vld [vmem:[%s732 + $0x58] sm:$0xff]
    %v745 = vld [vmem:[%s732 + $0x60] sm:$0xff]
    %v746 = vld [vmem:[%s732 + $0x68] sm:$0xff]
    %v747 = vld [vmem:[%s732 + $0x70] sm:$0xff]
    %v748 = vld [vmem:[%s732 + $0x78] sm:$0xff]
    %v749 = vld [vmem:[%s732 + $0x80] sm:$0xff]
    %v750 = vld [vmem:[%s732 + $0x88] sm:$0xff]
    %v751 = vld [vmem:[%s732 + $0x90] sm:$0xff]
    %v752 = vld [vmem:[%s732 + $0x98] sm:$0xff]
    %v753 = vld [vmem:[%s732 + $0xa0] sm:$0xff]
    %v754 = vld [vmem:[%s732 + $0xa8] sm:$0xff]
    %v755 = vld [vmem:[%s732 + $0xb0] sm:$0xff]
    %v756 = vld [vmem:[%s732 + $0xb8] sm:$0xff]
    %v757 = vcombine.low %v691, %v694
    %v758 = vcombine.low %v697, %v700
    %v759 = vcombine.low %v703, %v706
    %v760 = vcombine.low %v709, %v713
    %v761 = vcombine.low %v716, %v719
    %v762 = vcombine.low %v722, %v725
    %v763 = vcombine.low %v728, %v731
    %v764 = vsel %vm221, %v757, 0
    %v766 = vsel %vm221, %v758, 0
    %v768 = vsel %vm221, %v759, 0
    %v770 = vsel %vm221, %v760, 0
    %v772 = vsel %vm221, %v761, 0
    %v774 = vsel %vm221, %v762, 0
    %v776 = vsel %vm221, %v763, 0
    %778 = vmatprep.subr.mxu0 0.0
    %779 = vmatpush1.msra.mxu0 0.0
    %780 = vmatprep.subr.mxu0 0.0
    %781 = vmatpush1.msra.mxu0 0.0
    %782 = vmatprep.subr.mxu0 0.0
    %783 = vmatpush1.msra.mxu0 0.0
    %784 = vmatprep.subr.mxu0 0.0
    %785 = vmatpush1.msra.mxu0 0.0
    %786 = vmatprep.subr.mxu0 %v756
    %787 = vmatpush1.msra.mxu0 %v755
    %788 = vmatprep.subr.mxu0 %v754
    %789 = vmatpush1.msra.mxu0 %v753
    %790 = vmatprep.subr.mxu0 %v752
    %791 = vmatpush1.msra.mxu0 %v751
    %792 = vmatprep.subr.mxu0 %v750
    %793 = vmatpush1.msra.mxu0 %v749
    %794 = vmatprep.subr.mxu0 %v748
    %795 = vmatpush1.msra.mxu0 %v747
    %796 = vmatprep.subr.mxu0 %v746
    %797 = vmatpush1.msra.mxu0 %v745
    %798 = vmatprep.subr.mxu0 %v744
    %799 = vmatpush1.msra.mxu0 %v743
    %800 = vmatprep.subr.mxu0 %v742
    %801 = vmatpush1.msra.mxu0 %v741
    %802 = vmatprep.subr.mxu0 %v740
    %803 = vmatpush1.msra.mxu0 %v739
    %804 = vmatprep.subr.mxu0 %v738
    %805 = vmatpush1.msra.mxu0 %v737
    %806 = vmatprep.subr.mxu0 %v736
    %807 = vmatpush1.msra.mxu0 %v735
    %808 = vmatprep.subr.mxu0 %v734
    %809 = vmatpush1.msra.mxu0 %v733
    %810 = vmatprep.subr.mxu0 0.0
    %811 = vmatpush2.msra.mxu0 0.0
    %812 = vmatprep.subr.mxu0 0.0
    %813 = vmatpush2.msra.mxu0 0.0
    %814 = vmatprep.subr.mxu0 0.0
    %815 = vmatpush2.msra.mxu0 0.0
    %816 = vmatprep.subr.mxu0 0.0
    %817 = vmatpush2.msra.mxu0 0.0
    %818 = vmatprep.subr.mxu0 0.0
    %819 = vmatpush2.msra.mxu0 0.0
    %820 = vmatprep.subr.mxu0 0.0
    %821 = vmatpush2.msra.mxu0 0.0
    %822 = vmatprep.subr.mxu0 0.0
    %823 = vmatpush2.msra.mxu0 0.0
    %824 = vmatprep.subr.mxu0 0.0
    %825 = vmatpush2.msra.mxu0 0.0
    %826 = vmatprep.subr.mxu0 0.0
    %827 = vmatpush2.msra.mxu0 0.0
    %828 = vmatprep.subr.mxu0 0.0
    %829 = vmatpush2.msra.mxu0 0.0
    %830 = vmatprep.subr.mxu0 0.0
    %831 = vmatpush2.msra.mxu0 0.0
    %832 = vmatprep.subr.mxu0 0.0
    %833 = vmatpush2.msra.mxu0 0.0
    %834 = vmatprep.subr.mxu0 0.0
    %835 = vmatpush2.msra.mxu0 0.0
    %836 = vmatprep.subr.mxu0 0.0
    %837 = vmatpush2.msra.mxu0 0.0
    %838 = vmatprep.subr.mxu0 0.0
    %839 = vmatpush2.msra.mxu0 0.0
    %840 = vmatprep.subr.mxu0 0.0
    %841 = vmatpush2.msra.mxu0 0.0
    %842 = vmatprep.mubr.f32.mxu0 0.0
    %843 = vmatmul.mubr.f32.gmra.mxu0 %v764
    %v844 = vpop.f32.mrf.mxu0
    %v845 = vadd.f32 0.0, %v844
    %v846 = vpop.f32.mrf.mxu0
    %v847 = vadd.f32 0.0, %v846
    %848 = vmatprep.mubr.f32.mxu0 0.0
    %849 = vmatmul.mubr.f32.gmra.mxu0 %v766
    %v850 = vpop.f32.mrf.mxu0
    %v851 = vadd.f32 0.0, %v850
    %v852 = vpop.f32.mrf.mxu0
    %v853 = vadd.f32 0.0, %v852
    %854 = vmatprep.mubr.f32.mxu0 0.0
    %855 = vmatmul.mubr.f32.gmra.mxu0 %v768
    %v856 = vpop.f32.mrf.mxu0
    %v857 = vadd.f32 0.0, %v856
    %v858 = vpop.f32.mrf.mxu0
    %v859 = vadd.f32 0.0, %v858
    %860 = vmatprep.mubr.f32.mxu0 0.0
    %861 = vmatmul.mubr.f32.gmra.mxu0 %v770
    %v862 = vpop.f32.mrf.mxu0
    %v863 = vadd.f32 0.0, %v862
    %v864 = vpop.f32.mrf.mxu0
    %v865 = vadd.f32 0.0, %v864
    %866 = vmatprep.mubr.f32.mxu0 0.0
    %867 = vmatmul.mubr.f32.gmra.mxu0 %v772
    %v868 = vpop.f32.mrf.mxu0
    %v869 = vadd.f32 0.0, %v868
    %v870 = vpop.f32.mrf.mxu0
    %v871 = vadd.f32 0.0, %v870
    %872 = vmatprep.mubr.f32.mxu0 0.0
    %873 = vmatmul.mubr.f32.gmra.mxu0 %v774
    %v874 = vpop.f32.mrf.mxu0
    %v875 = vadd.f32 0.0, %v874
    %v876 = vpop.f32.mrf.mxu0
    %v877 = vadd.f32 0.0, %v876
    %878 = vmatprep.mubr.f32.mxu0 0.0
    %879 = vmatmul.mubr.f32.gmra.mxu0 %v776
    %v880 = vpop.f32.mrf.mxu0
    %v881 = vadd.f32 0.0, %v880
    %v882 = vpop.f32.mrf.mxu0
    %v883 = vadd.f32 0.0, %v882
    %884 = vdwg.mxu0
    %v885 = vadd.f32 %v671, %v845
    %v886 = vadd.f32 %v672, %v847
    %v887 = vadd.f32 %v673, %v851
    %v888 = vadd.f32 %v674, %v853
    %v889 = vadd.f32 %v675, %v857
    %v890 = vadd.f32 %v676, %v859
    %v891 = vadd.f32 %v677, %v863
    %v892 = vadd.f32 %v678, %v865
    %v893 = vadd.f32 %v679, %v869
    %v894 = vadd.f32 %v680, %v871
    %v895 = vadd.f32 %v681, %v875
    %v896 = vadd.f32 %v682, %v877
    %v897 = vadd.f32 %v683, %v881
    %v898 = vadd.f32 %v684, %v883
    %s899 = scalar_lea.vmem [#allocation4], 768
    %v900 = vld [vmem:[%s899] sm:$0xff]
    %v901 = vld [vmem:[%s899 + $0x8] sm:$0xff]
    %v902 = vld [vmem:[%s899 + $0x10] sm:$0xff]
    %v903 = vld [vmem:[%s899 + $0x18] sm:$0xff]
    %v904 = vld [vmem:[%s899 + $0x20] sm:$0xff]
    %v905 = vld [vmem:[%s899 + $0x28] sm:$0xff]
    %v906 = vld [vmem:[%s899 + $0x30] sm:$0xff]
    %v907 = vld [vmem:[%s899 + $0x38] sm:$0xff]
    %v908 = vld [vmem:[%s899 + $0x40] sm:$0xff]
    %v909 = vld [vmem:[%s899 + $0x48] sm:$0xff]
    %v910 = vld [vmem:[%s899 + $0x50] sm:$0xff]
    %v911 = vld [vmem:[%s899 + $0x58] sm:$0xff]
    %v912 = vld [vmem:[%s899 + $0x60] sm:$0xff]
    %v913 = vld [vmem:[%s899 + $0x68] sm:$0xff]
    %v914 = vld [vmem:[%s899 + $0x70] sm:$0xff]
    %v915 = vld [vmem:[%s899 + $0x78] sm:$0xff]
    %v916 = vld [vmem:[%s899 + $0x80] sm:$0xff]
    %v917 = vld [vmem:[%s899 + $0x88] sm:$0xff]
    %v918 = vld [vmem:[%s899 + $0x90] sm:$0xff]
    %v919 = vld [vmem:[%s899 + $0x98] sm:$0xff]
    %v920 = vld [vmem:[%s899 + $0xa0] sm:$0xff]
    %v921 = vld [vmem:[%s899 + $0xa8] sm:$0xff]
    %v922 = vld [vmem:[%s899 + $0xb0] sm:$0xff]
    %v923 = vld [vmem:[%s899 + $0xb8] sm:$0xff]
    %v924 = vcombine.low %v110, %v95
    %v925 = vcombine.low %v111, %v96
    %v926 = vcombine.low %v112, %v97
    %v927 = vcombine.low %v140, %v113
    %v928 = vcombine.low %v99, %v114
    %v929 = vcombine.low %v100, %v115
    %v930 = vcombine.low %v101, %v141
    %v931 = vsel %vm221, %v924, 0
    %v933 = vsel %vm221, %v925, 0
    %v935 = vsel %vm221, %v926, 0
    %v937 = vsel %vm221, %v927, 0
    %v939 = vsel %vm221, %v928, 0
    %v941 = vsel %vm221, %v929, 0
    %v943 = vsel %vm221, %v930, 0
    %945 = vmatprep.subr.mxu0 0.0
    %946 = vmatpush1.msra.mxu0 0.0
    %947 = vmatprep.subr.mxu0 0.0
    %948 = vmatpush1.msra.mxu0 0.0
    %949 = vmatprep.subr.mxu0 0.0
    %950 = vmatpush1.msra.mxu0 0.0
    %951 = vmatprep.subr.mxu0 0.0
    %952 = vmatpush1.msra.mxu0 0.0
    %953 = vmatprep.subr.mxu0 %v923
    %954 = vmatpush1.msra.mxu0 %v922
    %955 = vmatprep.subr.mxu0 %v921
    %956 = vmatpush1.msra.mxu0 %v920
    %957 = vmatprep.subr.mxu0 %v919
    %958 = vmatpush1.msra.mxu0 %v918
    %959 = vmatprep.subr.mxu0 %v917
    %960 = vmatpush1.msra.mxu0 %v916
    %961 = vmatprep.subr.mxu0 %v915
    %962 = vmatpush1.msra.mxu0 %v914
    %963 = vmatprep.subr.mxu0 %v913
    %964 = vmatpush1.msra.mxu0 %v912
    %965 = vmatprep.subr.mxu0 %v911
    %966 = vmatpush1.msra.mxu0 %v910
    %967 = vmatprep.subr.mxu0 %v909
    %968 = vmatpush1.msra.mxu0 %v908
    %969 = vmatprep.subr.mxu0 %v907
    %970 = vmatpush1.msra.mxu0 %v906
    %971 = vmatprep.subr.mxu0 %v905
    %972 = vmatpush1.msra.mxu0 %v904
    %973 = vmatprep.subr.mxu0 %v903
    %974 = vmatpush1.msra.mxu0 %v902
    %975 = vmatprep.subr.mxu0 %v901
    %976 = vmatpush1.msra.mxu0 %v900
    %977 = vmatprep.subr.mxu0 0.0
    %978 = vmatpush2.msra.mxu0 0.0
    %979 = vmatprep.subr.mxu0 0.0
    %980 = vmatpush2.msra.mxu0 0.0
    %981 = vmatprep.subr.mxu0 0.0
    %982 = vmatpush2.msra.mxu0 0.0
    %983 = vmatprep.subr.mxu0 0.0
    %984 = vmatpush2.msra.mxu0 0.0
    %985 = vmatprep.subr.mxu0 0.0
    %986 = vmatpush2.msra.mxu0 0.0
    %987 = vmatprep.subr.mxu0 0.0
    %988 = vmatpush2.msra.mxu0 0.0
    %989 = vmatprep.subr.mxu0 0.0
    %990 = vmatpush2.msra.mxu0 0.0
    %991 = vmatprep.subr.mxu0 0.0
    %992 = vmatpush2.msra.mxu0 0.0
    %993 = vmatprep.subr.mxu0 0.0
    %994 = vmatpush2.msra.mxu0 0.0
    %995 = vmatprep.subr.mxu0 0.0
    %996 = vmatpush2.msra.mxu0 0.0
    %997 = vmatprep.subr.mxu0 0.0
    %998 = vmatpush2.msra.mxu0 0.0
    %999 = vmatprep.subr.mxu0 0.0
    %1000 = vmatpush2.msra.mxu0 0.0
    %1001 = vmatprep.subr.mxu0 0.0
    %1002 = vmatpush2.msra.mxu0 0.0
    %1003 = vmatprep.subr.mxu0 0.0
    %1004 = vmatpush2.msra.mxu0 0.0
    %1005 = vmatprep.subr.mxu0 0.0
    %1006 = vmatpush2.msra.mxu0 0.0
    %1007 = vmatprep.subr.mxu0 0.0
    %1008 = vmatpush2.msra.mxu0 0.0
    %1009 = vmatprep.mubr.f32.mxu0 0.0
    %1010 = vmatmul.mubr.f32.gmra.mxu0 %v931
    %v1011 = vpop.f32.mrf.mxu0
    %v1012 = vadd.f32 0.0, %v1011
    %v1013 = vpop.f32.mrf.mxu0
    %v1014 = vadd.f32 0.0, %v1013
    %1015 = vmatprep.mubr.f32.mxu0 0.0
    %1016 = vmatmul.mubr.f32.gmra.mxu0 %v933
    %v1017 = vpop.f32.mrf.mxu0
    %v1018 = vadd.f32 0.0, %v1017
    %v1019 = vpop.f32.mrf.mxu0
    %v1020 = vadd.f32 0.0, %v1019
    %1021 = vmatprep.mubr.f32.mxu0 0.0
    %1022 = vmatmul.mubr.f32.gmra.mxu0 %v935
    %v1023 = vpop.f32.mrf.mxu0
    %v1024 = vadd.f32 0.0, %v1023
    %v1025 = vpop.f32.mrf.mxu0
    %v1026 = vadd.f32 0.0, %v1025
    %1027 = vmatprep.mubr.f32.mxu0 0.0
    %1028 = vmatmul.mubr.f32.gmra.mxu0 %v937
    %v1029 = vpop.f32.mrf.mxu0
    %v1030 = vadd.f32 0.0, %v1029
    %v1031 = vpop.f32.mrf.mxu0
    %v1032 = vadd.f32 0.0, %v1031
    %1033 = vmatprep.mubr.f32.mxu0 0.0
    %1034 = vmatmul.mubr.f32.gmra.mxu0 %v939
    %v1035 = vpop.f32.mrf.mxu0
    %v1036 = vadd.f32 0.0, %v1035
    %v1037 = vpop.f32.mrf.mxu0
    %v1038 = vadd.f32 0.0, %v1037
    %1039 = vmatprep.mubr.f32.mxu0 0.0
    %1040 = vmatmul.mubr.f32.gmra.mxu0 %v941
    %v1041 = vpop.f32.mrf.mxu0
    %v1042 = vadd.f32 0.0, %v1041
    %v1043 = vpop.f32.mrf.mxu0
    %v1044 = vadd.f32 0.0, %v1043
    %1045 = vmatprep.mubr.f32.mxu0 0.0
    %1046 = vmatmul.mubr.f32.gmra.mxu0 %v943
    %v1047 = vpop.f32.mrf.mxu0
    %v1048 = vadd.f32 0.0, %v1047
    %v1049 = vpop.f32.mrf.mxu0
    %v1050 = vadd.f32 0.0, %v1049
    %1051 = vdwg.mxu0
    %v1052 = vadd.f32 %v885, %v1012
    %v1053 = vadd.f32 %v886, %v1014
    %v1054 = vadd.f32 %v887, %v1018
    %v1055 = vadd.f32 %v888, %v1020
    %v1056 = vadd.f32 %v889, %v1024
    %v1057 = vadd.f32 %v890, %v1026
    %v1058 = vadd.f32 %v891, %v1030
    %v1059 = vadd.f32 %v892, %v1032
    %v1060 = vadd.f32 %v893, %v1036
    %v1061 = vadd.f32 %v894, %v1038
    %v1062 = vadd.f32 %v895, %v1042
    %v1063 = vadd.f32 %v896, %v1044
    %v1064 = vadd.f32 %v897, %v1048
    %v1065 = vadd.f32 %v898, %v1050
    %v1066 = vmax.f32 %v1052, %v1053
    %v1067 = vmax.f32 %v1054, %v1055
    %v1068 = vmax.f32 %v1056, %v1057
    %v1069 = vmax.f32 %v1058, %v1059
    %v1070 = vmax.f32 %v1060, %v1061
    %v1071 = vmax.f32 %v1062, %v1063
    %v1072 = vmax.f32 %v1064, %v1065
    %v1073 = vld [vmem:[%s2] sm:$0x1]
    %v1075 = vlaneseq
    %v1076 = vshrl.u32 %v1075, 7
    %v1077 = vsub.s32 0, %v1076
    %v1078 = vrot.slane %v1073, %v1077
    %v1080 = vadd.f32 %v1066, %v1078
    %v1081 = vadd.f32 %v1067, %v1078
    %v1082 = vadd.f32 %v1068, %v1078
    %v1083 = vadd.f32 %v1069, %v1078
    %v1084 = vadd.f32 %v1070, %v1078
    %v1085 = vadd.f32 %v1071, %v1078
    %v1086 = vadd.f32 %v1072, %v1078
    %v1087 = vmax.f32 %v1080, 0.0
    %v1088 = vmax.f32 %v1081, 0.0
    %v1089 = vmax.f32 %v1082, 0.0
    %v1090 = vmax.f32 %v1083, 0.0
    %v1091 = vmax.f32 %v1084, 0.0
    %v1092 = vmax.f32 %v1085, 0.0
    %v1093 = vmax.f32 %v1086, 0.0
    %1094 = vst [vmem:[#allocation2] sm:$0xff] %v1087
    %1095 = vst [vmem:[#allocation2 + $0x8] sm:$0xff] %v1088
    %1096 = vst [vmem:[#allocation2 + $0x10] sm:$0xff] %v1089
    %1097 = vst [vmem:[#allocation2 + $0x18] sm:$0xff] %v1090
    %1098 = vst [vmem:[#allocation2 + $0x20] sm:$0xff] %v1091
    %1099 = vst [vmem:[#allocation2 + $0x28] sm:$0xff] %v1092
    %1100 = vst [vmem:[#allocation2 + $0x30] sm:$0xff] %v1093
    %v1101 = vld [vmem:[#allocation2] ss:$2 sm:$0xff]
    %s1102 = scalar_lea.vmem [#allocation2], 16
    %v1103 = vld [vmem:[%s1102] ss:$2 sm:$0xff]
    %s1104 = scalar_lea.vmem [#allocation2], 32
    %v1105 = vld [vmem:[%s1104] ss:$2 sm:$0xff]
    %s1106 = scalar_lea.vmem [#allocation2], 48
    %v1107 = vld [vmem:[%s1106] ss:$2 sm:$0xf]
    %s1108 = scalar_lea.vmem [#allocation2], 1
    %v1109 = vld [vmem:[%s1108] ss:$2 sm:$0xff]
    %s1110 = scalar_lea.vmem [#allocation2], 17
    %v1111 = vld [vmem:[%s1110] ss:$2 sm:$0xff]
    %s1112 = scalar_lea.vmem [#allocation2], 33
    %v1113 = vld [vmem:[%s1112] ss:$2 sm:$0xff]
    %s1114 = scalar_lea.vmem [#allocation2], 49
    %v1115 = vld [vmem:[%s1114] ss:$2 sm:$0xf]
    %v1116 = vmax.f32 %v1101, %v1109
    %v1117 = vmax.f32 %v1103, %v1111
    %v1118 = vmax.f32 %v1105, %v1113
    %v1119 = vmax.f32 %v1107, %v1115
    %v1124 = vcombine.high %v1116, %v1116
    %v1126 = vunpack.c.l.s4 1983009808
    %v1127 = vunpack.c.0.s8 %v1126
    %v1128 = vlaneseq
    %v1129 = vshrl.u32 %v1128, 7
    %v1130 = vsub.s32 %v1127, %v1129
    %v1131 = vrot.slane %v1116, %v1130
    %v1133 = vunpack.c.l.s4 1983009808
    %v1134 = vunpack.c.0.s8 %v1133
    %v1135 = vlaneseq
    %v1136 = vshrl.u32 %v1135, 7
    %v1137 = vsub.s32 %v1134, %v1136
    %v1138 = vrot.slane %v1124, %v1137
    %v1139 = vcombine.high %v1131, %v1131
    %v1140 = vcombine.high %v1138, %v1138
    %v1141 = vcombine.high %v1117, %v1117
    %v1143 = vunpack.c.l.s4 1983009808
    %v1144 = vunpack.c.0.s8 %v1143
    %v1145 = vlaneseq
    %v1146 = vshrl.u32 %v1145, 7
    %v1147 = vsub.s32 %v1144, %v1146
    %v1148 = vrot.slane %v1117, %v1147
    %v1150 = vunpack.c.l.s4 1983009808
    %v1151 = vunpack.c.0.s8 %v1150
    %v1152 = vlaneseq
    %v1153 = vshrl.u32 %v1152, 7
    %v1154 = vsub.s32 %v1151, %v1153
    %v1155 = vrot.slane %v1141, %v1154
    %v1156 = vcombine.high %v1148, %v1148
    %v1157 = vcombine.high %v1155, %v1155
    %v1158 = vcombine.high %v1118, %v1118
    %v1160 = vunpack.c.l.s4 1983009808
    %v1161 = vunpack.c.0.s8 %v1160
    %v1162 = vlaneseq
    %v1163 = vshrl.u32 %v1162, 7
    %v1164 = vsub.s32 %v1161, %v1163
    %v1165 = vrot.slane %v1118, %v1164
    %v1167 = vunpack.c.l.s4 1983009808
    %v1168 = vunpack.c.0.s8 %v1167
    %v1169 = vlaneseq
    %v1170 = vshrl.u32 %v1169, 7
    %v1171 = vsub.s32 %v1168, %v1170
    %v1172 = vrot.slane %v1158, %v1171
    %v1173 = vcombine.high %v1165, %v1165
    %v1174 = vcombine.high %v1172, %v1172
    %v1176 = vunpack.c.l.s4 1983009808
    %v1177 = vunpack.c.0.s8 %v1176
    %v1178 = vlaneseq
    %v1179 = vshrl.u32 %v1178, 7
    %v1180 = vsub.s32 %v1177, %v1179
    %v1181 = vrot.slane %v1119, %v1180
    %v1182 = vcombine.high %v1181, %v1181
    %v1183 = vld [vmem:[#allocation7] sm:$0xff]
    %v1184 = vld [vmem:[#allocation7 + $0x8] sm:$0xff]
    %v1185 = vld [vmem:[#allocation7 + $0x10] sm:$0xff]
    %v1186 = vld [vmem:[#allocation7 + $0x18] sm:$0xff]
    %v1187 = vld [vmem:[#allocation7 + $0x20] sm:$0xff]
    %v1188 = vld [vmem:[#allocation7 + $0x28] sm:$0xff]
    %v1189 = vld [vmem:[#allocation7 + $0x30] sm:$0xff]
    %v1190 = vld [vmem:[#allocation7 + $0x38] sm:$0xff]
    %v1191 = vld [vmem:[#allocation7 + $0x40] sm:$0xff]
    %v1192 = vld [vmem:[#allocation7 + $0x48] sm:$0xff]
    %v1193 = vld [vmem:[#allocation7 + $0x50] sm:$0xff]
    %v1194 = vld [vmem:[#allocation7 + $0x58] sm:$0xff]
    %v1195 = vld [vmem:[#allocation7 + $0x60] sm:$0xff]
    %v1196 = vld [vmem:[#allocation7 + $0x68] sm:$0xff]
    %v1197 = vld [vmem:[#allocation7 + $0x70] sm:$0xff]
    %v1198 = vld [vmem:[#allocation7 + $0x78] sm:$0xff]
    %v1199 = vld [vmem:[#allocation7 + $0x80] sm:$0xff]
    %v1200 = vld [vmem:[#allocation7 + $0x88] sm:$0xff]
    %v1201 = vld [vmem:[#allocation7 + $0x90] sm:$0xff]
    %v1202 = vld [vmem:[#allocation7 + $0x98] sm:$0xff]
    %v1203 = vld [vmem:[#allocation7 + $0xa0] sm:$0xff]
    %v1204 = vld [vmem:[#allocation7 + $0xa8] sm:$0xff]
    %v1205 = vld [vmem:[#allocation7 + $0xb0] sm:$0xff]
    %v1206 = vld [vmem:[#allocation7 + $0xb8] sm:$0xff]
    %v1207 = vld [vmem:[#allocation7 + $0xc0] sm:$0xff]
    %v1208 = vld [vmem:[#allocation7 + $0xc8] sm:$0xff]
    %v1209 = vld [vmem:[#allocation7 + $0xd0] sm:$0xff]
    %v1210 = vld [vmem:[#allocation7 + $0xd8] sm:$0xff]
    %v1211 = vld [vmem:[#allocation7 + $0xe0] sm:$0xff]
    %v1212 = vld [vmem:[#allocation7 + $0xe8] sm:$0xff]
    %v1213 = vld [vmem:[#allocation7 + $0xf0] sm:$0xff]
    %v1214 = vld [vmem:[#allocation7 + $0xf8] sm:$0xff]
    %vm1215 = vcmask 1042434
    %vm1216 = vmor %vm685, %vm1215
    %vm1217 = vmor %vm1216, %vm686
    %vm1218 = vcmask 1046534
    %vm1219 = vmor %vm1217, %vm1218
    %v1220 = vrot.slane %v1131, 7
    %v1221 = vrot.slane %v1220, 2
    %v1222 = vrot.slane %v1139, 7
    %v1223 = vsel %vm1219, %v1221, %v1222
    %v1224 = vrot.slane %v1222, 2
    %v1225 = vrot.slane %v1138, 7
    %v1226 = vsel %vm1219, %v1224, %v1225
    %v1227 = vrot.slane %v1225, 2
    %v1228 = vrot.slane %v1140, 7
    %v1229 = vsel %vm1219, %v1227, %v1228
    %v1230 = vrot.slane %v1228, 2
    %v1231 = vrot.slane %v1148, 7
    %v1232 = vsel %vm1219, %v1230, %v1231
    %v1233 = vrot.slane %v1231, 2
    %v1234 = vrot.slane %v1156, 7
    %v1235 = vsel %vm1219, %v1233, %v1234
    %v1236 = vrot.slane %v1157, 7
    %v1237 = vrot.slane %v1236, 2
    %v1238 = vrot.slane %v1165, 7
    %v1239 = vsel %vm1219, %v1237, %v1238
    %v1240 = vrot.slane %v1238, 2
    %v1241 = vrot.slane %v1173, 7
    %v1242 = vsel %vm1219, %v1240, %v1241
    %v1243 = vrot.slane %v1241, 2
    %v1244 = vrot.slane %v1172, 7
    %v1245 = vsel %vm1219, %v1243, %v1244
    %v1246 = vrot.slane %v1244, 2
    %v1247 = vrot.slane %v1174, 7
    %v1248 = vsel %vm1219, %v1246, %v1247
    %v1249 = vrot.slane %v1247, 2
    %v1250 = vrot.slane %v1181, 7
    %v1251 = vsel %vm1219, %v1249, %v1250
    %s1252 = scalar_lea.vmem [#allocation7], 256
    %v1253 = vld [vmem:[%s1252] sm:$0xff]
    %v1254 = vld [vmem:[%s1252 + $0x8] sm:$0xff]
    %v1255 = vld [vmem:[%s1252 + $0x10] sm:$0xff]
    %v1256 = vld [vmem:[%s1252 + $0x18] sm:$0xff]
    %v1257 = vld [vmem:[%s1252 + $0x20] sm:$0xff]
    %v1258 = vld [vmem:[%s1252 + $0x28] sm:$0xff]
    %v1259 = vld [vmem:[%s1252 + $0x30] sm:$0xff]
    %v1260 = vld [vmem:[%s1252 + $0x38] sm:$0xff]
    %v1261 = vld [vmem:[%s1252 + $0x40] sm:$0xff]
    %v1262 = vld [vmem:[%s1252 + $0x48] sm:$0xff]
    %v1263 = vld [vmem:[%s1252 + $0x50] sm:$0xff]
    %v1264 = vld [vmem:[%s1252 + $0x58] sm:$0xff]
    %v1265 = vld [vmem:[%s1252 + $0x60] sm:$0xff]
    %v1266 = vld [vmem:[%s1252 + $0x68] sm:$0xff]
    %v1267 = vld [vmem:[%s1252 + $0x70] sm:$0xff]
    %v1268 = vld [vmem:[%s1252 + $0x78] sm:$0xff]
    %v1269 = vld [vmem:[%s1252 + $0x80] sm:$0xff]
    %v1270 = vld [vmem:[%s1252 + $0x88] sm:$0xff]
    %v1271 = vld [vmem:[%s1252 + $0x90] sm:$0xff]
    %v1272 = vld [vmem:[%s1252 + $0x98] sm:$0xff]
    %v1273 = vld [vmem:[%s1252 + $0xa0] sm:$0xff]
    %v1274 = vld [vmem:[%s1252 + $0xa8] sm:$0xff]
    %v1275 = vld [vmem:[%s1252 + $0xb0] sm:$0xff]
    %v1276 = vld [vmem:[%s1252 + $0xb8] sm:$0xff]
    %v1277 = vld [vmem:[%s1252 + $0xc0] sm:$0xff]
    %v1278 = vld [vmem:[%s1252 + $0xc8] sm:$0xff]
    %v1279 = vld [vmem:[%s1252 + $0xd0] sm:$0xff]
    %v1280 = vld [vmem:[%s1252 + $0xd8] sm:$0xff]
    %v1281 = vld [vmem:[%s1252 + $0xe0] sm:$0xff]
    %v1282 = vld [vmem:[%s1252 + $0xe8] sm:$0xff]
    %v1283 = vld [vmem:[%s1252 + $0xf0] sm:$0xff]
    %v1284 = vld [vmem:[%s1252 + $0xf8] sm:$0xff]
    %v1285 = vcombine.low %v1223, %v1226
    %v1286 = vcombine.low %v1229, %v1232
    %v1288 = vunpack.c.l.s4 1983009808
    %v1289 = vunpack.c.0.s8 %v1288
    %v1290 = vlaneseq
    %v1291 = vshrl.u32 %v1290, 7
    %v1292 = vsub.s32 %v1289, %v1291
    %v1293 = vrot.slane %v1285, %v1292
    %v1295 = vunpack.c.l.s4 1983009808
    %v1296 = vunpack.c.0.s8 %v1295
    %v1297 = vlaneseq
    %v1298 = vshrl.u32 %v1297, 7
    %v1299 = vsub.s32 %v1296, %v1298
    %v1300 = vrot.slane %v1286, %v1299
    %v1301 = vcombine.low %v1293, %v1300
    %v1302 = vcombine.low %v1235, %v1239
    %v1303 = vcombine.low %v1242, %v1245
    %v1305 = vunpack.c.l.s4 1983009808
    %v1306 = vunpack.c.0.s8 %v1305
    %v1307 = vlaneseq
    %v1308 = vshrl.u32 %v1307, 7
    %v1309 = vsub.s32 %v1306, %v1308
    %v1310 = vrot.slane %v1302, %v1309
    %v1312 = vunpack.c.l.s4 1983009808
    %v1313 = vunpack.c.0.s8 %v1312
    %v1314 = vlaneseq
    %v1315 = vshrl.u32 %v1314, 7
    %v1316 = vsub.s32 %v1313, %v1315
    %v1317 = vrot.slane %v1303, %v1316
    %v1318 = vcombine.low %v1310, %v1317
    %v1319 = vcombine.low %v1248, %v1251
    %v1321 = vunpack.c.l.s4 1983009808
    %v1322 = vunpack.c.0.s8 %v1321
    %v1323 = vlaneseq
    %v1324 = vshrl.u32 %v1323, 7
    %v1325 = vsub.s32 %v1322, %v1324
    %v1326 = vrot.slane %v1319, %v1325
    %1330 = vmatprep.subr.mxu0 %v1284
    %1331 = vmatpush1.msra.mxu0 %v1283
    %1332 = vmatprep.subr.mxu0 %v1282
    %1333 = vmatpush1.msra.mxu0 %v1281
    %1334 = vmatprep.subr.mxu0 %v1280
    %1335 = vmatpush1.msra.mxu0 %v1279
    %1336 = vmatprep.subr.mxu0 %v1278
    %1337 = vmatpush1.msra.mxu0 %v1277
    %1338 = vmatprep.subr.mxu0 %v1276
    %1339 = vmatpush1.msra.mxu0 %v1275
    %1340 = vmatprep.subr.mxu0 %v1274
    %1341 = vmatpush1.msra.mxu0 %v1273
    %1342 = vmatprep.subr.mxu0 %v1272
    %1343 = vmatpush1.msra.mxu0 %v1271
    %1344 = vmatprep.subr.mxu0 %v1270
    %1345 = vmatpush1.msra.mxu0 %v1269
    %1346 = vmatprep.subr.mxu0 %v1268
    %1347 = vmatpush1.msra.mxu0 %v1267
    %1348 = vmatprep.subr.mxu0 %v1266
    %1349 = vmatpush1.msra.mxu0 %v1265
    %1350 = vmatprep.subr.mxu0 %v1264
    %1351 = vmatpush1.msra.mxu0 %v1263
    %1352 = vmatprep.subr.mxu0 %v1262
    %1353 = vmatpush1.msra.mxu0 %v1261
    %1354 = vmatprep.subr.mxu0 %v1260
    %1355 = vmatpush1.msra.mxu0 %v1259
    %1356 = vmatprep.subr.mxu0 %v1258
    %1357 = vmatpush1.msra.mxu0 %v1257
    %1358 = vmatprep.subr.mxu0 %v1256
    %1359 = vmatpush1.msra.mxu0 %v1255
    %1360 = vmatprep.subr.mxu0 %v1254
    %1361 = vmatpush1.msra.mxu0 %v1253
    %1362 = vmatprep.subr.mxu0 0.0
    %1363 = vmatpush2.msra.mxu0 0.0
    %1364 = vmatprep.subr.mxu0 0.0
    %1365 = vmatpush2.msra.mxu0 0.0
    %1366 = vmatprep.subr.mxu0 0.0
    %1367 = vmatpush2.msra.mxu0 0.0
    %1368 = vmatprep.subr.mxu0 0.0
    %1369 = vmatpush2.msra.mxu0 0.0
    %1370 = vmatprep.subr.mxu0 0.0
    %1371 = vmatpush2.msra.mxu0 0.0
    %1372 = vmatprep.subr.mxu0 0.0
    %1373 = vmatpush2.msra.mxu0 0.0
    %1374 = vmatprep.subr.mxu0 0.0
    %1375 = vmatpush2.msra.mxu0 0.0
    %1376 = vmatprep.subr.mxu0 0.0
    %1377 = vmatpush2.msra.mxu0 0.0
    %1378 = vmatprep.subr.mxu0 0.0
    %1379 = vmatpush2.msra.mxu0 0.0
    %1380 = vmatprep.subr.mxu0 0.0
    %1381 = vmatpush2.msra.mxu0 0.0
    %1382 = vmatprep.subr.mxu0 0.0
    %1383 = vmatpush2.msra.mxu0 0.0
    %1384 = vmatprep.subr.mxu0 0.0
    %1385 = vmatpush2.msra.mxu0 0.0
    %1386 = vmatprep.subr.mxu0 0.0
    %1387 = vmatpush2.msra.mxu0 0.0
    %1388 = vmatprep.subr.mxu0 0.0
    %1389 = vmatpush2.msra.mxu0 0.0
    %1390 = vmatprep.subr.mxu0 0.0
    %1391 = vmatpush2.msra.mxu0 0.0
    %1392 = vmatprep.subr.mxu0 0.0
    %1393 = vmatpush2.msra.mxu0 0.0
    %1394 = vmatprep.mubr.f32.mxu0 0.0
    %1395 = vmatmul.mubr.f32.gmra.mxu0 %v1301
    %v1396 = vpop.f32.mrf.mxu0
    %v1397 = vadd.f32 0.0, %v1396
    %v1398 = vpop.f32.mrf.mxu0
    %v1399 = vadd.f32 0.0, %v1398
    %1400 = vmatprep.mubr.f32.mxu0 0.0
    %1401 = vmatmul.mubr.f32.gmra.mxu0 %v1318
    %v1402 = vpop.f32.mrf.mxu0
    %v1403 = vadd.f32 0.0, %v1402
    %v1404 = vpop.f32.mrf.mxu0
    %v1405 = vadd.f32 0.0, %v1404
    %1406 = vmatprep.mubr.f32.mxu0 0.0
    %1407 = vmatmul.mubr.f32.gmra.mxu0 %v1326
    %v1408 = vpop.f32.mrf.mxu0
    %v1409 = vadd.f32 0.0, %v1408
    %v1410 = vpop.f32.mrf.mxu0
    %v1411 = vadd.f32 0.0, %v1410
    %1412 = vdwg.mxu0
    %v1413 = vcombine.low %v1131, %v1139
    %v1414 = vcombine.low %v1138, %v1140
    %v1416 = vunpack.c.l.s4 1983009808
    %v1417 = vunpack.c.0.s8 %v1416
    %v1418 = vlaneseq
    %v1419 = vshrl.u32 %v1418, 7
    %v1420 = vsub.s32 %v1417, %v1419
    %v1421 = vrot.slane %v1413, %v1420
    %v1423 = vunpack.c.l.s4 1983009808
    %v1424 = vunpack.c.0.s8 %v1423
    %v1425 = vlaneseq
    %v1426 = vshrl.u32 %v1425, 7
    %v1427 = vsub.s32 %v1424, %v1426
    %v1428 = vrot.slane %v1414, %v1427
    %v1429 = vcombine.low %v1421, %v1428
    %v1430 = vcombine.low %v1148, %v1157
    %v1431 = vcombine.low %v1165, %v1173
    %v1433 = vunpack.c.l.s4 1983009808
    %v1434 = vunpack.c.0.s8 %v1433
    %v1435 = vlaneseq
    %v1436 = vshrl.u32 %v1435, 7
    %v1437 = vsub.s32 %v1434, %v1436
    %v1438 = vrot.slane %v1430, %v1437
    %v1440 = vunpack.c.l.s4 1983009808
    %v1441 = vunpack.c.0.s8 %v1440
    %v1442 = vlaneseq
    %v1443 = vshrl.u32 %v1442, 7
    %v1444 = vsub.s32 %v1441, %v1443
    %v1445 = vrot.slane %v1431, %v1444
    %v1446 = vcombine.low %v1438, %v1445
    %v1447 = vcombine.low %v1172, %v1174
    %v1449 = vunpack.c.l.s4 1983009808
    %v1450 = vunpack.c.0.s8 %v1449
    %v1451 = vlaneseq
    %v1452 = vshrl.u32 %v1451, 7
    %v1453 = vsub.s32 %v1450, %v1452
    %v1454 = vrot.slane %v1447, %v1453
    %1458 = vmatprep.subr.mxu0 %v1214
    %1459 = vmatpush1.msra.mxu0 %v1213
    %1460 = vmatprep.subr.mxu0 %v1212
    %1461 = vmatpush1.msra.mxu0 %v1211
    %1462 = vmatprep.subr.mxu0 %v1210
    %1463 = vmatpush1.msra.mxu0 %v1209
    %1464 = vmatprep.subr.mxu0 %v1208
    %1465 = vmatpush1.msra.mxu0 %v1207
    %1466 = vmatprep.subr.mxu0 %v1206
    %1467 = vmatpush1.msra.mxu0 %v1205
    %1468 = vmatprep.subr.mxu0 %v1204
    %1469 = vmatpush1.msra.mxu0 %v1203
    %1470 = vmatprep.subr.mxu0 %v1202
    %1471 = vmatpush1.msra.mxu0 %v1201
    %1472 = vmatprep.subr.mxu0 %v1200
    %1473 = vmatpush1.msra.mxu0 %v1199
    %1474 = vmatprep.subr.mxu0 %v1198
    %1475 = vmatpush1.msra.mxu0 %v1197
    %1476 = vmatprep.subr.mxu0 %v1196
    %1477 = vmatpush1.msra.mxu0 %v1195
    %1478 = vmatprep.subr.mxu0 %v1194
    %1479 = vmatpush1.msra.mxu0 %v1193
    %1480 = vmatprep.subr.mxu0 %v1192
    %1481 = vmatpush1.msra.mxu0 %v1191
    %1482 = vmatprep.subr.mxu0 %v1190
    %1483 = vmatpush1.msra.mxu0 %v1189
    %1484 = vmatprep.subr.mxu0 %v1188
    %1485 = vmatpush1.msra.mxu0 %v1187
    %1486 = vmatprep.subr.mxu0 %v1186
    %1487 = vmatpush1.msra.mxu0 %v1185
    %1488 = vmatprep.subr.mxu0 %v1184
    %1489 = vmatpush1.msra.mxu0 %v1183
    %1490 = vmatprep.subr.mxu0 0.0
    %1491 = vmatpush2.msra.mxu0 0.0
    %1492 = vmatprep.subr.mxu0 0.0
    %1493 = vmatpush2.msra.mxu0 0.0
    %1494 = vmatprep.subr.mxu0 0.0
    %1495 = vmatpush2.msra.mxu0 0.0
    %1496 = vmatprep.subr.mxu0 0.0
    %1497 = vmatpush2.msra.mxu0 0.0
    %1498 = vmatprep.subr.mxu0 0.0
    %1499 = vmatpush2.msra.mxu0 0.0
    %1500 = vmatprep.subr.mxu0 0.0
    %1501 = vmatpush2.msra.mxu0 0.0
    %1502 = vmatprep.subr.mxu0 0.0
    %1503 = vmatpush2.msra.mxu0 0.0
    %1504 = vmatprep.subr.mxu0 0.0
    %1505 = vmatpush2.msra.mxu0 0.0
    %1506 = vmatprep.subr.mxu0 0.0
    %1507 = vmatpush2.msra.mxu0 0.0
    %1508 = vmatprep.subr.mxu0 0.0
    %1509 = vmatpush2.msra.mxu0 0.0
    %1510 = vmatprep.subr.mxu0 0.0
    %1511 = vmatpush2.msra.mxu0 0.0
    %1512 = vmatprep.subr.mxu0 0.0
    %1513 = vmatpush2.msra.mxu0 0.0
    %1514 = vmatprep.subr.mxu0 0.0
    %1515 = vmatpush2.msra.mxu0 0.0
    %1516 = vmatprep.subr.mxu0 0.0
    %1517 = vmatpush2.msra.mxu0 0.0
    %1518 = vmatprep.subr.mxu0 0.0
    %1519 = vmatpush2.msra.mxu0 0.0
    %1520 = vmatprep.subr.mxu0 0.0
    %1521 = vmatpush2.msra.mxu0 0.0
    %1522 = vmatprep.mubr.f32.mxu0 0.0
    %1523 = vmatmul.mubr.f32.gmra.mxu0 %v1429
    %v1524 = vpop.f32.mrf.mxu0
    %v1525 = vadd.f32 %v1397, %v1524
    %v1526 = vpop.f32.mrf.mxu0
    %v1527 = vadd.f32 %v1399, %v1526
    %1528 = vmatprep.mubr.f32.mxu0 0.0
    %1529 = vmatmul.mubr.f32.gmra.mxu0 %v1446
    %v1530 = vpop.f32.mrf.mxu0
    %v1531 = vadd.f32 %v1403, %v1530
    %v1532 = vpop.f32.mrf.mxu0
    %v1533 = vadd.f32 %v1405, %v1532
    %1534 = vmatprep.mubr.f32.mxu0 0.0
    %1535 = vmatmul.mubr.f32.gmra.mxu0 %v1454
    %v1536 = vpop.f32.mrf.mxu0
    %v1537 = vadd.f32 %v1409, %v1536
    %v1538 = vpop.f32.mrf.mxu0
    %v1539 = vadd.f32 %v1411, %v1538
    %1540 = vdwg.mxu0
    %s1541 = scalar_lea.vmem [#allocation7], 512
    %v1542 = vld [vmem:[%s1541] sm:$0xff]
    %v1543 = vld [vmem:[%s1541 + $0x8] sm:$0xff]
    %v1544 = vld [vmem:[%s1541 + $0x10] sm:$0xff]
    %v1545 = vld [vmem:[%s1541 + $0x18] sm:$0xff]
    %v1546 = vld [vmem:[%s1541 + $0x20] sm:$0xff]
    %v1547 = vld [vmem:[%s1541 + $0x28] sm:$0xff]
    %v1548 = vld [vmem:[%s1541 + $0x30] sm:$0xff]
    %v1549 = vld [vmem:[%s1541 + $0x38] sm:$0xff]
    %v1550 = vld [vmem:[%s1541 + $0x40] sm:$0xff]
    %v1551 = vld [vmem:[%s1541 + $0x48] sm:$0xff]
    %v1552 = vld [vmem:[%s1541 + $0x50] sm:$0xff]
    %v1553 = vld [vmem:[%s1541 + $0x58] sm:$0xff]
    %v1554 = vld [vmem:[%s1541 + $0x60] sm:$0xff]
    %v1555 = vld [vmem:[%s1541 + $0x68] sm:$0xff]
    %v1556 = vld [vmem:[%s1541 + $0x70] sm:$0xff]
    %v1557 = vld [vmem:[%s1541 + $0x78] sm:$0xff]
    %v1558 = vld [vmem:[%s1541 + $0x80] sm:$0xff]
    %v1559 = vld [vmem:[%s1541 + $0x88] sm:$0xff]
    %v1560 = vld [vmem:[%s1541 + $0x90] sm:$0xff]
    %v1561 = vld [vmem:[%s1541 + $0x98] sm:$0xff]
    %v1562 = vld [vmem:[%s1541 + $0xa0] sm:$0xff]
    %v1563 = vld [vmem:[%s1541 + $0xa8] sm:$0xff]
    %v1564 = vld [vmem:[%s1541 + $0xb0] sm:$0xff]
    %v1565 = vld [vmem:[%s1541 + $0xb8] sm:$0xff]
    %v1566 = vld [vmem:[%s1541 + $0xc0] sm:$0xff]
    %v1567 = vld [vmem:[%s1541 + $0xc8] sm:$0xff]
    %v1568 = vld [vmem:[%s1541 + $0xd0] sm:$0xff]
    %v1569 = vld [vmem:[%s1541 + $0xd8] sm:$0xff]
    %v1570 = vld [vmem:[%s1541 + $0xe0] sm:$0xff]
    %v1571 = vld [vmem:[%s1541 + $0xe8] sm:$0xff]
    %v1572 = vld [vmem:[%s1541 + $0xf0] sm:$0xff]
    %v1573 = vld [vmem:[%s1541 + $0xf8] sm:$0xff]
    %v1574 = vcombine.low %v1139, %v1138
    %v1575 = vcombine.low %v1140, %v1148
    %v1577 = vunpack.c.l.s4 1983009808
    %v1578 = vunpack.c.0.s8 %v1577
    %v1579 = vlaneseq
    %v1580 = vshrl.u32 %v1579, 7
    %v1581 = vsub.s32 %v1578, %v1580
    %v1582 = vrot.slane %v1574, %v1581
    %v1584 = vunpack.c.l.s4 1983009808
    %v1585 = vunpack.c.0.s8 %v1584
    %v1586 = vlaneseq
    %v1587 = vshrl.u32 %v1586, 7
    %v1588 = vsub.s32 %v1585, %v1587
    %v1589 = vrot.slane %v1575, %v1588
    %v1590 = vcombine.low %v1582, %v1589
    %v1591 = vcombine.low %v1156, %v1165
    %v1592 = vcombine.low %v1173, %v1172
    %v1594 = vunpack.c.l.s4 1983009808
    %v1595 = vunpack.c.0.s8 %v1594
    %v1596 = vlaneseq
    %v1597 = vshrl.u32 %v1596, 7
    %v1598 = vsub.s32 %v1595, %v1597
    %v1599 = vrot.slane %v1591, %v1598
    %v1601 = vunpack.c.l.s4 1983009808
    %v1602 = vunpack.c.0.s8 %v1601
    %v1603 = vlaneseq
    %v1604 = vshrl.u32 %v1603, 7
    %v1605 = vsub.s32 %v1602, %v1604
    %v1606 = vrot.slane %v1592, %v1605
    %v1607 = vcombine.low %v1599, %v1606
    %v1608 = vcombine.low %v1174, %v1181
    %v1610 = vunpack.c.l.s4 1983009808
    %v1611 = vunpack.c.0.s8 %v1610
    %v1612 = vlaneseq
    %v1613 = vshrl.u32 %v1612, 7
    %v1614 = vsub.s32 %v1611, %v1613
    %v1615 = vrot.slane %v1608, %v1614
    %1619 = vmatprep.subr.mxu0 %v1573
    %1620 = vmatpush1.msra.mxu0 %v1572
    %1621 = vmatprep.subr.mxu0 %v1571
    %1622 = vmatpush1.msra.mxu0 %v1570
    %1623 = vmatprep.subr.mxu0 %v1569
    %1624 = vmatpush1.msra.mxu0 %v1568
    %1625 = vmatprep.subr.mxu0 %v1567
    %1626 = vmatpush1.msra.mxu0 %v1566
    %1627 = vmatprep.subr.mxu0 %v1565
    %1628 = vmatpush1.msra.mxu0 %v1564
    %1629 = vmatprep.subr.mxu0 %v1563
    %1630 = vmatpush1.msra.mxu0 %v1562
    %1631 = vmatprep.subr.mxu0 %v1561
    %1632 = vmatpush1.msra.mxu0 %v1560
    %1633 = vmatprep.subr.mxu0 %v1559
    %1634 = vmatpush1.msra.mxu0 %v1558
    %1635 = vmatprep.subr.mxu0 %v1557
    %1636 = vmatpush1.msra.mxu0 %v1556
    %1637 = vmatprep.subr.mxu0 %v1555
    %1638 = vmatpush1.msra.mxu0 %v1554
    %1639 = vmatprep.subr.mxu0 %v1553
    %1640 = vmatpush1.msra.mxu0 %v1552
    %1641 = vmatprep.subr.mxu0 %v1551
    %1642 = vmatpush1.msra.mxu0 %v1550
    %1643 = vmatprep.subr.mxu0 %v1549
    %1644 = vmatpush1.msra.mxu0 %v1548
    %1645 = vmatprep.subr.mxu0 %v1547
    %1646 = vmatpush1.msra.mxu0 %v1546
    %1647 = vmatprep.subr.mxu0 %v1545
    %1648 = vmatpush1.msra.mxu0 %v1544
    %1649 = vmatprep.subr.mxu0 %v1543
    %1650 = vmatpush1.msra.mxu0 %v1542
    %1651 = vmatprep.subr.mxu0 0.0
    %1652 = vmatpush2.msra.mxu0 0.0
    %1653 = vmatprep.subr.mxu0 0.0
    %1654 = vmatpush2.msra.mxu0 0.0
    %1655 = vmatprep.subr.mxu0 0.0
    %1656 = vmatpush2.msra.mxu0 0.0
    %1657 = vmatprep.subr.mxu0 0.0
    %1658 = vmatpush2.msra.mxu0 0.0
    %1659 = vmatprep.subr.mxu0 0.0
    %1660 = vmatpush2.msra.mxu0 0.0
    %1661 = vmatprep.subr.mxu0 0.0
    %1662 = vmatpush2.msra.mxu0 0.0
    %1663 = vmatprep.subr.mxu0 0.0
    %1664 = vmatpush2.msra.mxu0 0.0
    %1665 = vmatprep.subr.mxu0 0.0
    %1666 = vmatpush2.msra.mxu0 0.0
    %1667 = vmatprep.subr.mxu0 0.0
    %1668 = vmatpush2.msra.mxu0 0.0
    %1669 = vmatprep.subr.mxu0 0.0
    %1670 = vmatpush2.msra.mxu0 0.0
    %1671 = vmatprep.subr.mxu0 0.0
    %1672 = vmatpush2.msra.mxu0 0.0
    %1673 = vmatprep.subr.mxu0 0.0
    %1674 = vmatpush2.msra.mxu0 0.0
    %1675 = vmatprep.subr.mxu0 0.0
    %1676 = vmatpush2.msra.mxu0 0.0
    %1677 = vmatprep.subr.mxu0 0.0
    %1678 = vmatpush2.msra.mxu0 0.0
    %1679 = vmatprep.subr.mxu0 0.0
    %1680 = vmatpush2.msra.mxu0 0.0
    %1681 = vmatprep.subr.mxu0 0.0
    %1682 = vmatpush2.msra.mxu0 0.0
    %1683 = vmatprep.mubr.f32.mxu0 0.0
    %1684 = vmatmul.mubr.f32.gmra.mxu0 %v1590
    %v1685 = vpop.f32.mrf.mxu0
    %v1686 = vadd.f32 0.0, %v1685
    %v1687 = vpop.f32.mrf.mxu0
    %v1688 = vadd.f32 0.0, %v1687
    %1689 = vmatprep.mubr.f32.mxu0 0.0
    %1690 = vmatmul.mubr.f32.gmra.mxu0 %v1607
    %v1691 = vpop.f32.mrf.mxu0
    %v1692 = vadd.f32 0.0, %v1691
    %v1693 = vpop.f32.mrf.mxu0
    %v1694 = vadd.f32 0.0, %v1693
    %1695 = vmatprep.mubr.f32.mxu0 0.0
    %1696 = vmatmul.mubr.f32.gmra.mxu0 %v1615
    %v1697 = vpop.f32.mrf.mxu0
    %v1698 = vadd.f32 0.0, %v1697
    %v1699 = vpop.f32.mrf.mxu0
    %v1700 = vadd.f32 0.0, %v1699
    %1701 = vdwg.mxu0
    %v1702 = vadd.f32 %v1525, %v1686
    %v1703 = vadd.f32 %v1527, %v1688
    %v1704 = vadd.f32 %v1531, %v1692
    %v1705 = vadd.f32 %v1533, %v1694
    %v1706 = vadd.f32 %v1537, %v1698
    %v1707 = vadd.f32 %v1539, %v1700
    %v1708 = vrot.slane %v1234, 2
    %v1709 = vrot.slane %v1155, 7
    %v1710 = vsel %vm1219, %v1708, %v1709
    %v1711 = vrot.slane %v1250, 2
    %v1712 = vrot.slane %v1182, 7
    %v1713 = vsel %vm1219, %v1711, %v1712
    %s1714 = scalar_lea.vmem [#allocation7], 768
    %v1715 = vld [vmem:[%s1714] sm:$0xff]
    %v1716 = vld [vmem:[%s1714 + $0x8] sm:$0xff]
    %v1717 = vld [vmem:[%s1714 + $0x10] sm:$0xff]
    %v1718 = vld [vmem:[%s1714 + $0x18] sm:$0xff]
    %v1719 = vld [vmem:[%s1714 + $0x20] sm:$0xff]
    %v1720 = vld [vmem:[%s1714 + $0x28] sm:$0xff]
    %v1721 = vld [vmem:[%s1714 + $0x30] sm:$0xff]
    %v1722 = vld [vmem:[%s1714 + $0x38] sm:$0xff]
    %v1723 = vld [vmem:[%s1714 + $0x40] sm:$0xff]
    %v1724 = vld [vmem:[%s1714 + $0x48] sm:$0xff]
    %v1725 = vld [vmem:[%s1714 + $0x50] sm:$0xff]
    %v1726 = vld [vmem:[%s1714 + $0x58] sm:$0xff]
    %v1727 = vld [vmem:[%s1714 + $0x60] sm:$0xff]
    %v1728 = vld [vmem:[%s1714 + $0x68] sm:$0xff]
    %v1729 = vld [vmem:[%s1714 + $0x70] sm:$0xff]
    %v1730 = vld [vmem:[%s1714 + $0x78] sm:$0xff]
    %v1731 = vld [vmem:[%s1714 + $0x80] sm:$0xff]
    %v1732 = vld [vmem:[%s1714 + $0x88] sm:$0xff]
    %v1733 = vld [vmem:[%s1714 + $0x90] sm:$0xff]
    %v1734 = vld [vmem:[%s1714 + $0x98] sm:$0xff]
    %v1735 = vld [vmem:[%s1714 + $0xa0] sm:$0xff]
    %v1736 = vld [vmem:[%s1714 + $0xa8] sm:$0xff]
    %v1737 = vld [vmem:[%s1714 + $0xb0] sm:$0xff]
    %v1738 = vld [vmem:[%s1714 + $0xb8] sm:$0xff]
    %v1739 = vld [vmem:[%s1714 + $0xc0] sm:$0xff]
    %v1740 = vld [vmem:[%s1714 + $0xc8] sm:$0xff]
    %v1741 = vld [vmem:[%s1714 + $0xd0] sm:$0xff]
    %v1742 = vld [vmem:[%s1714 + $0xd8] sm:$0xff]
    %v1743 = vld [vmem:[%s1714 + $0xe0] sm:$0xff]
    %v1744 = vld [vmem:[%s1714 + $0xe8] sm:$0xff]
    %v1745 = vld [vmem:[%s1714 + $0xf0] sm:$0xff]
    %v1746 = vld [vmem:[%s1714 + $0xf8] sm:$0xff]
    %v1747 = vcombine.low %v1226, %v1229
    %v1748 = vcombine.low %v1232, %v1235
    %v1750 = vunpack.c.l.s4 1983009808
    %v1751 = vunpack.c.0.s8 %v1750
    %v1752 = vlaneseq
    %v1753 = vshrl.u32 %v1752, 7
    %v1754 = vsub.s32 %v1751, %v1753
    %v1755 = vrot.slane %v1747, %v1754
    %v1757 = vunpack.c.l.s4 1983009808
    %v1758 = vunpack.c.0.s8 %v1757
    %v1759 = vlaneseq
    %v1760 = vshrl.u32 %v1759, 7
    %v1761 = vsub.s32 %v1758, %v1760
    %v1762 = vrot.slane %v1748, %v1761
    %v1763 = vcombine.low %v1755, %v1762
    %v1764 = vcombine.low %v1710, %v1242
    %v1765 = vcombine.low %v1245, %v1248
    %v1767 = vunpack.c.l.s4 1983009808
    %v1768 = vunpack.c.0.s8 %v1767
    %v1769 = vlaneseq
    %v1770 = vshrl.u32 %v1769, 7
    %v1771 = vsub.s32 %v1768, %v1770
    %v1772 = vrot.slane %v1764, %v1771
    %v1774 = vunpack.c.l.s4 1983009808
    %v1775 = vunpack.c.0.s8 %v1774
    %v1776 = vlaneseq
    %v1777 = vshrl.u32 %v1776, 7
    %v1778 = vsub.s32 %v1775, %v1777
    %v1779 = vrot.slane %v1765, %v1778
    %v1780 = vcombine.low %v1772, %v1779
    %v1781 = vcombine.low %v1251, %v1713
    %v1783 = vunpack.c.l.s4 1983009808
    %v1784 = vunpack.c.0.s8 %v1783
    %v1785 = vlaneseq
    %v1786 = vshrl.u32 %v1785, 7
    %v1787 = vsub.s32 %v1784, %v1786
    %v1788 = vrot.slane %v1781, %v1787
    %1792 = vmatprep.subr.mxu0 %v1746
    %1793 = vmatpush1.msra.mxu0 %v1745
    %1794 = vmatprep.subr.mxu0 %v1744
    %1795 = vmatpush1.msra.mxu0 %v1743
    %1796 = vmatprep.subr.mxu0 %v1742
    %1797 = vmatpush1.msra.mxu0 %v1741
    %1798 = vmatprep.subr.mxu0 %v1740
    %1799 = vmatpush1.msra.mxu0 %v1739
    %1800 = vmatprep.subr.mxu0 %v1738
    %1801 = vmatpush1.msra.mxu0 %v1737
    %1802 = vmatprep.subr.mxu0 %v1736
    %1803 = vmatpush1.msra.mxu0 %v1735
    %1804 = vmatprep.subr.mxu0 %v1734
    %1805 = vmatpush1.msra.mxu0 %v1733
    %1806 = vmatprep.subr.mxu0 %v1732
    %1807 = vmatpush1.msra.mxu0 %v1731
    %1808 = vmatprep.subr.mxu0 %v1730
    %1809 = vmatpush1.msra.mxu0 %v1729
    %1810 = vmatprep.subr.mxu0 %v1728
    %1811 = vmatpush1.msra.mxu0 %v1727
    %1812 = vmatprep.subr.mxu0 %v1726
    %1813 = vmatpush1.msra.mxu0 %v1725
    %1814 = vmatprep.subr.mxu0 %v1724
    %1815 = vmatpush1.msra.mxu0 %v1723
    %1816 = vmatprep.subr.mxu0 %v1722
    %1817 = vmatpush1.msra.mxu0 %v1721
    %1818 = vmatprep.subr.mxu0 %v1720
    %1819 = vmatpush1.msra.mxu0 %v1719
    %1820 = vmatprep.subr.mxu0 %v1718
    %1821 = vmatpush1.msra.mxu0 %v1717
    %1822 = vmatprep.subr.mxu0 %v1716
    %1823 = vmatpush1.msra.mxu0 %v1715
    %1824 = vmatprep.subr.mxu0 0.0
    %1825 = vmatpush2.msra.mxu0 0.0
    %1826 = vmatprep.subr.mxu0 0.0
    %1827 = vmatpush2.msra.mxu0 0.0
    %1828 = vmatprep.subr.mxu0 0.0
    %1829 = vmatpush2.msra.mxu0 0.0
    %1830 = vmatprep.subr.mxu0 0.0
    %1831 = vmatpush2.msra.mxu0 0.0
    %1832 = vmatprep.subr.mxu0 0.0
    %1833 = vmatpush2.msra.mxu0 0.0
    %1834 = vmatprep.subr.mxu0 0.0
    %1835 = vmatpush2.msra.mxu0 0.0
    %1836 = vmatprep.subr.mxu0 0.0
    %1837 = vmatpush2.msra.mxu0 0.0
    %1838 = vmatprep.subr.mxu0 0.0
    %1839 = vmatpush2.msra.mxu0 0.0
    %1840 = vmatprep.subr.mxu0 0.0
    %1841 = vmatpush2.msra.mxu0 0.0
    %1842 = vmatprep.subr.mxu0 0.0
    %1843 = vmatpush2.msra.mxu0 0.0
    %1844 = vmatprep.subr.mxu0 0.0
    %1845 = vmatpush2.msra.mxu0 0.0
    %1846 = vmatprep.subr.mxu0 0.0
    %1847 = vmatpush2.msra.mxu0 0.0
    %1848 = vmatprep.subr.mxu0 0.0
    %1849 = vmatpush2.msra.mxu0 0.0
    %1850 = vmatprep.subr.mxu0 0.0
    %1851 = vmatpush2.msra.mxu0 0.0
    %1852 = vmatprep.subr.mxu0 0.0
    %1853 = vmatpush2.msra.mxu0 0.0
    %1854 = vmatprep.subr.mxu0 0.0
    %1855 = vmatpush2.msra.mxu0 0.0
    %1856 = vmatprep.mubr.f32.mxu0 0.0
    %1857 = vmatmul.mubr.f32.gmra.mxu0 %v1763
    %v1858 = vpop.f32.mrf.mxu0
    %v1859 = vadd.f32 0.0, %v1858
    %v1860 = vpop.f32.mrf.mxu0
    %v1861 = vadd.f32 0.0, %v1860
    %1862 = vmatprep.mubr.f32.mxu0 0.0
    %1863 = vmatmul.mubr.f32.gmra.mxu0 %v1780
    %v1864 = vpop.f32.mrf.mxu0
    %v1865 = vadd.f32 0.0, %v1864
    %v1866 = vpop.f32.mrf.mxu0
    %v1867 = vadd.f32 0.0, %v1866
    %1868 = vmatprep.mubr.f32.mxu0 0.0
    %1869 = vmatmul.mubr.f32.gmra.mxu0 %v1788
    %v1870 = vpop.f32.mrf.mxu0
    %v1871 = vadd.f32 0.0, %v1870
    %v1872 = vpop.f32.mrf.mxu0
    %v1873 = vadd.f32 0.0, %v1872
    %1874 = vdwg.mxu0
    %v1875 = vadd.f32 %v1702, %v1859
    %v1876 = vadd.f32 %v1703, %v1861
    %v1877 = vadd.f32 %v1704, %v1865
    %v1878 = vadd.f32 %v1705, %v1867
    %v1879 = vadd.f32 %v1706, %v1871
    %v1880 = vadd.f32 %v1707, %v1873
    %s1881 = scalar_lea.vmem [#allocation7], 1024
    %v1882 = vld [vmem:[%s1881] sm:$0xff]
    %v1883 = vld [vmem:[%s1881 + $0x8] sm:$0xff]
    %v1884 = vld [vmem:[%s1881 + $0x10] sm:$0xff]
    %v1885 = vld [vmem:[%s1881 + $0x18] sm:$0xff]
    %v1886 = vld [vmem:[%s1881 + $0x20] sm:$0xff]
    %v1887 = vld [vmem:[%s1881 + $0x28] sm:$0xff]
    %v1888 = vld [vmem:[%s1881 + $0x30] sm:$0xff]
    %v1889 = vld [vmem:[%s1881 + $0x38] sm:$0xff]
    %v1890 = vld [vmem:[%s1881 + $0x40] sm:$0xff]
    %v1891 = vld [vmem:[%s1881 + $0x48] sm:$0xff]
    %v1892 = vld [vmem:[%s1881 + $0x50] sm:$0xff]
    %v1893 = vld [vmem:[%s1881 + $0x58] sm:$0xff]
    %v1894 = vld [vmem:[%s1881 + $0x60] sm:$0xff]
    %v1895 = vld [vmem:[%s1881 + $0x68] sm:$0xff]
    %v1896 = vld [vmem:[%s1881 + $0x70] sm:$0xff]
    %v1897 = vld [vmem:[%s1881 + $0x78] sm:$0xff]
    %v1898 = vld [vmem:[%s1881 + $0x80] sm:$0xff]
    %v1899 = vld [vmem:[%s1881 + $0x88] sm:$0xff]
    %v1900 = vld [vmem:[%s1881 + $0x90] sm:$0xff]
    %v1901 = vld [vmem:[%s1881 + $0x98] sm:$0xff]
    %v1902 = vld [vmem:[%s1881 + $0xa0] sm:$0xff]
    %v1903 = vld [vmem:[%s1881 + $0xa8] sm:$0xff]
    %v1904 = vld [vmem:[%s1881 + $0xb0] sm:$0xff]
    %v1905 = vld [vmem:[%s1881 + $0xb8] sm:$0xff]
    %v1906 = vld [vmem:[%s1881 + $0xc0] sm:$0xff]
    %v1907 = vld [vmem:[%s1881 + $0xc8] sm:$0xff]
    %v1908 = vld [vmem:[%s1881 + $0xd0] sm:$0xff]
    %v1909 = vld [vmem:[%s1881 + $0xd8] sm:$0xff]
    %v1910 = vld [vmem:[%s1881 + $0xe0] sm:$0xff]
    %v1911 = vld [vmem:[%s1881 + $0xe8] sm:$0xff]
    %v1912 = vld [vmem:[%s1881 + $0xf0] sm:$0xff]
    %v1913 = vld [vmem:[%s1881 + $0xf8] sm:$0xff]
    %v1914 = vcombine.low %v1148, %v1156
    %v1916 = vunpack.c.l.s4 1983009808
    %v1917 = vunpack.c.0.s8 %v1916
    %v1918 = vlaneseq
    %v1919 = vshrl.u32 %v1918, 7
    %v1920 = vsub.s32 %v1917, %v1919
    %v1921 = vrot.slane %v1914, %v1920
    %v1922 = vcombine.low %v1428, %v1921
    %v1923 = vcombine.low %v1155, %v1173
    %v1925 = vunpack.c.l.s4 1983009808
    %v1926 = vunpack.c.0.s8 %v1925
    %v1927 = vlaneseq
    %v1928 = vshrl.u32 %v1927, 7
    %v1929 = vsub.s32 %v1926, %v1928
    %v1930 = vrot.slane %v1923, %v1929
    %v1931 = vcombine.low %v1930, %v1454
    %v1932 = vcombine.low %v1181, %v1182
    %v1934 = vunpack.c.l.s4 1983009808
    %v1935 = vunpack.c.0.s8 %v1934
    %v1936 = vlaneseq
    %v1937 = vshrl.u32 %v1936, 7
    %v1938 = vsub.s32 %v1935, %v1937
    %v1939 = vrot.slane %v1932, %v1938
    %1943 = vmatprep.subr.mxu0 %v1913
    %1944 = vmatpush1.msra.mxu0 %v1912
    %1945 = vmatprep.subr.mxu0 %v1911
    %1946 = vmatpush1.msra.mxu0 %v1910
    %1947 = vmatprep.subr.mxu0 %v1909
    %1948 = vmatpush1.msra.mxu0 %v1908
    %1949 = vmatprep.subr.mxu0 %v1907
    %1950 = vmatpush1.msra.mxu0 %v1906
    %1951 = vmatprep.subr.mxu0 %v1905
    %1952 = vmatpush1.msra.mxu0 %v1904
    %1953 = vmatprep.subr.mxu0 %v1903
    %1954 = vmatpush1.msra.mxu0 %v1902
    %1955 = vmatprep.subr.mxu0 %v1901
    %1956 = vmatpush1.msra.mxu0 %v1900
    %1957 = vmatprep.subr.mxu0 %v1899
    %1958 = vmatpush1.msra.mxu0 %v1898
    %1959 = vmatprep.subr.mxu0 %v1897
    %1960 = vmatpush1.msra.mxu0 %v1896
    %1961 = vmatprep.subr.mxu0 %v1895
    %1962 = vmatpush1.msra.mxu0 %v1894
    %1963 = vmatprep.subr.mxu0 %v1893
    %1964 = vmatpush1.msra.mxu0 %v1892
    %1965 = vmatprep.subr.mxu0 %v1891
    %1966 = vmatpush1.msra.mxu0 %v1890
    %1967 = vmatprep.subr.mxu0 %v1889
    %1968 = vmatpush1.msra.mxu0 %v1888
    %1969 = vmatprep.subr.mxu0 %v1887
    %1970 = vmatpush1.msra.mxu0 %v1886
    %1971 = vmatprep.subr.mxu0 %v1885
    %1972 = vmatpush1.msra.mxu0 %v1884
    %1973 = vmatprep.subr.mxu0 %v1883
    %1974 = vmatpush1.msra.mxu0 %v1882
    %1975 = vmatprep.subr.mxu0 0.0
    %1976 = vmatpush2.msra.mxu0 0.0
    %1977 = vmatprep.subr.mxu0 0.0
    %1978 = vmatpush2.msra.mxu0 0.0
    %1979 = vmatprep.subr.mxu0 0.0
    %1980 = vmatpush2.msra.mxu0 0.0
    %1981 = vmatprep.subr.mxu0 0.0
    %1982 = vmatpush2.msra.mxu0 0.0
    %1983 = vmatprep.subr.mxu0 0.0
    %1984 = vmatpush2.msra.mxu0 0.0
    %1985 = vmatprep.subr.mxu0 0.0
    %1986 = vmatpush2.msra.mxu0 0.0
    %1987 = vmatprep.subr.mxu0 0.0
    %1988 = vmatpush2.msra.mxu0 0.0
    %1989 = vmatprep.subr.mxu0 0.0
    %1990 = vmatpush2.msra.mxu0 0.0
    %1991 = vmatprep.subr.mxu0 0.0
    %1992 = vmatpush2.msra.mxu0 0.0
    %1993 = vmatprep.subr.mxu0 0.0
    %1994 = vmatpush2.msra.mxu0 0.0
    %1995 = vmatprep.subr.mxu0 0.0
    %1996 = vmatpush2.msra.mxu0 0.0
    %1997 = vmatprep.subr.mxu0 0.0
    %1998 = vmatpush2.msra.mxu0 0.0
    %1999 = vmatprep.subr.mxu0 0.0
    %2000 = vmatpush2.msra.mxu0 0.0
    %2001 = vmatprep.subr.mxu0 0.0
    %2002 = vmatpush2.msra.mxu0 0.0
    %2003 = vmatprep.subr.mxu0 0.0
    %2004 = vmatpush2.msra.mxu0 0.0
    %2005 = vmatprep.subr.mxu0 0.0
    %2006 = vmatpush2.msra.mxu0 0.0
    %2007 = vmatprep.mubr.f32.mxu0 0.0
    %2008 = vmatmul.mubr.f32.gmra.mxu0 %v1922
    %v2009 = vpop.f32.mrf.mxu0
    %v2010 = vadd.f32 0.0, %v2009
    %v2011 = vpop.f32.mrf.mxu0
    %v2012 = vadd.f32 0.0, %v2011
    %2013 = vmatprep.mubr.f32.mxu0 0.0
    %2014 = vmatmul.mubr.f32.gmra.mxu0 %v1931
    %v2015 = vpop.f32.mrf.mxu0
    %v2016 = vadd.f32 0.0, %v2015
    %v2017 = vpop.f32.mrf.mxu0
    %v2018 = vadd.f32 0.0, %v2017
    %2019 = vmatprep.mubr.f32.mxu0 0.0
    %2020 = vmatmul.mubr.f32.gmra.mxu0 %v1939
    %v2021 = vpop.f32.mrf.mxu0
    %v2022 = vadd.f32 0.0, %v2021
    %v2023 = vpop.f32.mrf.mxu0
    %v2024 = vadd.f32 0.0, %v2023
    %2025 = vdwg.mxu0
    %v2026 = vadd.f32 %v1875, %v2010
    %v2027 = vadd.f32 %v1876, %v2012
    %v2028 = vadd.f32 %v1877, %v2016
    %v2029 = vadd.f32 %v1878, %v2018
    %v2030 = vadd.f32 %v1879, %v2022
    %v2031 = vadd.f32 %v1880, %v2024
    %v2032 = vmax.f32 %v2026, %v2027
    %v2033 = vmax.f32 %v2028, %v2029
    %v2034 = vmax.f32 %v2030, %v2031
    %v2035 = vld [vmem:[%s4] sm:$0x1]
    %v2037 = vlaneseq
    %v2038 = vshrl.u32 %v2037, 7
    %v2039 = vsub.s32 0, %v2038
    %v2040 = vrot.slane %v2035, %v2039
    %v2042 = vadd.f32 %v2032, %v2040
    %v2043 = vadd.f32 %v2033, %v2040
    %v2044 = vadd.f32 %v2034, %v2040
    %v2045 = vmax.f32 %v2042, 0.0
    %v2046 = vmax.f32 %v2043, 0.0
    %v2047 = vmax.f32 %v2044, 0.0
    %2048 = vst [vmem:[#allocation3] sm:$0xff] %v2045
    %2049 = vst [vmem:[#allocation3 + $0x8] sm:$0xff] %v2046
    %2050 = vst [vmem:[#allocation3 + $0x10] sm:$0xf] %v2047
    %v2051 = vld [vmem:[#allocation3] ss:$2 sm:$0xff]
    %s2052 = scalar_lea.vmem [#allocation3], 16
    %v2053 = vld [vmem:[%s2052] ss:$2 sm:$0x3]
    %s2054 = scalar_lea.vmem [#allocation3], 1
    %v2055 = vld [vmem:[%s2054] ss:$2 sm:$0xff]
    %s2056 = scalar_lea.vmem [#allocation3], 17
    %v2057 = vld [vmem:[%s2056] ss:$2 sm:$0x3]
    %v2058 = vmax.f32 %v2051, %v2055
    %v2059 = vmax.f32 %v2053, %v2057
    %v2062 = vcombine.high %v2058, %v2058
    %v2064 = vunpack.c.l.s4 1966171168
    %v2065 = vunpack.c.0.s8 %v2064
    %v2066 = vlaneseq
    %v2067 = vshrl.u32 %v2066, 7
    %v2068 = vsub.s32 %v2065, %v2067
    %v2069 = vrot.slane %v2058, %v2068
    %v2071 = vunpack.c.l.s4 1966171168
    %v2072 = vunpack.c.0.s8 %v2071
    %v2073 = vlaneseq
    %v2074 = vshrl.u32 %v2073, 7
    %v2075 = vsub.s32 %v2072, %v2074
    %v2076 = vrot.slane %v2062, %v2075
    %v2077 = vcombine.high %v2069, %v2069
    %v2078 = vcombine.high %v2076, %v2076
    %v2080 = vunpack.c.l.s4 1966171168
    %v2081 = vunpack.c.0.s8 %v2080
    %v2082 = vlaneseq
    %v2083 = vshrl.u32 %v2082, 7
    %v2084 = vsub.s32 %v2081, %v2083
    %v2085 = vrot.slane %v2069, %v2084
    %v2087 = vunpack.c.l.s4 1966171168
    %v2088 = vunpack.c.0.s8 %v2087
    %v2089 = vlaneseq
    %v2090 = vshrl.u32 %v2089, 7
    %v2091 = vsub.s32 %v2088, %v2090
    %v2092 = vrot.slane %v2076, %v2091
    %v2094 = vunpack.c.l.s4 1966171168
    %v2095 = vunpack.c.0.s8 %v2094
    %v2096 = vlaneseq
    %v2097 = vshrl.u32 %v2096, 7
    %v2098 = vsub.s32 %v2095, %v2097
    %v2099 = vrot.slane %v2077, %v2098
    %v2101 = vunpack.c.l.s4 1966171168
    %v2102 = vunpack.c.0.s8 %v2101
    %v2103 = vlaneseq
    %v2104 = vshrl.u32 %v2103, 7
    %v2105 = vsub.s32 %v2102, %v2104
    %v2106 = vrot.slane %v2078, %v2105
    %v2107 = vcombine.high %v2085, %v2085
    %v2108 = vcombine.high %v2092, %v2092
    %v2109 = vcombine.high %v2099, %v2099
    %v2110 = vcombine.high %v2106, %v2106
    %v2112 = vunpack.c.l.s4 1966171168
    %v2113 = vunpack.c.0.s8 %v2112
    %v2114 = vlaneseq
    %v2115 = vshrl.u32 %v2114, 7
    %v2116 = vsub.s32 %v2113, %v2115
    %v2117 = vrot.slane %v2059, %v2116
    %v2118 = vcombine.high %v2117, %v2117
    %v2120 = vunpack.c.l.s4 1966171168
    %v2121 = vunpack.c.0.s8 %v2120
    %v2122 = vlaneseq
    %v2123 = vshrl.u32 %v2122, 7
    %v2124 = vsub.s32 %v2121, %v2123
    %v2125 = vrot.slane %v2117, %v2124
    %v2127 = vunpack.c.l.s4 1966171168
    %v2128 = vunpack.c.0.s8 %v2127
    %v2129 = vlaneseq
    %v2130 = vshrl.u32 %v2129, 7
    %v2131 = vsub.s32 %v2128, %v2130
    %v2132 = vrot.slane %v2118, %v2131
    %v2133 = vld [vmem:[%s5] sm:$0xff]
    %v2134 = vld [vmem:[%s5 + $0x8] sm:$0xff]
    %v2135 = vld [vmem:[%s5 + $0x10] sm:$0xff]
    %v2136 = vld [vmem:[%s5 + $0x18] sm:$0xff]
    %v2137 = vld [vmem:[%s5 + $0x20] sm:$0xff]
    %v2138 = vld [vmem:[%s5 + $0x28] sm:$0xff]
    %v2139 = vld [vmem:[%s5 + $0x30] sm:$0xff]
    %v2140 = vld [vmem:[%s5 + $0x38] sm:$0xff]
    %v2141 = vld [vmem:[%s5 + $0x40] sm:$0xff]
    %v2142 = vld [vmem:[%s5 + $0x48] sm:$0xff]
    %v2143 = vld [vmem:[%s5 + $0x50] sm:$0xff]
    %v2144 = vld [vmem:[%s5 + $0x58] sm:$0xff]
    %v2145 = vld [vmem:[%s5 + $0x60] sm:$0xff]
    %v2146 = vld [vmem:[%s5 + $0x68] sm:$0xff]
    %v2147 = vld [vmem:[%s5 + $0x70] sm:$0xff]
    %v2148 = vld [vmem:[%s5 + $0x78] sm:$0xff]
    %s2149 = scalar_lea.vmem %s5, 128
    %v2150 = vld [vmem:[%s2149] sm:$0xff]
    %v2151 = vld [vmem:[%s2149 + $0x8] sm:$0xff]
    %v2152 = vld [vmem:[%s2149 + $0x10] sm:$0xff]
    %v2153 = vld [vmem:[%s2149 + $0x18] sm:$0xff]
    %v2154 = vld [vmem:[%s2149 + $0x20] sm:$0xff]
    %v2155 = vld [vmem:[%s2149 + $0x28] sm:$0xff]
    %v2156 = vld [vmem:[%s2149 + $0x30] sm:$0xff]
    %v2157 = vld [vmem:[%s2149 + $0x38] sm:$0xff]
    %v2158 = vld [vmem:[%s2149 + $0x40] sm:$0xff]
    %v2159 = vld [vmem:[%s2149 + $0x48] sm:$0xff]
    %v2160 = vld [vmem:[%s2149 + $0x50] sm:$0xff]
    %v2161 = vld [vmem:[%s2149 + $0x58] sm:$0xff]
    %v2162 = vld [vmem:[%s2149 + $0x60] sm:$0xff]
    %v2163 = vld [vmem:[%s2149 + $0x68] sm:$0xff]
    %v2164 = vld [vmem:[%s2149 + $0x70] sm:$0xff]
    %v2165 = vld [vmem:[%s2149 + $0x78] sm:$0xff]
    %v2166 = vcombine.low %v2099, %v2108
    %v2168 = vunpack.c.l.s4 1966171168
    %v2169 = vunpack.c.0.s8 %v2168
    %v2170 = vlaneseq
    %v2171 = vshrl.u32 %v2170, 7
    %v2172 = vsub.s32 %v2169, %v2171
    %v2173 = vrot.slane %v2166, %v2172
    %v2175 = vunpack.c.l.s4 1966171168
    %v2176 = vunpack.c.0.s8 %v2175
    %v2177 = vlaneseq
    %v2178 = vshrl.u32 %v2177, 7
    %v2179 = vsub.s32 %v2176, %v2178
    %v2180 = vrot.slane %v2173, %v2179
    %2182 = vmatprep.subr.mxu0 0.0
    %2183 = vmatpush1.msra.mxu0 %v2165
    %2184 = vmatprep.subr.mxu0 0.0
    %2185 = vmatpush1.msra.mxu0 %v2164
    %2186 = vmatprep.subr.mxu0 0.0
    %2187 = vmatpush1.msra.mxu0 %v2163
    %2188 = vmatprep.subr.mxu0 0.0
    %2189 = vmatpush1.msra.mxu0 %v2162
    %2190 = vmatprep.subr.mxu0 0.0
    %2191 = vmatpush1.msra.mxu0 %v2161
    %2192 = vmatprep.subr.mxu0 0.0
    %2193 = vmatpush1.msra.mxu0 %v2160
    %2194 = vmatprep.subr.mxu0 0.0
    %2195 = vmatpush1.msra.mxu0 %v2159
    %2196 = vmatprep.subr.mxu0 0.0
    %2197 = vmatpush1.msra.mxu0 %v2158
    %2198 = vmatprep.subr.mxu0 0.0
    %2199 = vmatpush1.msra.mxu0 %v2157
    %2200 = vmatprep.subr.mxu0 0.0
    %2201 = vmatpush1.msra.mxu0 %v2156
    %2202 = vmatprep.subr.mxu0 0.0
    %2203 = vmatpush1.msra.mxu0 %v2155
    %2204 = vmatprep.subr.mxu0 0.0
    %2205 = vmatpush1.msra.mxu0 %v2154
    %2206 = vmatprep.subr.mxu0 0.0
    %2207 = vmatpush1.msra.mxu0 %v2153
    %2208 = vmatprep.subr.mxu0 0.0
    %2209 = vmatpush1.msra.mxu0 %v2152
    %2210 = vmatprep.subr.mxu0 0.0
    %2211 = vmatpush1.msra.mxu0 %v2151
    %2212 = vmatprep.subr.mxu0 0.0
    %2213 = vmatpush1.msra.mxu0 %v2150
    %2214 = vmatprep.subr.mxu0 0.0
    %2215 = vmatpush2.msra.mxu0 0.0
    %2216 = vmatprep.subr.mxu0 0.0
    %2217 = vmatpush2.msra.mxu0 0.0
    %2218 = vmatprep.subr.mxu0 0.0
    %2219 = vmatpush2.msra.mxu0 0.0
    %2220 = vmatprep.subr.mxu0 0.0
    %2221 = vmatpush2.msra.mxu0 0.0
    %2222 = vmatprep.subr.mxu0 0.0
    %2223 = vmatpush2.msra.mxu0 0.0
    %2224 = vmatprep.subr.mxu0 0.0
    %2225 = vmatpush2.msra.mxu0 0.0
    %2226 = vmatprep.subr.mxu0 0.0
    %2227 = vmatpush2.msra.mxu0 0.0
    %2228 = vmatprep.subr.mxu0 0.0
    %2229 = vmatpush2.msra.mxu0 0.0
    %2230 = vmatprep.subr.mxu0 0.0
    %2231 = vmatpush2.msra.mxu0 0.0
    %2232 = vmatprep.subr.mxu0 0.0
    %2233 = vmatpush2.msra.mxu0 0.0
    %2234 = vmatprep.subr.mxu0 0.0
    %2235 = vmatpush2.msra.mxu0 0.0
    %2236 = vmatprep.subr.mxu0 0.0
    %2237 = vmatpush2.msra.mxu0 0.0
    %2238 = vmatprep.subr.mxu0 0.0
    %2239 = vmatpush2.msra.mxu0 0.0
    %2240 = vmatprep.subr.mxu0 0.0
    %2241 = vmatpush2.msra.mxu0 0.0
    %2242 = vmatprep.subr.mxu0 0.0
    %2243 = vmatpush2.msra.mxu0 0.0
    %2244 = vmatprep.subr.mxu0 0.0
    %2245 = vmatpush2.msra.mxu0 0.0
    %2246 = vmatprep.mubr.f32.mxu0 0.0
    %2247 = vmatmul.mubr.f32.gmra.mxu0 %v2180
    %v2248 = vpop.f32.mrf.mxu0
    %v2249 = vadd.f32 0.0, %v2248
    %v2250 = vpop.f32.mrf.mxu0
    %2251 = vdwg.mxu0
    %v2252 = vcombine.low %v2085, %v2106
    %v2254 = vunpack.c.l.s4 1966171168
    %v2255 = vunpack.c.0.s8 %v2254
    %v2256 = vlaneseq
    %v2257 = vshrl.u32 %v2256, 7
    %v2258 = vsub.s32 %v2255, %v2257
    %v2259 = vrot.slane %v2252, %v2258
    %v2261 = vunpack.c.l.s4 1966171168
    %v2262 = vunpack.c.0.s8 %v2261
    %v2263 = vlaneseq
    %v2264 = vshrl.u32 %v2263, 7
    %v2265 = vsub.s32 %v2262, %v2264
    %v2266 = vrot.slane %v2259, %v2265
    %2268 = vmatprep.subr.mxu0 0.0
    %2269 = vmatpush1.msra.mxu0 %v2148
    %2270 = vmatprep.subr.mxu0 0.0
    %2271 = vmatpush1.msra.mxu0 %v2147
    %2272 = vmatprep.subr.mxu0 0.0
    %2273 = vmatpush1.msra.mxu0 %v2146
    %2274 = vmatprep.subr.mxu0 0.0
    %2275 = vmatpush1.msra.mxu0 %v2145
    %2276 = vmatprep.subr.mxu0 0.0
    %2277 = vmatpush1.msra.mxu0 %v2144
    %2278 = vmatprep.subr.mxu0 0.0
    %2279 = vmatpush1.msra.mxu0 %v2143
    %2280 = vmatprep.subr.mxu0 0.0
    %2281 = vmatpush1.msra.mxu0 %v2142
    %2282 = vmatprep.subr.mxu0 0.0
    %2283 = vmatpush1.msra.mxu0 %v2141
    %2284 = vmatprep.subr.mxu0 0.0
    %2285 = vmatpush1.msra.mxu0 %v2140
    %2286 = vmatprep.subr.mxu0 0.0
    %2287 = vmatpush1.msra.mxu0 %v2139
    %2288 = vmatprep.subr.mxu0 0.0
    %2289 = vmatpush1.msra.mxu0 %v2138
    %2290 = vmatprep.subr.mxu0 0.0
    %2291 = vmatpush1.msra.mxu0 %v2137
    %2292 = vmatprep.subr.mxu0 0.0
    %2293 = vmatpush1.msra.mxu0 %v2136
    %2294 = vmatprep.subr.mxu0 0.0
    %2295 = vmatpush1.msra.mxu0 %v2135
    %2296 = vmatprep.subr.mxu0 0.0
    %2297 = vmatpush1.msra.mxu0 %v2134
    %2298 = vmatprep.subr.mxu0 0.0
    %2299 = vmatpush1.msra.mxu0 %v2133
    %2300 = vmatprep.subr.mxu0 0.0
    %2301 = vmatpush2.msra.mxu0 0.0
    %2302 = vmatprep.subr.mxu0 0.0
    %2303 = vmatpush2.msra.mxu0 0.0
    %2304 = vmatprep.subr.mxu0 0.0
    %2305 = vmatpush2.msra.mxu0 0.0
    %2306 = vmatprep.subr.mxu0 0.0
    %2307 = vmatpush2.msra.mxu0 0.0
    %2308 = vmatprep.subr.mxu0 0.0
    %2309 = vmatpush2.msra.mxu0 0.0
    %2310 = vmatprep.subr.mxu0 0.0
    %2311 = vmatpush2.msra.mxu0 0.0
    %2312 = vmatprep.subr.mxu0 0.0
    %2313 = vmatpush2.msra.mxu0 0.0
    %2314 = vmatprep.subr.mxu0 0.0
    %2315 = vmatpush2.msra.mxu0 0.0
    %2316 = vmatprep.subr.mxu0 0.0
    %2317 = vmatpush2.msra.mxu0 0.0
    %2318 = vmatprep.subr.mxu0 0.0
    %2319 = vmatpush2.msra.mxu0 0.0
    %2320 = vmatprep.subr.mxu0 0.0
    %2321 = vmatpush2.msra.mxu0 0.0
    %2322 = vmatprep.subr.mxu0 0.0
    %2323 = vmatpush2.msra.mxu0 0.0
    %2324 = vmatprep.subr.mxu0 0.0
    %2325 = vmatpush2.msra.mxu0 0.0
    %2326 = vmatprep.subr.mxu0 0.0
    %2327 = vmatpush2.msra.mxu0 0.0
    %2328 = vmatprep.subr.mxu0 0.0
    %2329 = vmatpush2.msra.mxu0 0.0
    %2330 = vmatprep.subr.mxu0 0.0
    %2331 = vmatpush2.msra.mxu0 0.0
    %2332 = vmatprep.mubr.f32.mxu0 0.0
    %2333 = vmatmul.mubr.f32.gmra.mxu0 %v2266
    %v2334 = vpop.f32.mrf.mxu0
    %v2335 = vadd.f32 %v2249, %v2334
    %v2336 = vpop.f32.mrf.mxu0
    %2337 = vdwg.mxu0
    %s2338 = scalar_lea.vmem %s5, 256
    %v2339 = vld [vmem:[%s2338] sm:$0xff]
    %v2340 = vld [vmem:[%s2338 + $0x8] sm:$0xff]
    %v2341 = vld [vmem:[%s2338 + $0x10] sm:$0xff]
    %v2342 = vld [vmem:[%s2338 + $0x18] sm:$0xff]
    %v2343 = vld [vmem:[%s2338 + $0x20] sm:$0xff]
    %v2344 = vld [vmem:[%s2338 + $0x28] sm:$0xff]
    %v2345 = vld [vmem:[%s2338 + $0x30] sm:$0xff]
    %v2346 = vld [vmem:[%s2338 + $0x38] sm:$0xff]
    %v2347 = vld [vmem:[%s2338 + $0x40] sm:$0xff]
    %v2348 = vld [vmem:[%s2338 + $0x48] sm:$0xff]
    %v2349 = vld [vmem:[%s2338 + $0x50] sm:$0xff]
    %v2350 = vld [vmem:[%s2338 + $0x58] sm:$0xff]
    %v2351 = vld [vmem:[%s2338 + $0x60] sm:$0xff]
    %v2352 = vld [vmem:[%s2338 + $0x68] sm:$0xff]
    %v2353 = vld [vmem:[%s2338 + $0x70] sm:$0xff]
    %v2354 = vld [vmem:[%s2338 + $0x78] sm:$0xff]
    %v2355 = vcombine.low %v2107, %v2110
    %v2357 = vunpack.c.l.s4 1966171168
    %v2358 = vunpack.c.0.s8 %v2357
    %v2359 = vlaneseq
    %v2360 = vshrl.u32 %v2359, 7
    %v2361 = vsub.s32 %v2358, %v2360
    %v2362 = vrot.slane %v2355, %v2361
    %v2364 = vunpack.c.l.s4 1966171168
    %v2365 = vunpack.c.0.s8 %v2364
    %v2366 = vlaneseq
    %v2367 = vshrl.u32 %v2366, 7
    %v2368 = vsub.s32 %v2365, %v2367
    %v2369 = vrot.slane %v2362, %v2368
    %2371 = vmatprep.subr.mxu0 0.0
    %2372 = vmatpush1.msra.mxu0 %v2354
    %2373 = vmatprep.subr.mxu0 0.0
    %2374 = vmatpush1.msra.mxu0 %v2353
    %2375 = vmatprep.subr.mxu0 0.0
    %2376 = vmatpush1.msra.mxu0 %v2352
    %2377 = vmatprep.subr.mxu0 0.0
    %2378 = vmatpush1.msra.mxu0 %v2351
    %2379 = vmatprep.subr.mxu0 0.0
    %2380 = vmatpush1.msra.mxu0 %v2350
    %2381 = vmatprep.subr.mxu0 0.0
    %2382 = vmatpush1.msra.mxu0 %v2349
    %2383 = vmatprep.subr.mxu0 0.0
    %2384 = vmatpush1.msra.mxu0 %v2348
    %2385 = vmatprep.subr.mxu0 0.0
    %2386 = vmatpush1.msra.mxu0 %v2347
    %2387 = vmatprep.subr.mxu0 0.0
    %2388 = vmatpush1.msra.mxu0 %v2346
    %2389 = vmatprep.subr.mxu0 0.0
    %2390 = vmatpush1.msra.mxu0 %v2345
    %2391 = vmatprep.subr.mxu0 0.0
    %2392 = vmatpush1.msra.mxu0 %v2344
    %2393 = vmatprep.subr.mxu0 0.0
    %2394 = vmatpush1.msra.mxu0 %v2343
    %2395 = vmatprep.subr.mxu0 0.0
    %2396 = vmatpush1.msra.mxu0 %v2342
    %2397 = vmatprep.subr.mxu0 0.0
    %2398 = vmatpush1.msra.mxu0 %v2341
    %2399 = vmatprep.subr.mxu0 0.0
    %2400 = vmatpush1.msra.mxu0 %v2340
    %2401 = vmatprep.subr.mxu0 0.0
    %2402 = vmatpush1.msra.mxu0 %v2339
    %2403 = vmatprep.subr.mxu0 0.0
    %2404 = vmatpush2.msra.mxu0 0.0
    %2405 = vmatprep.subr.mxu0 0.0
    %2406 = vmatpush2.msra.mxu0 0.0
    %2407 = vmatprep.subr.mxu0 0.0
    %2408 = vmatpush2.msra.mxu0 0.0
    %2409 = vmatprep.subr.mxu0 0.0
    %2410 = vmatpush2.msra.mxu0 0.0
    %2411 = vmatprep.subr.mxu0 0.0
    %2412 = vmatpush2.msra.mxu0 0.0
    %2413 = vmatprep.subr.mxu0 0.0
    %2414 = vmatpush2.msra.mxu0 0.0
    %2415 = vmatprep.subr.mxu0 0.0
    %2416 = vmatpush2.msra.mxu0 0.0
    %2417 = vmatprep.subr.mxu0 0.0
    %2418 = vmatpush2.msra.mxu0 0.0
    %2419 = vmatprep.subr.mxu0 0.0
    %2420 = vmatpush2.msra.mxu0 0.0
    %2421 = vmatprep.subr.mxu0 0.0
    %2422 = vmatpush2.msra.mxu0 0.0
    %2423 = vmatprep.subr.mxu0 0.0
    %2424 = vmatpush2.msra.mxu0 0.0
    %2425 = vmatprep.subr.mxu0 0.0
    %2426 = vmatpush2.msra.mxu0 0.0
    %2427 = vmatprep.subr.mxu0 0.0
    %2428 = vmatpush2.msra.mxu0 0.0
    %2429 = vmatprep.subr.mxu0 0.0
    %2430 = vmatpush2.msra.mxu0 0.0
    %2431 = vmatprep.subr.mxu0 0.0
    %2432 = vmatpush2.msra.mxu0 0.0
    %2433 = vmatprep.subr.mxu0 0.0
    %2434 = vmatpush2.msra.mxu0 0.0
    %2435 = vmatprep.mubr.f32.mxu0 0.0
    %2436 = vmatmul.mubr.f32.gmra.mxu0 %v2369
    %v2437 = vpop.f32.mrf.mxu0
    %v2438 = vadd.f32 0.0, %v2437
    %v2439 = vpop.f32.mrf.mxu0
    %2440 = vdwg.mxu0
    %v2441 = vadd.f32 %v2335, %v2438
    %s2442 = scalar_lea.vmem %s5, 384
    %v2443 = vld [vmem:[%s2442] sm:$0xff]
    %v2444 = vld [vmem:[%s2442 + $0x8] sm:$0xff]
    %v2445 = vld [vmem:[%s2442 + $0x10] sm:$0xff]
    %v2446 = vld [vmem:[%s2442 + $0x18] sm:$0xff]
    %v2447 = vld [vmem:[%s2442 + $0x20] sm:$0xff]
    %v2448 = vld [vmem:[%s2442 + $0x28] sm:$0xff]
    %v2449 = vld [vmem:[%s2442 + $0x30] sm:$0xff]
    %v2450 = vld [vmem:[%s2442 + $0x38] sm:$0xff]
    %v2451 = vld [vmem:[%s2442 + $0x40] sm:$0xff]
    %v2452 = vld [vmem:[%s2442 + $0x48] sm:$0xff]
    %v2453 = vld [vmem:[%s2442 + $0x50] sm:$0xff]
    %v2454 = vld [vmem:[%s2442 + $0x58] sm:$0xff]
    %v2455 = vld [vmem:[%s2442 + $0x60] sm:$0xff]
    %v2456 = vld [vmem:[%s2442 + $0x68] sm:$0xff]
    %v2457 = vld [vmem:[%s2442 + $0x70] sm:$0xff]
    %v2458 = vld [vmem:[%s2442 + $0x78] sm:$0xff]
    %v2459 = vcombine.low %v2109, %v2125
    %v2461 = vunpack.c.l.s4 1966171168
    %v2462 = vunpack.c.0.s8 %v2461
    %v2463 = vlaneseq
    %v2464 = vshrl.u32 %v2463, 7
    %v2465 = vsub.s32 %v2462, %v2464
    %v2466 = vrot.slane %v2459, %v2465
    %v2468 = vunpack.c.l.s4 1966171168
    %v2469 = vunpack.c.0.s8 %v2468
    %v2470 = vlaneseq
    %v2471 = vshrl.u32 %v2470, 7
    %v2472 = vsub.s32 %v2469, %v2471
    %v2473 = vrot.slane %v2466, %v2472
    %2475 = vmatprep.subr.mxu0 0.0
    %2476 = vmatpush1.msra.mxu0 %v2458
    %2477 = vmatprep.subr.mxu0 0.0
    %2478 = vmatpush1.msra.mxu0 %v2457
    %2479 = vmatprep.subr.mxu0 0.0
    %2480 = vmatpush1.msra.mxu0 %v2456
    %2481 = vmatprep.subr.mxu0 0.0
    %2482 = vmatpush1.msra.mxu0 %v2455
    %2483 = vmatprep.subr.mxu0 0.0
    %2484 = vmatpush1.msra.mxu0 %v2454
    %2485 = vmatprep.subr.mxu0 0.0
    %2486 = vmatpush1.msra.mxu0 %v2453
    %2487 = vmatprep.subr.mxu0 0.0
    %2488 = vmatpush1.msra.mxu0 %v2452
    %2489 = vmatprep.subr.mxu0 0.0
    %2490 = vmatpush1.msra.mxu0 %v2451
    %2491 = vmatprep.subr.mxu0 0.0
    %2492 = vmatpush1.msra.mxu0 %v2450
    %2493 = vmatprep.subr.mxu0 0.0
    %2494 = vmatpush1.msra.mxu0 %v2449
    %2495 = vmatprep.subr.mxu0 0.0
    %2496 = vmatpush1.msra.mxu0 %v2448
    %2497 = vmatprep.subr.mxu0 0.0
    %2498 = vmatpush1.msra.mxu0 %v2447
    %2499 = vmatprep.subr.mxu0 0.0
    %2500 = vmatpush1.msra.mxu0 %v2446
    %2501 = vmatprep.subr.mxu0 0.0
    %2502 = vmatpush1.msra.mxu0 %v2445
    %2503 = vmatprep.subr.mxu0 0.0
    %2504 = vmatpush1.msra.mxu0 %v2444
    %2505 = vmatprep.subr.mxu0 0.0
    %2506 = vmatpush1.msra.mxu0 %v2443
    %2507 = vmatprep.subr.mxu0 0.0
    %2508 = vmatpush2.msra.mxu0 0.0
    %2509 = vmatprep.subr.mxu0 0.0
    %2510 = vmatpush2.msra.mxu0 0.0
    %2511 = vmatprep.subr.mxu0 0.0
    %2512 = vmatpush2.msra.mxu0 0.0
    %2513 = vmatprep.subr.mxu0 0.0
    %2514 = vmatpush2.msra.mxu0 0.0
    %2515 = vmatprep.subr.mxu0 0.0
    %2516 = vmatpush2.msra.mxu0 0.0
    %2517 = vmatprep.subr.mxu0 0.0
    %2518 = vmatpush2.msra.mxu0 0.0
    %2519 = vmatprep.subr.mxu0 0.0
    %2520 = vmatpush2.msra.mxu0 0.0
    %2521 = vmatprep.subr.mxu0 0.0
    %2522 = vmatpush2.msra.mxu0 0.0
    %2523 = vmatprep.subr.mxu0 0.0
    %2524 = vmatpush2.msra.mxu0 0.0
    %2525 = vmatprep.subr.mxu0 0.0
    %2526 = vmatpush2.msra.mxu0 0.0
    %2527 = vmatprep.subr.mxu0 0.0
    %2528 = vmatpush2.msra.mxu0 0.0
    %2529 = vmatprep.subr.mxu0 0.0
    %2530 = vmatpush2.msra.mxu0 0.0
    %2531 = vmatprep.subr.mxu0 0.0
    %2532 = vmatpush2.msra.mxu0 0.0
    %2533 = vmatprep.subr.mxu0 0.0
    %2534 = vmatpush2.msra.mxu0 0.0
    %2535 = vmatprep.subr.mxu0 0.0
    %2536 = vmatpush2.msra.mxu0 0.0
    %2537 = vmatprep.subr.mxu0 0.0
    %2538 = vmatpush2.msra.mxu0 0.0
    %2539 = vmatprep.mubr.f32.mxu0 0.0
    %2540 = vmatmul.mubr.f32.gmra.mxu0 %v2473
    %v2541 = vpop.f32.mrf.mxu0
    %v2542 = vadd.f32 0.0, %v2541
    %v2543 = vpop.f32.mrf.mxu0
    %2544 = vdwg.mxu0
    %v2545 = vadd.f32 %v2441, %v2542
    %s2546 = scalar_lea.vmem %s5, 512
    %v2547 = vld [vmem:[%s2546] sm:$0xff]
    %v2548 = vld [vmem:[%s2546 + $0x8] sm:$0xff]
    %v2549 = vld [vmem:[%s2546 + $0x10] sm:$0xff]
    %v2550 = vld [vmem:[%s2546 + $0x18] sm:$0xff]
    %v2551 = vld [vmem:[%s2546 + $0x20] sm:$0xff]
    %v2552 = vld [vmem:[%s2546 + $0x28] sm:$0xff]
    %v2553 = vld [vmem:[%s2546 + $0x30] sm:$0xff]
    %v2554 = vld [vmem:[%s2546 + $0x38] sm:$0xff]
    %v2555 = vld [vmem:[%s2546 + $0x40] sm:$0xff]
    %v2556 = vld [vmem:[%s2546 + $0x48] sm:$0xff]
    %v2557 = vld [vmem:[%s2546 + $0x50] sm:$0xff]
    %v2558 = vld [vmem:[%s2546 + $0x58] sm:$0xff]
    %v2559 = vld [vmem:[%s2546 + $0x60] sm:$0xff]
    %v2560 = vld [vmem:[%s2546 + $0x68] sm:$0xff]
    %v2561 = vld [vmem:[%s2546 + $0x70] sm:$0xff]
    %v2562 = vld [vmem:[%s2546 + $0x78] sm:$0xff]
    %v2563 = vcombine.low %v2092, %v2132
    %v2565 = vunpack.c.l.s4 1966171168
    %v2566 = vunpack.c.0.s8 %v2565
    %v2567 = vlaneseq
    %v2568 = vshrl.u32 %v2567, 7
    %v2569 = vsub.s32 %v2566, %v2568
    %v2570 = vrot.slane %v2563, %v2569
    %v2572 = vunpack.c.l.s4 1966171168
    %v2573 = vunpack.c.0.s8 %v2572
    %v2574 = vlaneseq
    %v2575 = vshrl.u32 %v2574, 7
    %v2576 = vsub.s32 %v2573, %v2575
    %v2577 = vrot.slane %v2570, %v2576
    %2579 = vmatprep.subr.mxu0 0.0
    %2580 = vmatpush1.msra.mxu0 %v2562
    %2581 = vmatprep.subr.mxu0 0.0
    %2582 = vmatpush1.msra.mxu0 %v2561
    %2583 = vmatprep.subr.mxu0 0.0
    %2584 = vmatpush1.msra.mxu0 %v2560
    %2585 = vmatprep.subr.mxu0 0.0
    %2586 = vmatpush1.msra.mxu0 %v2559
    %2587 = vmatprep.subr.mxu0 0.0
    %2588 = vmatpush1.msra.mxu0 %v2558
    %2589 = vmatprep.subr.mxu0 0.0
    %2590 = vmatpush1.msra.mxu0 %v2557
    %2591 = vmatprep.subr.mxu0 0.0
    %2592 = vmatpush1.msra.mxu0 %v2556
    %2593 = vmatprep.subr.mxu0 0.0
    %2594 = vmatpush1.msra.mxu0 %v2555
    %2595 = vmatprep.subr.mxu0 0.0
    %2596 = vmatpush1.msra.mxu0 %v2554
    %2597 = vmatprep.subr.mxu0 0.0
    %2598 = vmatpush1.msra.mxu0 %v2553
    %2599 = vmatprep.subr.mxu0 0.0
    %2600 = vmatpush1.msra.mxu0 %v2552
    %2601 = vmatprep.subr.mxu0 0.0
    %2602 = vmatpush1.msra.mxu0 %v2551
    %2603 = vmatprep.subr.mxu0 0.0
    %2604 = vmatpush1.msra.mxu0 %v2550
    %2605 = vmatprep.subr.mxu0 0.0
    %2606 = vmatpush1.msra.mxu0 %v2549
    %2607 = vmatprep.subr.mxu0 0.0
    %2608 = vmatpush1.msra.mxu0 %v2548
    %2609 = vmatprep.subr.mxu0 0.0
    %2610 = vmatpush1.msra.mxu0 %v2547
    %2611 = vmatprep.subr.mxu0 0.0
    %2612 = vmatpush2.msra.mxu0 0.0
    %2613 = vmatprep.subr.mxu0 0.0
    %2614 = vmatpush2.msra.mxu0 0.0
    %2615 = vmatprep.subr.mxu0 0.0
    %2616 = vmatpush2.msra.mxu0 0.0
    %2617 = vmatprep.subr.mxu0 0.0
    %2618 = vmatpush2.msra.mxu0 0.0
    %2619 = vmatprep.subr.mxu0 0.0
    %2620 = vmatpush2.msra.mxu0 0.0
    %2621 = vmatprep.subr.mxu0 0.0
    %2622 = vmatpush2.msra.mxu0 0.0
    %2623 = vmatprep.subr.mxu0 0.0
    %2624 = vmatpush2.msra.mxu0 0.0
    %2625 = vmatprep.subr.mxu0 0.0
    %2626 = vmatpush2.msra.mxu0 0.0
    %2627 = vmatprep.subr.mxu0 0.0
    %2628 = vmatpush2.msra.mxu0 0.0
    %2629 = vmatprep.subr.mxu0 0.0
    %2630 = vmatpush2.msra.mxu0 0.0
    %2631 = vmatprep.subr.mxu0 0.0
    %2632 = vmatpush2.msra.mxu0 0.0
    %2633 = vmatprep.subr.mxu0 0.0
    %2634 = vmatpush2.msra.mxu0 0.0
    %2635 = vmatprep.subr.mxu0 0.0
    %2636 = vmatpush2.msra.mxu0 0.0
    %2637 = vmatprep.subr.mxu0 0.0
    %2638 = vmatpush2.msra.mxu0 0.0
    %2639 = vmatprep.subr.mxu0 0.0
    %2640 = vmatpush2.msra.mxu0 0.0
    %2641 = vmatprep.subr.mxu0 0.0
    %2642 = vmatpush2.msra.mxu0 0.0
    %2643 = vmatprep.mubr.f32.mxu0 0.0
    %2644 = vmatmul.mubr.f32.gmra.mxu0 %v2577
    %v2645 = vpop.f32.mrf.mxu0
    %v2646 = vadd.f32 0.0, %v2645
    %v2647 = vpop.f32.mrf.mxu0
    %2648 = vdwg.mxu0
    %v2649 = vadd.f32 %v2545, %v2646
    %v2650 = vld [vmem:[%s6] sm:$0x1]
    %v2652 = vlaneseq
    %v2653 = vshrl.u32 %v2652, 7
    %v2654 = vsub.s32 0, %v2653
    %v2655 = vrot.slane %v2650, %v2654
    %v2657 = vadd.f32 %v2649, %v2655
    %v2658 = vmax.f32 %v2657, 0.0
    %v2659 = vld [vmem:[#allocation9] sm:$0xff]
    %v2660 = vld [vmem:[#allocation9 + $0x8] sm:$0xff]
    %v2661 = vld [vmem:[#allocation9 + $0x10] sm:$0xff]
    %v2662 = vld [vmem:[#allocation9 + $0x18] sm:$0xff]
    %v2663 = vld [vmem:[#allocation9 + $0x20] sm:$0xff]
    %v2664 = vld [vmem:[#allocation9 + $0x28] sm:$0xff]
    %v2665 = vld [vmem:[#allocation9 + $0x30] sm:$0xff]
    %v2666 = vld [vmem:[#allocation9 + $0x38] sm:$0xff]
    %v2667 = vld [vmem:[#allocation9 + $0x40] sm:$0xff]
    %v2668 = vld [vmem:[#allocation9 + $0x48] sm:$0xff]
    %v2669 = vld [vmem:[#allocation9 + $0x50] sm:$0xff]
    %v2670 = vld [vmem:[#allocation9 + $0x58] sm:$0xff]
    %v2671 = vld [vmem:[#allocation9 + $0x60] sm:$0xff]
    %v2672 = vld [vmem:[#allocation9 + $0x68] sm:$0xff]
    %v2673 = vld [vmem:[#allocation9 + $0x70] sm:$0xff]
    %v2674 = vld [vmem:[#allocation9 + $0x78] sm:$0xff]
    %v2675 = vld [vmem:[%s8] sm:$0x1]
    %v2677 = vlaneseq
    %v2678 = vshrl.u32 %v2677, 7
    %v2679 = vsub.s32 0, %v2678
    %v2680 = vrot.slane %v2675, %v2679
    %2682 = vmatprep.subr.mxu0 0.0
    %2683 = vmatpush1.msra.mxu0 %v2674
    %2684 = vmatprep.subr.mxu0 0.0
    %2685 = vmatpush1.msra.mxu0 %v2673
    %2686 = vmatprep.subr.mxu0 0.0
    %2687 = vmatpush1.msra.mxu0 %v2672
    %2688 = vmatprep.subr.mxu0 0.0
    %2689 = vmatpush1.msra.mxu0 %v2671
    %2690 = vmatprep.subr.mxu0 0.0
    %2691 = vmatpush1.msra.mxu0 %v2670
    %2692 = vmatprep.subr.mxu0 0.0
    %2693 = vmatpush1.msra.mxu0 %v2669
    %2694 = vmatprep.subr.mxu0 0.0
    %2695 = vmatpush1.msra.mxu0 %v2668
    %2696 = vmatprep.subr.mxu0 0.0
    %2697 = vmatpush1.msra.mxu0 %v2667
    %2698 = vmatprep.subr.mxu0 0.0
    %2699 = vmatpush1.msra.mxu0 %v2666
    %2700 = vmatprep.subr.mxu0 0.0
    %2701 = vmatpush1.msra.mxu0 %v2665
    %2702 = vmatprep.subr.mxu0 0.0
    %2703 = vmatpush1.msra.mxu0 %v2664
    %2704 = vmatprep.subr.mxu0 0.0
    %2705 = vmatpush1.msra.mxu0 %v2663
    %2706 = vmatprep.subr.mxu0 0.0
    %2707 = vmatpush1.msra.mxu0 %v2662
    %2708 = vmatprep.subr.mxu0 0.0
    %2709 = vmatpush1.msra.mxu0 %v2661
    %2710 = vmatprep.subr.mxu0 0.0
    %2711 = vmatpush1.msra.mxu0 %v2660
    %2712 = vmatprep.subr.mxu0 0.0
    %2713 = vmatpush1.msra.mxu0 %v2659
    %2714 = vmatprep.subr.mxu0 0.0
    %2715 = vmatpush2.msra.mxu0 0.0
    %2716 = vmatprep.subr.mxu0 0.0
    %2717 = vmatpush2.msra.mxu0 0.0
    %2718 = vmatprep.subr.mxu0 0.0
    %2719 = vmatpush2.msra.mxu0 0.0
    %2720 = vmatprep.subr.mxu0 0.0
    %2721 = vmatpush2.msra.mxu0 0.0
    %2722 = vmatprep.subr.mxu0 0.0
    %2723 = vmatpush2.msra.mxu0 0.0
    %2724 = vmatprep.subr.mxu0 0.0
    %2725 = vmatpush2.msra.mxu0 0.0
    %2726 = vmatprep.subr.mxu0 0.0
    %2727 = vmatpush2.msra.mxu0 0.0
    %2728 = vmatprep.subr.mxu0 0.0
    %2729 = vmatpush2.msra.mxu0 0.0
    %2730 = vmatprep.subr.mxu0 0.0
    %2731 = vmatpush2.msra.mxu0 0.0
    %2732 = vmatprep.subr.mxu0 0.0
    %2733 = vmatpush2.msra.mxu0 0.0
    %2734 = vmatprep.subr.mxu0 0.0
    %2735 = vmatpush2.msra.mxu0 0.0
    %2736 = vmatprep.subr.mxu0 0.0
    %2737 = vmatpush2.msra.mxu0 0.0
    %2738 = vmatprep.subr.mxu0 0.0
    %2739 = vmatpush2.msra.mxu0 0.0
    %2740 = vmatprep.subr.mxu0 0.0
    %2741 = vmatpush2.msra.mxu0 0.0
    %2742 = vmatprep.subr.mxu0 0.0
    %2743 = vmatpush2.msra.mxu0 0.0
    %2744 = vmatprep.subr.mxu0 0.0
    %2745 = vmatpush2.msra.mxu0 0.0
    %2746 = vmatprep.mubr.f32.mxu0 0.0
    %2747 = vmatmul.mubr.f32.gmra.mxu0 %v2658
    %v2748 = vpop.f32.mrf.mxu0
    %v2749 = vadd.f32 %v2680, %v2748
    %v2750 = vpop.f32.mrf.mxu0
    %2751 = vdwg.mxu0
    %v2752 = vmax.f32 %v2749, 0.0
    %v2753 = vld [vmem:[#allocation10] sm:$0xff]
    %v2754 = vld [vmem:[#allocation10 + $0x8] sm:$0xff]
    %v2755 = vld [vmem:[#allocation10 + $0x10] sm:$0xff]
    %v2756 = vld [vmem:[#allocation10 + $0x18] sm:$0xff]
    %v2757 = vld [vmem:[#allocation10 + $0x20] sm:$0xff]
    %v2758 = vld [vmem:[#allocation10 + $0x28] sm:$0xff]
    %v2759 = vld [vmem:[#allocation10 + $0x30] sm:$0xff]
    %v2760 = vld [vmem:[#allocation10 + $0x38] sm:$0xff]
    %v2761 = vld [vmem:[#allocation10 + $0x40] sm:$0xff]
    %v2762 = vld [vmem:[#allocation10 + $0x48] sm:$0xff]
    %v2763 = vld [vmem:[#allocation10 + $0x50] sm:$0xff]
    %v2764 = vld [vmem:[#allocation10 + $0x58] sm:$0xff]
    %v2765 = vld [vmem:[#allocation10 + $0x60] sm:$0xff]
    %v2766 = vld [vmem:[#allocation10 + $0x68] sm:$0xff]
    %v2767 = vld [vmem:[#allocation10 + $0x70] sm:$0xff]
    %v2768 = vld [vmem:[#allocation10 + $0x78] sm:$0xff]
    %v2769 = vld [vmem:[%s10] sm:$0x1]
    %v2771 = vlaneseq
    %v2772 = vshrl.u32 %v2771, 7
    %v2773 = vsub.s32 0, %v2772
    %v2774 = vrot.slane %v2769, %v2773
    %2776 = vmatprep.subr.mxu0 0.0
    %2777 = vmatpush1.msra.mxu0 %v2768
    %2778 = vmatprep.subr.mxu0 0.0
    %2779 = vmatpush1.msra.mxu0 %v2767
    %2780 = vmatprep.subr.mxu0 0.0
    %2781 = vmatpush1.msra.mxu0 %v2766
    %2782 = vmatprep.subr.mxu0 0.0
    %2783 = vmatpush1.msra.mxu0 %v2765
    %2784 = vmatprep.subr.mxu0 0.0
    %2785 = vmatpush1.msra.mxu0 %v2764
    %2786 = vmatprep.subr.mxu0 0.0
    %2787 = vmatpush1.msra.mxu0 %v2763
    %2788 = vmatprep.subr.mxu0 0.0
    %2789 = vmatpush1.msra.mxu0 %v2762
    %2790 = vmatprep.subr.mxu0 0.0
    %2791 = vmatpush1.msra.mxu0 %v2761
    %2792 = vmatprep.subr.mxu0 0.0
    %2793 = vmatpush1.msra.mxu0 %v2760
    %2794 = vmatprep.subr.mxu0 0.0
    %2795 = vmatpush1.msra.mxu0 %v2759
    %2796 = vmatprep.subr.mxu0 0.0
    %2797 = vmatpush1.msra.mxu0 %v2758
    %2798 = vmatprep.subr.mxu0 0.0
    %2799 = vmatpush1.msra.mxu0 %v2757
    %2800 = vmatprep.subr.mxu0 0.0
    %2801 = vmatpush1.msra.mxu0 %v2756
    %2802 = vmatprep.subr.mxu0 0.0
    %2803 = vmatpush1.msra.mxu0 %v2755
    %2804 = vmatprep.subr.mxu0 0.0
    %2805 = vmatpush1.msra.mxu0 %v2754
    %2806 = vmatprep.subr.mxu0 0.0
    %2807 = vmatpush1.msra.mxu0 %v2753
    %2808 = vmatprep.subr.mxu0 0.0
    %2809 = vmatpush2.msra.mxu0 0.0
    %2810 = vmatprep.subr.mxu0 0.0
    %2811 = vmatpush2.msra.mxu0 0.0
    %2812 = vmatprep.subr.mxu0 0.0
    %2813 = vmatpush2.msra.mxu0 0.0
    %2814 = vmatprep.subr.mxu0 0.0
    %2815 = vmatpush2.msra.mxu0 0.0
    %2816 = vmatprep.subr.mxu0 0.0
    %2817 = vmatpush2.msra.mxu0 0.0
    %2818 = vmatprep.subr.mxu0 0.0
    %2819 = vmatpush2.msra.mxu0 0.0
    %2820 = vmatprep.subr.mxu0 0.0
    %2821 = vmatpush2.msra.mxu0 0.0
    %2822 = vmatprep.subr.mxu0 0.0
    %2823 = vmatpush2.msra.mxu0 0.0
    %2824 = vmatprep.subr.mxu0 0.0
    %2825 = vmatpush2.msra.mxu0 0.0
    %2826 = vmatprep.subr.mxu0 0.0
    %2827 = vmatpush2.msra.mxu0 0.0
    %2828 = vmatprep.subr.mxu0 0.0
    %2829 = vmatpush2.msra.mxu0 0.0
    %2830 = vmatprep.subr.mxu0 0.0
    %2831 = vmatpush2.msra.mxu0 0.0
    %2832 = vmatprep.subr.mxu0 0.0
    %2833 = vmatpush2.msra.mxu0 0.0
    %2834 = vmatprep.subr.mxu0 0.0
    %2835 = vmatpush2.msra.mxu0 0.0
    %2836 = vmatprep.subr.mxu0 0.0
    %2837 = vmatpush2.msra.mxu0 0.0
    %2838 = vmatprep.subr.mxu0 0.0
    %2839 = vmatpush2.msra.mxu0 0.0
    %2840 = vmatprep.mubr.f32.mxu0 0.0
    %2841 = vmatmul.mubr.f32.gmra.mxu0 %v2752
    %v2842 = vpop.f32.mrf.mxu0
    %v2843 = vadd.f32 %v2774, %v2842
    %v2844 = vpop.f32.mrf.mxu0
    %2845 = vdwg.mxu0
    %2846 = vst [vmem:[#allocation12] sm:$0x3] %v2843
    // Predicated region
    $region62: #{net_forward.1} parent=1 // pred_check
      _
    $region63: #{net_forward.1} parent=1 // pred_check_branch
      %2848 = sbr.rel (0) target = $region65
    $region64: #{net_forward.1} parent=1 // pred_region
      %s2850 = ssub.s32 32, 32
      %2851 = vsyncadd [#allocation6], %s2850
      %s2853 = sshll.u32 [#allocation12], 4
      %s2854 = int_to_ptr.vmem [resolvable:$true] %s2853
      %2856 = dma.vmem_to_hbm [thread:$0]  %s2854, 32, %s11, [#allocation6]
    $region65: #{net_forward.1} parent=1 // pred_fallthru
      _
    // Predicated region
    $region66: #{net_forward.1} parent=1 // pred_check
      _
    $region67: #{net_forward.1} parent=1 // pred_check_branch
      %2858 = sbr.rel (0) target = $region69
    $region68: #{net_forward.1} parent=1 // pred_region
      %2859 = dma.done [#allocation6], 32
    $region69: #{net_forward.1} parent=1 // pred_fallthru
      _
    %2860 = vsyncpa [#allocation5], 1
    %2861 = vsyncpa [#allocation8], 1
    %2862 = vsyncpa [#allocation11], 1
    %2863 = vsyncpa [#allocation6], 1

</llo_original>
